<compile_context>
chip_gen: v6e
topology: v6e:2x2x1
jax: 0.10.0
libtpu: 0.0.40
codegen_flags: <defaults>
</compile_context>

<pallas_src>
import math
from functools import partial

import jax
import jax.numpy as jnp
from jax.experimental import pallas as pl
from jax.experimental.pallas import tpu as pltpu

LRELU_SLOPE = 0.2          # bias_act 'lrelu' alpha
SQRT2 = math.sqrt(2.0)     # bias_act 'lrelu' def_gain


def _round_up(v, m):
    return ((v + m - 1) // m) * m


def _pick_tile(total, cap, quantum):
    """Largest multiple of `quantum` dividing `total`, <= cap (fallback: total)."""
    best = None
    t = quantum
    while t <= min(cap, total):
        if total % t == 0:
            best = t
        t += quantum
    return best if best is not None else total


# ------------------------------------------------------------------ MinibatchStdLayer

def _mbstd_stat_kernel(G, M, x_ref, o_ref):
    x = x_ref[...]                                     # [N, H, W, C] f32
    _, H, W, C = x.shape
    mu = jnp.zeros((M, H, W, C), jnp.float32)
    for g in range(G):                                 # mean over group axis
        mu = mu + x[g * M:(g + 1) * M]
    mu = mu * (1.0 / G)
    var = jnp.zeros((M, H, W, C), jnp.float32)
    for g in range(G):
        d = x[g * M:(g + 1) * M] - mu
        var = var + d * d
    var = var * (1.0 / G)
    sd = jnp.sqrt(var + 1e-8)
    s = jnp.sum(sd, axis=3, keepdims=True)             # lane reduce
    s = jnp.sum(s, axis=2, keepdims=True)              # sublane reduce
    s = jnp.sum(s, axis=1, keepdims=True)              # [M,1,1,1]
    o_ref[...] = (s * (1.0 / (H * W * C))).reshape(M, 1)


def mbstd_stat(x_nhwc, group_size):
    """Per-group std statistic (one scalar per group member index)."""
    N = x_nhwc.shape[0]
    G = min(group_size, N) if group_size is not None else N
    M = N // G
    return pl.pallas_call(
        partial(_mbstd_stat_kernel, G, M),
        out_shape=jax.ShapeDtypeStruct((M, 1), jnp.float32),
        in_specs=[pl.BlockSpec(memory_space=pltpu.MemorySpace.VMEM)],
        out_specs=pl.BlockSpec(memory_space=pltpu.MemorySpace.VMEM),
    )(x_nhwc.astype(jnp.float32))


# ------------------------------------------------------------------ fused 3x3 conv + bias + lrelu

def _conv3x3_kernel(H, W, cin_p, act_gain, x_ref, w_ref, b_ref, o_ref):
    HW = H * W
    cout_p = o_ref.shape[-1]
    acc = jnp.zeros((HW, cout_p), jnp.float32)
    for ky in range(3):                                # 9 shifted matmuls (im2col in VMEM)
        for kx in range(3):
            tap = ky * 3 + kx
            xs = x_ref[0, ky:ky + H, kx:kx + W, :].reshape(HW, cin_p)      # bf16
            ws = w_ref[tap * cin_p:(tap + 1) * cin_p, :]                   # bf16
            acc = acc + jnp.dot(xs, ws, preferred_element_type=jnp.float32)
    acc = acc + b_ref[...]                              # f32 epilogue
    acc = jnp.where(acc >= 0.0, acc, LRELU_SLOPE * acc) * act_gain
    o_ref[0] = acc


def conv3x3_lrelu(x_aug_bf16, w_packed_bf16, bias_p, H, W, act_gain):
    N = x_aug_bf16.shape[0]
    cin_p = x_aug_bf16.shape[-1]
    cout_p = w_packed_bf16.shape[-1]
    HW = H * W
    flops = 2 * N * HW * 9 * cin_p * cout_p
    bytes_accessed = (x_aug_bf16.size * 2 + w_packed_bf16.size * 2
                      + bias_p.size * 4 + N * HW * cout_p * 4)
    return pl.pallas_call(
        partial(_conv3x3_kernel, H, W, cin_p, act_gain),
        out_shape=jax.ShapeDtypeStruct((N, HW, cout_p), jnp.float32),
        grid=(N,),
        in_specs=[
            pl.BlockSpec((1, H + 2, W + 2, cin_p), lambda n: (n, 0, 0, 0)),
            pl.BlockSpec((9 * cin_p, cout_p), lambda n: (0, 0)),
            pl.BlockSpec((1, cout_p), lambda n: (0, 0)),
        ],
        out_specs=pl.BlockSpec((1, HW, cout_p), lambda n: (n, 0, 0)),
        compiler_params=pltpu.CompilerParams(dimension_semantics=("parallel",)),
        cost_estimate=pl.CostEstimate(flops=flops, transcendentals=0,
                                      bytes_accessed=bytes_accessed),
    )(x_aug_bf16, w_packed_bf16, bias_p)


# ------------------------------------------------------------------ fused FC + lrelu + cmap projection

def _fc_cmap_kernel(cmap_dim, act_gain, a_ref, w_ref, b_ref, c_ref, o_ref, h_acc):
    k = pl.program_id(0)

    @pl.when(k == 0)
    def _():
        h_acc[...] = jnp.zeros_like(h_acc)

    a = a_ref[...].astype(jnp.bfloat16)
    h_acc[...] += jnp.dot(a, w_ref[...], preferred_element_type=jnp.float32)

    @pl.when(k == pl.num_programs(0) - 1)
    def _():
        h = h_acc[...] + b_ref[...]
        h = jnp.where(h >= 0.0, h, LRELU_SLOPE * h) * act_gain
        # TODO(synk): torch.nn.Dropout(p=0.5) is identity in eval mode; train-mode
        # stochastic dropout (pltpu.prng_*) is intentionally not implemented here.
        proj = jnp.sum(h * c_ref[...], axis=1, keepdims=True) * (1.0 / math.sqrt(cmap_dim))
        o_ref[...] = proj


def fc_lrelu_cmap(act_flat_f32, w_packed_bf16, bias_p, cmap_p, cmap_dim, *, tk_cap=2048):
    N, K = act_flat_f32.shape
    Zp = w_packed_bf16.shape[-1]
    tk = _pick_tile(K, tk_cap, 128)
    flops = 2 * N * K * Zp
    bytes_accessed = (act_flat_f32.size * 4 + w_packed_bf16.size * 2
                      + (bias_p.size + cmap_p.size + N) * 4)
    return pl.pallas_call(
        partial(_fc_cmap_kernel, cmap_dim, SQRT2),
        out_shape=jax.ShapeDtypeStruct((N, 1), jnp.float32),
        grid=(K // tk,),
        in_specs=[
            pl.BlockSpec((N, tk), lambda k: (0, k)),
            pl.BlockSpec((tk, Zp), lambda k: (k, 0)),
            pl.BlockSpec((1, Zp), lambda k: (0, 0)),
            pl.BlockSpec((N, Zp), lambda k: (0, 0)),
        ],
        out_specs=pl.BlockSpec((N, 1), lambda k: (0, 0)),
        scratch_shapes=[pltpu.VMEM((N, Zp), jnp.float32)],
        compiler_params=pltpu.CompilerParams(dimension_semantics=("arbitrary",)),
        cost_estimate=pl.CostEstimate(flops=flops, transcendentals=0,
                                      bytes_accessed=bytes_accessed),
    )(act_flat_f32, w_packed_bf16, bias_p, cmap_p)


# ------------------------------------------------------------------ EncoderEpilogue forward

def encoder_epilogue_forward(params, x_nchw, cmap, *, in_channels, resolution, z_dim,
                             cmap_dim, mbstd_group_size=4, mbstd_num_channels=1):
    N, C, H, W = x_nchw.shape
    assert C == in_channels and H == resolution and W == resolution
    x_nhwc = jnp.transpose(x_nchw.astype(jnp.float32), (0, 2, 3, 1))     # NHWC

    # --- MinibatchStdLayer ---
    if mbstd_num_channels > 0:
        G = min(mbstd_group_size, N) if mbstd_group_size is not None else N
        M = N // G
        stat_m = mbstd_stat(x_nhwc, mbstd_group_size)                    # [M, 1]
        stat_n = jnp.tile(stat_m, (G, 1))                                # sample n -> stat[n % M]
        stat_plane = jnp.broadcast_to(stat_n[:, None, None, :], (N, H, W, 1))
        x_cat = jnp.concatenate([x_nhwc, stat_plane], axis=-1)           # [N,H,W,C+1]
    else:
        x_cat = x_nhwc
    cin = x_cat.shape[-1]

    # --- Conv2dLayer(in+1 -> in, k=3, lrelu) as fused 9-tap MXU matmuls ---
    cin_p = _round_up(cin, 128)
    cout_p = _round_up(in_channels, 128)
    x_aug = jnp.pad(x_cat, ((0, 0), (1, 1), (1, 1), (0, cin_p - cin))).astype(jnp.bfloat16)

    wg_conv = 1.0 / math.sqrt(cin * 3 * 3)
    wc = jnp.transpose(params['conv_w'] * wg_conv, (2, 3, 1, 0))         # [3,3,Cin,Cout]
    wc = jnp.pad(wc, ((0, 0), (0, 0), (0, cin_p - cin), (0, cout_p - in_channels)))
    w_packed = wc.reshape(9 * cin_p, cout_p).astype(jnp.bfloat16)
    b_p = jnp.pad(params['conv_b'], (0, cout_p - in_channels)).reshape(1, cout_p).astype(jnp.float32)

    conv_out = conv3x3_lrelu(x_aug, w_packed, b_p, H, W, SQRT2)          # [N, H*W, cout_p] f32

    const_e_nhwc = conv_out.reshape(N, H, W, cout_p)[..., :in_channels]
    const_e = jnp.transpose(const_e_nhwc, (0, 3, 1, 2))                  # [N, C, H, W] (module output)

    # --- FullyConnectedLayer(C*R*R -> z_dim, lrelu) + dropout(eval) + cmap projection ---
    z_p = _round_up(z_dim, 128)
    k_feat = H * W * cout_p
    wg_fc = 1.0 / math.sqrt(in_channels * resolution * resolution)
    fw = (params['fc_w'] * wg_fc).reshape(z_dim, in_channels, H, W)       # PyTorch (c,h,w) flatten order
    fw = jnp.transpose(fw, (2, 3, 1, 0))                                  # [H, W, C, z]
    fw = jnp.pad(fw, ((0, 0), (0, 0), (0, cout_p - in_channels), (0, z_p - z_dim)))
    fw_packed = fw.reshape(k_feat, z_p).astype(jnp.bfloat16)
    fb_p = jnp.pad(params['fc_b'], (0, z_p - z_dim)).reshape(1, z_p).astype(jnp.float32)

    act_flat = conv_out.reshape(N, k_feat)                                # free reshape (contiguous)
    cmap_p = jnp.pad(cmap.astype(jnp.float32), ((0, 0), (0, z_p - cmap_dim)))

    out = fc_lrelu_cmap(act_flat, fw_packed, fb_p, cmap_p, cmap_dim)      # [N, 1]
    return out, const_e


# ------------------------------------------------------------------ pure-JAX reference (for checking)

def reference_forward(params, x_nchw, cmap, *, in_channels, resolution, z_dim,
                      cmap_dim, mbstd_group_size=4, mbstd_num_channels=1):
    N, C, H, W = x_nchw.shape
    x = x_nchw.astype(jnp.float32)
    if mbstd_num_channels > 0:
        G = min(mbstd_group_size, N) if mbstd_group_size is not None else N
        M = N // G
        Fc = mbstd_num_channels
        y = x.reshape(G, M, Fc, C // Fc, H, W)
        y = y - jnp.mean(y, axis=0)
        y = jnp.mean(jnp.square(y), axis=0)
        y = jnp.sqrt(y + 1e-8)
        y = jnp.mean(y, axis=(2, 3, 4)).reshape(M, Fc, 1, 1)
        y = jnp.tile(y, (G, 1, H, W))
        x = jnp.concatenate([x, y], axis=1)
    cin = x.shape[1]
    lrelu = lambda z: jnp.where(z >= 0, z, LRELU_SLOPE * z)

    wg = 1.0 / math.sqrt(cin * 9)
    w = jnp.transpose(params['conv_w'] * wg, (2, 3, 1, 0))                # HWIO
    h = jax.lax.conv_general_dilated(
        jnp.transpose(x, (0, 2, 3, 1)), w, (1, 1), ((1, 1), (1, 1)),
        dimension_numbers=('NHWC', 'HWIO', 'NHWC'))
    h = lrelu(h + params['conv_b'].reshape(1, 1, 1, -1)) * SQRT2
    const_e = jnp.transpose(h, (0, 3, 1, 2))

    flat = const_e.reshape(N, in_channels * H * W)
    wg_fc = 1.0 / math.sqrt(in_channels * resolution ** 2)
    z = flat @ (params['fc_w'] * wg_fc).T + params['fc_b']
    z = lrelu(z) * SQRT2
    out = jnp.sum(z * cmap, axis=1, keepdims=True) * (1.0 / math.sqrt(cmap_dim))
    return out, const_e


# ------------------------------------------------------------------ main

if __name__ == "__main__":
    key = jax.random.PRNGKey(0)
    N = 8
    in_channels = 32
    resolution = 8
    z_dim = 64
    cmap_dim = 64
    img_channels = 3          # unused by forward (architecture != 'skip')

    ks = jax.random.split(key, 7)
    params = {
        'conv_w': jax.random.normal(ks[0], (in_channels, in_channels + 1, 3, 3), jnp.float32),
        'conv_b': 0.1 * jax.random.normal(ks[1], (in_channels,), jnp.float32),
        'fc_w':   jax.random.normal(ks[2], (z_dim, in_channels * resolution ** 2), jnp.float32),
        'fc_b':   0.1 * jax.random.normal(ks[3], (z_dim,), jnp.float32),
    }
    x = jax.random.normal(ks[4], (N, in_channels, resolution, resolution), jnp.float32)
    cmap = jax.random.normal(ks[5], (N, cmap_dim), jnp.float32)

    fwd = jax.jit(lambda p, xx, cc: encoder_epilogue_forward(
        p, xx, cc, in_channels=in_channels, resolution=resolution,
        z_dim=z_dim, cmap_dim=cmap_dim, mbstd_group_size=4, mbstd_num_channels=1))

    out, const_e = fwd(params, x, cmap)
    out = jax.block_until_ready(out)
    const_e = jax.block_until_ready(const_e)

    ref_out, ref_const = reference_forward(
        params, x, cmap, in_channels=in_channels, resolution=resolution,
        z_dim=z_dim, cmap_dim=cmap_dim, mbstd_group_size=4, mbstd_num_channels=1)

    assert out.shape == (N, 1), out.shape
    assert const_e.shape == (N, in_channels, resolution, resolution), const_e.shape

    def check(a, b, name):
        err = float(jnp.max(jnp.abs(a - b)))
        tol = 5e-2 + 5e-2 * float(jnp.max(jnp.abs(b)))   # bf16 MXU inputs, f32 accumulation
        assert err <= tol, f"{name} mismatch: {err} > {tol}"

    check(const_e, ref_const, "const_e")
    check(out, ref_out, "out")
    print("KERNEL_OK")
</pallas_src>

<mosaic_0001>
module attributes {stable_mosaic.version = 11 : i64} {
  func.func @_mbstd_stat_kernel(%arg0: memref<8x8x8x32xf32, #tpu.memory_space<vmem>>, %arg1: memref<2x1xf32, #tpu.memory_space<vmem>>) attributes {dimension_semantics = [], scalar_prefetch = 0 : i64, scratch_operands = 0 : i64, tpu.core_type = #tpu.core_type<tc>} {
    %c0 = arith.constant 0 : index
    %c0_0 = arith.constant 0 : index
    %c0_1 = arith.constant 0 : index
    %c0_2 = arith.constant 0 : index
    %0 = vector.load %arg0[%c0, %c0_0, %c0_1, %c0_2] : memref<8x8x8x32xf32, #tpu.memory_space<vmem>>, vector<8x8x8x32xf32>
    %cst = arith.constant 0.000000e+00 : f32
    %1 = vector.broadcast %cst : f32 to vector<2x8x8x32xf32>
    %2 = vector.extract_strided_slice %0 {offsets = [0, 0, 0, 0], sizes = [2, 8, 8, 32], strides = [1, 1, 1, 1]} : vector<8x8x8x32xf32> to vector<2x8x8x32xf32>
    %3 = arith.addf %1, %2 : vector<2x8x8x32xf32>
    %4 = vector.extract_strided_slice %0 {offsets = [2, 0, 0, 0], sizes = [2, 8, 8, 32], strides = [1, 1, 1, 1]} : vector<8x8x8x32xf32> to vector<2x8x8x32xf32>
    %5 = arith.addf %3, %4 : vector<2x8x8x32xf32>
    %6 = vector.extract_strided_slice %0 {offsets = [4, 0, 0, 0], sizes = [2, 8, 8, 32], strides = [1, 1, 1, 1]} : vector<8x8x8x32xf32> to vector<2x8x8x32xf32>
    %7 = arith.addf %5, %6 : vector<2x8x8x32xf32>
    %8 = vector.extract_strided_slice %0 {offsets = [6, 0, 0, 0], sizes = [2, 8, 8, 32], strides = [1, 1, 1, 1]} : vector<8x8x8x32xf32> to vector<2x8x8x32xf32>
    %9 = arith.addf %7, %8 : vector<2x8x8x32xf32>
    %cst_3 = arith.constant 2.500000e-01 : f32
    %10 = vector.broadcast %cst_3 : f32 to vector<2x8x8x32xf32>
    %11 = arith.mulf %9, %10 : vector<2x8x8x32xf32>
    %cst_4 = arith.constant 0.000000e+00 : f32
    %12 = vector.broadcast %cst_4 : f32 to vector<2x8x8x32xf32>
    %13 = vector.extract_strided_slice %0 {offsets = [0, 0, 0, 0], sizes = [2, 8, 8, 32], strides = [1, 1, 1, 1]} : vector<8x8x8x32xf32> to vector<2x8x8x32xf32>
    %14 = arith.subf %13, %11 : vector<2x8x8x32xf32>
    %15 = arith.mulf %14, %14 : vector<2x8x8x32xf32>
    %16 = arith.addf %12, %15 : vector<2x8x8x32xf32>
    %17 = vector.extract_strided_slice %0 {offsets = [2, 0, 0, 0], sizes = [2, 8, 8, 32], strides = [1, 1, 1, 1]} : vector<8x8x8x32xf32> to vector<2x8x8x32xf32>
    %18 = arith.subf %17, %11 : vector<2x8x8x32xf32>
    %19 = arith.mulf %18, %18 : vector<2x8x8x32xf32>
    %20 = arith.addf %16, %19 : vector<2x8x8x32xf32>
    %21 = vector.extract_strided_slice %0 {offsets = [4, 0, 0, 0], sizes = [2, 8, 8, 32], strides = [1, 1, 1, 1]} : vector<8x8x8x32xf32> to vector<2x8x8x32xf32>
    %22 = arith.subf %21, %11 : vector<2x8x8x32xf32>
    %23 = arith.mulf %22, %22 : vector<2x8x8x32xf32>
    %24 = arith.addf %20, %23 : vector<2x8x8x32xf32>
    %25 = vector.extract_strided_slice %0 {offsets = [6, 0, 0, 0], sizes = [2, 8, 8, 32], strides = [1, 1, 1, 1]} : vector<8x8x8x32xf32> to vector<2x8x8x32xf32>
    %26 = arith.subf %25, %11 : vector<2x8x8x32xf32>
    %27 = arith.mulf %26, %26 : vector<2x8x8x32xf32>
    %28 = arith.addf %24, %27 : vector<2x8x8x32xf32>
    %cst_5 = arith.constant 2.500000e-01 : f32
    %29 = vector.broadcast %cst_5 : f32 to vector<2x8x8x32xf32>
    %30 = arith.mulf %28, %29 : vector<2x8x8x32xf32>
    %cst_6 = arith.constant 9.99999993E-9 : f32
    %31 = vector.broadcast %cst_6 : f32 to vector<2x8x8x32xf32>
    %32 = arith.addf %30, %31 : vector<2x8x8x32xf32>
    %33 = math.sqrt %32 : vector<2x8x8x32xf32>
    %cst_7 = arith.constant dense<0.000000e+00> : vector<2x8x8xf32>
    %34 = vector.multi_reduction <add>, %33, %cst_7 [3] : vector<2x8x8x32xf32> to vector<2x8x8xf32>
    %35 = vector.shape_cast %34 : vector<2x8x8xf32> to vector<2x8x8x1xf32>
    %cst_8 = arith.constant dense<0.000000e+00> : vector<2x8x1xf32>
    %36 = vector.multi_reduction <add>, %35, %cst_8 [2] : vector<2x8x8x1xf32> to vector<2x8x1xf32>
    %37 = vector.shape_cast %36 : vector<2x8x1xf32> to vector<2x8x1x1xf32>
    %cst_9 = arith.constant dense<0.000000e+00> : vector<2x1x1xf32>
    %38 = vector.multi_reduction <add>, %37, %cst_9 [1] : vector<2x8x1x1xf32> to vector<2x1x1xf32>
    %39 = vector.shape_cast %38 : vector<2x1x1xf32> to vector<2x1x1x1xf32>
    %cst_10 = arith.constant 4.8828125E-4 : f32
    %40 = vector.broadcast %cst_10 : f32 to vector<2x1x1x1xf32>
    %41 = arith.mulf %39, %40 : vector<2x1x1x1xf32>
    %42 = vector.shape_cast %41 : vector<2x1x1x1xf32> to vector<2x1xf32>
    %c0_11 = arith.constant 0 : index
    %c0_12 = arith.constant 0 : index
    %43 = vector.load %arg1[%c0_11, %c0_12] : memref<2x1xf32, #tpu.memory_space<vmem>>, vector<2x1xf32>
    tpu.vector_store %arg1[%c0_11, %c0_12], %42 {strides = array<i32>} : memref<2x1xf32, #tpu.memory_space<vmem>>, vector<2x1xf32>,
    return
  }
}

module attributes {stable_mosaic.version = 11 : i64} {
  func.func @_conv3x3_kernel(%arg0: i32, %arg1: memref<1x10x10x128xbf16, #tpu.memory_space<vmem>>, %arg2: memref<1152x128xbf16, #tpu.memory_space<vmem>>, %arg3: memref<1x128xf32, #tpu.memory_space<vmem>>, %arg4: memref<1x64x128xf32, #tpu.memory_space<vmem>>) attributes {dimension_semantics = [#tpu.dimension_semantics<parallel>], iteration_bounds = array<i64: 8>, scalar_prefetch = 0 : i64, scratch_operands = 0 : i64, tpu.core_type = #tpu.core_type<tc>, window_params = [{transform_indices = @transform_0, window_bounds = array<i64: 1, 10, 10, 128>}, {pipeline_mode = #tpu.pipeline_mode<synchronous>, transform_indices = @transform_1, window_bounds = array<i64: 1152, 128>}, {pipeline_mode = #tpu.pipeline_mode<synchronous>, transform_indices = @transform_2, window_bounds = array<i64: 1, 128>}, {transform_indices = @transform_3, window_bounds = array<i64: 1, 64, 128>}]} {
    %cst = arith.constant 0.000000e+00 : f32
    %0 = vector.broadcast %cst : f32 to vector<64x128xf32>
    %c0 = arith.constant 0 : index
    %c0_0 = arith.constant 0 : index
    %c0_1 = arith.constant 0 : index
    %c0_2 = arith.constant 0 : index
    %1 = vector.load %arg1[%c0, %c0_0, %c0_1, %c0_2] : memref<1x10x10x128xbf16, #tpu.memory_space<vmem>>, vector<1x8x8x128xbf16>
    %2 = vector.shape_cast %1 : vector<1x8x8x128xbf16> to vector<8x8x128xbf16>
    %3 = vector.shape_cast %2 : vector<8x8x128xbf16> to vector<64x128xbf16>
    %c0_3 = arith.constant 0 : index
    %c0_4 = arith.constant 0 : index
    %4 = vector.load %arg2[%c0_3, %c0_4] : memref<1152x128xbf16, #tpu.memory_space<vmem>>, vector<128x128xbf16>
    %cst_5 = arith.constant dense<0.000000e+00> : vector<64x128xf32>
    %5 = tpu.matmul %3, %4, %cst_5 {dimension_numbers = #tpu.dot_dimension_numbers<[1], [0], [0], [1], [0, 0, 1, 1], [], []>} : vector<64x128xbf16>, vector<128x128xbf16>, vector<64x128xf32> -> vector<64x128xf32>
    %6 = arith.addf %0, %5 : vector<64x128xf32>
    %c0_6 = arith.constant 0 : index
    %c0_7 = arith.constant 0 : index
    %c1 = arith.constant 1 : index
    %c0_8 = arith.constant 0 : index
    %7 = vector.load %arg1[%c0_6, %c0_7, %c1, %c0_8] : memref<1x10x10x128xbf16, #tpu.memory_space<vmem>>, vector<1x8x8x128xbf16>
    %8 = vector.shape_cast %7 : vector<1x8x8x128xbf16> to vector<8x8x128xbf16>
    %9 = vector.shape_cast %8 : vector<8x8x128xbf16> to vector<64x128xbf16>
    %c128 = arith.constant 128 : index
    %c0_9 = arith.constant 0 : index
    %10 = vector.load %arg2[%c128, %c0_9] : memref<1152x128xbf16, #tpu.memory_space<vmem>>, vector<128x128xbf16>
    %cst_10 = arith.constant dense<0.000000e+00> : vector<64x128xf32>
    %11 = tpu.matmul %9, %10, %cst_10 {dimension_numbers = #tpu.dot_dimension_numbers<[1], [0], [0], [1], [0, 0, 1, 1], [], []>} : vector<64x128xbf16>, vector<128x128xbf16>, vector<64x128xf32> -> vector<64x128xf32>
    %12 = arith.addf %6, %11 : vector<64x128xf32>
    %c0_11 = arith.constant 0 : index
    %c0_12 = arith.constant 0 : index
    %c2 = arith.constant 2 : index
    %c0_13 = arith.constant 0 : index
    %13 = vector.load %arg1[%c0_11, %c0_12, %c2, %c0_13] : memref<1x10x10x128xbf16, #tpu.memory_space<vmem>>, vector<1x8x8x128xbf16>
    %14 = vector.shape_cast %13 : vector<1x8x8x128xbf16> to vector<8x8x128xbf16>
    %15 = vector.shape_cast %14 : vector<8x8x128xbf16> to vector<64x128xbf16>
    %c256 = arith.constant 256 : index
    %c0_14 = arith.constant 0 : index
    %16 = vector.load %arg2[%c256, %c0_14] : memref<1152x128xbf16, #tpu.memory_space<vmem>>, vector<128x128xbf16>
    %cst_15 = arith.constant dense<0.000000e+00> : vector<64x128xf32>
    %17 = tpu.matmul %15, %16, %cst_15 {dimension_numbers = #tpu.dot_dimension_numbers<[1], [0], [0], [1], [0, 0, 1, 1], [], []>} : vector<64x128xbf16>, vector<128x128xbf16>, vector<64x128xf32> -> vector<64x128xf32>
    %18 = arith.addf %12, %17 : vector<64x128xf32>
    %c0_16 = arith.constant 0 : index
    %c1_17 = arith.constant 1 : index
    %c0_18 = arith.constant 0 : index
    %c0_19 = arith.constant 0 : index
    %19 = vector.load %arg1[%c0_16, %c1_17, %c0_18, %c0_19] : memref<1x10x10x128xbf16, #tpu.memory_space<vmem>>, vector<1x8x8x128xbf16>
    %20 = vector.shape_cast %19 : vector<1x8x8x128xbf16> to vector<8x8x128xbf16>
    %21 = vector.shape_cast %20 : vector<8x8x128xbf16> to vector<64x128xbf16>
    %c384 = arith.constant 384 : index
    %c0_20 = arith.constant 0 : index
    %22 = vector.load %arg2[%c384, %c0_20] : memref<1152x128xbf16, #tpu.memory_space<vmem>>, vector<128x128xbf16>
    %cst_21 = arith.constant dense<0.000000e+00> : vector<64x128xf32>
    %23 = tpu.matmul %21, %22, %cst_21 {dimension_numbers = #tpu.dot_dimension_numbers<[1], [0], [0], [1], [0, 0, 1, 1], [], []>} : vector<64x128xbf16>, vector<128x128xbf16>, vector<64x128xf32> -> vector<64x128xf32>
    %24 = arith.addf %18, %23 : vector<64x128xf32>
    %c0_22 = arith.constant 0 : index
    %c1_23 = arith.constant 1 : index
    %c1_24 = arith.constant 1 : index
    %c0_25 = arith.constant 0 : index
    %25 = vector.load %arg1[%c0_22, %c1_23, %c1_24, %c0_25] : memref<1x10x10x128xbf16, #tpu.memory_space<vmem>>, vector<1x8x8x128xbf16>
    %26 = vector.shape_cast %25 : vector<1x8x8x128xbf16> to vector<8x8x128xbf16>
    %27 = vector.shape_cast %26 : vector<8x8x128xbf16> to vector<64x128xbf16>
    %c512 = arith.constant 512 : index
    %c0_26 = arith.constant 0 : index
    %28 = vector.load %arg2[%c512, %c0_26] : memref<1152x128xbf16, #tpu.memory_space<vmem>>, vector<128x128xbf16>
    %cst_27 = arith.constant dense<0.000000e+00> : vector<64x128xf32>
    %29 = tpu.matmul %27, %28, %cst_27 {dimension_numbers = #tpu.dot_dimension_numbers<[1], [0], [0], [1], [0, 0, 1, 1], [], []>} : vector<64x128xbf16>, vector<128x128xbf16>, vector<64x128xf32> -> vector<64x128xf32>
    %30 = arith.addf %24, %29 : vector<64x128xf32>
    %c0_28 = arith.constant 0 : index
    %c1_29 = arith.constant 1 : index
    %c2_30 = arith.constant 2 : index
    %c0_31 = arith.constant 0 : index
    %31 = vector.load %arg1[%c0_28, %c1_29, %c2_30, %c0_31] : memref<1x10x10x128xbf16, #tpu.memory_space<vmem>>, vector<1x8x8x128xbf16>
    %32 = vector.shape_cast %31 : vector<1x8x8x128xbf16> to vector<8x8x128xbf16>
    %33 = vector.shape_cast %32 : vector<8x8x128xbf16> to vector<64x128xbf16>
    %c640 = arith.constant 640 : index
    %c0_32 = arith.constant 0 : index
    %34 = vector.load %arg2[%c640, %c0_32] : memref<1152x128xbf16, #tpu.memory_space<vmem>>, vector<128x128xbf16>
    %cst_33 = arith.constant dense<0.000000e+00> : vector<64x128xf32>
    %35 = tpu.matmul %33, %34, %cst_33 {dimension_numbers = #tpu.dot_dimension_numbers<[1], [0], [0], [1], [0, 0, 1, 1], [], []>} : vector<64x128xbf16>, vector<128x128xbf16>, vector<64x128xf32> -> vector<64x128xf32>
    %36 = arith.addf %30, %35 : vector<64x128xf32>
    %c0_34 = arith.constant 0 : index
    %c2_35 = arith.constant 2 : index
    %c0_36 = arith.constant 0 : index
    %c0_37 = arith.constant 0 : index
    %37 = vector.load %arg1[%c0_34, %c2_35, %c0_36, %c0_37] : memref<1x10x10x128xbf16, #tpu.memory_space<vmem>>, vector<1x8x8x128xbf16>
    %38 = vector.shape_cast %37 : vector<1x8x8x128xbf16> to vector<8x8x128xbf16>
    %39 = vector.shape_cast %38 : vector<8x8x128xbf16> to vector<64x128xbf16>
    %c768 = arith.constant 768 : index
    %c0_38 = arith.constant 0 : index
    %40 = vector.load %arg2[%c768, %c0_38] : memref<1152x128xbf16, #tpu.memory_space<vmem>>, vector<128x128xbf16>
    %cst_39 = arith.constant dense<0.000000e+00> : vector<64x128xf32>
    %41 = tpu.matmul %39, %40, %cst_39 {dimension_numbers = #tpu.dot_dimension_numbers<[1], [0], [0], [1], [0, 0, 1, 1], [], []>} : vector<64x128xbf16>, vector<128x128xbf16>, vector<64x128xf32> -> vector<64x128xf32>
    %42 = arith.addf %36, %41 : vector<64x128xf32>
    %c0_40 = arith.constant 0 : index
    %c2_41 = arith.constant 2 : index
    %c1_42 = arith.constant 1 : index
    %c0_43 = arith.constant 0 : index
    %43 = vector.load %arg1[%c0_40, %c2_41, %c1_42, %c0_43] : memref<1x10x10x128xbf16, #tpu.memory_space<vmem>>, vector<1x8x8x128xbf16>
    %44 = vector.shape_cast %43 : vector<1x8x8x128xbf16> to vector<8x8x128xbf16>
    %45 = vector.shape_cast %44 : vector<8x8x128xbf16> to vector<64x128xbf16>
    %c896 = arith.constant 896 : index
    %c0_44 = arith.constant 0 : index
    %46 = vector.load %arg2[%c896, %c0_44] : memref<1152x128xbf16, #tpu.memory_space<vmem>>, vector<128x128xbf16>
    %cst_45 = arith.constant dense<0.000000e+00> : vector<64x128xf32>
    %47 = tpu.matmul %45, %46, %cst_45 {dimension_numbers = #tpu.dot_dimension_numbers<[1], [0], [0], [1], [0, 0, 1, 1], [], []>} : vector<64x128xbf16>, vector<128x128xbf16>, vector<64x128xf32> -> vector<64x128xf32>
    %48 = arith.addf %42, %47 : vector<64x128xf32>
    %c0_46 = arith.constant 0 : index
    %c2_47 = arith.constant 2 : index
    %c2_48 = arith.constant 2 : index
    %c0_49 = arith.constant 0 : index
    %49 = vector.load %arg1[%c0_46, %c2_47, %c2_48, %c0_49] : memref<1x10x10x128xbf16, #tpu.memory_space<vmem>>, vector<1x8x8x128xbf16>
    %50 = vector.shape_cast %49 : vector<1x8x8x128xbf16> to vector<8x8x128xbf16>
    %51 = vector.shape_cast %50 : vector<8x8x128xbf16> to vector<64x128xbf16>
    %c1024 = arith.constant 1024 : index
    %c0_50 = arith.constant 0 : index
    %52 = vector.load %arg2[%c1024, %c0_50] : memref<1152x128xbf16, #tpu.memory_space<vmem>>, vector<128x128xbf16>
    %cst_51 = arith.constant dense<0.000000e+00> : vector<64x128xf32>
    %53 = tpu.matmul %51, %52, %cst_51 {dimension_numbers = #tpu.dot_dimension_numbers<[1], [0], [0], [1], [0, 0, 1, 1], [], []>} : vector<64x128xbf16>, vector<128x128xbf16>, vector<64x128xf32> -> vector<64x128xf32>
    %54 = arith.addf %48, %53 : vector<64x128xf32>
    %c0_52 = arith.constant 0 : index
    %c0_53 = arith.constant 0 : index
    %55 = vector.load %arg3[%c0_52, %c0_53] : memref<1x128xf32, #tpu.memory_space<vmem>>, vector<1x128xf32>
    %56 = vector.broadcast %55 : vector<1x128xf32> to vector<64x128xf32>
    %57 = arith.addf %54, %56 : vector<64x128xf32>
    %cst_54 = arith.constant 0.000000e+00 : f32
    %58 = vector.broadcast %cst_54 : f32 to vector<64x128xf32>
    %59 = arith.cmpf oge, %57, %58 : vector<64x128xf32>
    %cst_55 = arith.constant 2.000000e-01 : f32
    %60 = vector.broadcast %cst_55 : f32 to vector<64x128xf32>
    %61 = arith.mulf %60, %57 : vector<64x128xf32>
    %62 = arith.select %59, %57, %61 : vector<64x128xi1>, vector<64x128xf32>
    %cst_56 = arith.constant 1.41421354 : f32
    %63 = vector.broadcast %cst_56 : f32 to vector<64x128xf32>
    %64 = arith.mulf %62, %63 : vector<64x128xf32>
    %c0_57 = arith.constant 0 : index
    %c0_58 = arith.constant 0 : index
    %c0_59 = arith.constant 0 : index
    %65 = vector.load %arg4[%c0_57, %c0_58, %c0_59] : memref<1x64x128xf32, #tpu.memory_space<vmem>>, vector<1x64x128xf32>
    %66 = vector.shape_cast %65 : vector<1x64x128xf32> to vector<64x128xf32>
    %67 = vector.shape_cast %64 : vector<64x128xf32> to vector<1x64x128xf32>
    tpu.vector_store %arg4[%c0_57, %c0_58, %c0_59], %67 {strides = array<i32>} : memref<1x64x128xf32, #tpu.memory_space<vmem>>, vector<1x64x128xf32>,
    return
  }
  func.func @transform_0(%arg0: i32) -> (i32, i32, i32, i32) {
    %c0_i32 = arith.constant 0 : i32
    %c0_i32_0 = arith.constant 0 : i32
    %c0_i32_1 = arith.constant 0 : i32
    %c0_i32_2 = arith.constant 0 : i32
    return %arg0, %c0_i32, %c0_i32_0, %c0_i32_1 : i32, i32, i32, i32
  }
  func.func @transform_1(%arg0: i32) -> (i32, i32) {
    %c0_i32 = arith.constant 0 : i32
    %c0_i32_0 = arith.constant 0 : i32
    %c0_i32_1 = arith.constant 0 : i32
    return %c0_i32, %c0_i32_0 : i32, i32
  }
  func.func @transform_2(%arg0: i32) -> (i32, i32) {
    %c0_i32 = arith.constant 0 : i32
    %c0_i32_0 = arith.constant 0 : i32
    %c0_i32_1 = arith.constant 0 : i32
    return %c0_i32, %c0_i32_0 : i32, i32
  }
  func.func @transform_3(%arg0: i32) -> (i32, i32, i32) {
    %c0_i32 = arith.constant 0 : i32
    %c0_i32_0 = arith.constant 0 : i32
    %c0_i32_1 = arith.constant 0 : i32
    return %arg0, %c0_i32, %c0_i32_0 : i32, i32, i32
  }
}

module attributes {stable_mosaic.version = 11 : i64} {
  func.func @_fc_cmap_kernel(%arg0: i32, %arg1: memref<8x2048xf32, #tpu.memory_space<vmem>>, %arg2: memref<2048x128xbf16, #tpu.memory_space<vmem>>, %arg3: memref<1x128xf32, #tpu.memory_space<vmem>>, %arg4: memref<8x128xf32, #tpu.memory_space<vmem>>, %arg5: memref<8x1xf32, #tpu.memory_space<vmem>>, %arg6: memref<8x128xf32, #tpu.memory_space<vmem>>) attributes {dimension_semantics = [#tpu.dimension_semantics<arbitrary>], iteration_bounds = array<i64: 4>, scalar_prefetch = 0 : i64, scratch_operands = 1 : i64, tpu.core_type = #tpu.core_type<tc>, window_params = [{transform_indices = @transform_0, window_bounds = array<i64: 8, 2048>}, {transform_indices = @transform_1, window_bounds = array<i64: 2048, 128>}, {pipeline_mode = #tpu.pipeline_mode<synchronous>, transform_indices = @transform_2, window_bounds = array<i64: 1, 128>}, {pipeline_mode = #tpu.pipeline_mode<synchronous>, transform_indices = @transform_3, window_bounds = array<i64: 8, 128>}, {pipeline_mode = #tpu.pipeline_mode<synchronous>, transform_indices = @transform_4, window_bounds = array<i64: 8, 1>}]} {
    %c0_i32 = arith.constant 0 : i32
    %0 = arith.cmpi eq, %arg0, %c0_i32 : i32
    %1 = arith.extui %0 : i1 to i32
    %c0_i32_0 = arith.constant 0 : i32
    %2 = arith.cmpi ne, %1, %c0_i32_0 : i32
    scf.if %2 {
      %cst_9 = arith.constant 0.000000e+00 : f32
      %13 = vector.broadcast %cst_9 : f32 to vector<8x128xf32>
      %c0_10 = arith.constant 0 : index
      %c0_11 = arith.constant 0 : index
      %14 = vector.load %arg6[%c0_10, %c0_11] : memref<8x128xf32, #tpu.memory_space<vmem>>, vector<8x128xf32>
      tpu.vector_store %arg6[%c0_10, %c0_11], %13 {strides = array<i32>} : memref<8x128xf32, #tpu.memory_space<vmem>>, vector<8x128xf32>,
    } else {
    }
    %c0 = arith.constant 0 : index
    %c0_1 = arith.constant 0 : index
    %3 = vector.load %arg1[%c0, %c0_1] : memref<8x2048xf32, #tpu.memory_space<vmem>>, vector<8x2048xf32>
    %4 = arith.truncf %3 : vector<8x2048xf32> to vector<8x2048xbf16>
    %c0_2 = arith.constant 0 : index
    %c0_3 = arith.constant 0 : index
    %5 = vector.load %arg6[%c0_2, %c0_3] : memref<8x128xf32, #tpu.memory_space<vmem>>, vector<8x128xf32>
    %c0_4 = arith.constant 0 : index
    %c0_5 = arith.constant 0 : index
    %6 = vector.load %arg2[%c0_4, %c0_5] : memref<2048x128xbf16, #tpu.memory_space<vmem>>, vector<2048x128xbf16>
    %cst = arith.constant dense<0.000000e+00> : vector<8x128xf32>
    %7 = tpu.matmul %4, %6, %cst {dimension_numbers = #tpu.dot_dimension_numbers<[1], [0], [0], [1], [0, 0, 1, 1], [], []>} : vector<8x2048xbf16>, vector<2048x128xbf16>, vector<8x128xf32> -> vector<8x128xf32>
    %8 = arith.addf %5, %7 : vector<8x128xf32>
    %c0_6 = arith.constant 0 : index
    %c0_7 = arith.constant 0 : index
    %9 = vector.load %arg6[%c0_6, %c0_7] : memref<8x128xf32, #tpu.memory_space<vmem>>, vector<8x128xf32>
    tpu.vector_store %arg6[%c0_6, %c0_7], %8 {strides = array<i32>} : memref<8x128xf32, #tpu.memory_space<vmem>>, vector<8x128xf32>,
    %c3_i32 = arith.constant 3 : i32
    %10 = arith.cmpi eq, %arg0, %c3_i32 : i32
    %11 = arith.extui %10 : i1 to i32
    %c0_i32_8 = arith.constant 0 : i32
    %12 = arith.cmpi ne, %11, %c0_i32_8 : i32
    scf.if %12 {
      %c0_9 = arith.constant 0 : index
      %c0_10 = arith.constant 0 : index
      %13 = vector.load %arg6[%c0_9, %c0_10] : memref<8x128xf32, #tpu.memory_space<vmem>>, vector<8x128xf32>
      %c0_11 = arith.constant 0 : index
      %c0_12 = arith.constant 0 : index
      %14 = vector.load %arg3[%c0_11, %c0_12] : memref<1x128xf32, #tpu.memory_space<vmem>>, vector<1x128xf32>
      %15 = vector.broadcast %14 : vector<1x128xf32> to vector<8x128xf32>
      %16 = arith.addf %13, %15 : vector<8x128xf32>
      %cst_13 = arith.constant 0.000000e+00 : f32
      %17 = vector.broadcast %cst_13 : f32 to vector<8x128xf32>
      %18 = arith.cmpf oge, %16, %17 : vector<8x128xf32>
      %cst_14 = arith.constant 2.000000e-01 : f32
      %19 = vector.broadcast %cst_14 : f32 to vector<8x128xf32>
      %20 = arith.mulf %19, %16 : vector<8x128xf32>
      %21 = arith.select %18, %16, %20 : vector<8x128xi1>, vector<8x128xf32>
      %cst_15 = arith.constant 1.41421354 : f32
      %22 = vector.broadcast %cst_15 : f32 to vector<8x128xf32>
      %23 = arith.mulf %21, %22 : vector<8x128xf32>
      %c0_16 = arith.constant 0 : index
      %c0_17 = arith.constant 0 : index
      %24 = vector.load %arg4[%c0_16, %c0_17] : memref<8x128xf32, #tpu.memory_space<vmem>>, vector<8x128xf32>
      %25 = arith.mulf %23, %24 : vector<8x128xf32>
      %cst_18 = arith.constant dense<0.000000e+00> : vector<8xf32>
      %26 = vector.multi_reduction <add>, %25, %cst_18 [1] : vector<8x128xf32> to vector<8xf32>
      %27 = vector.shape_cast %26 : vector<8xf32> to vector<8x1xf32>
      %cst_19 = arith.constant 1.250000e-01 : f32
      %28 = vector.broadcast %cst_19 : f32 to vector<8x1xf32>
      %29 = arith.mulf %27, %28 : vector<8x1xf32>
      %c0_20 = arith.constant 0 : index
      %c0_21 = arith.constant 0 : index
      %30 = vector.load %arg5[%c0_20, %c0_21] : memref<8x1xf32, #tpu.memory_space<vmem>>, vector<8x1xf32>
      tpu.vector_store %arg5[%c0_20, %c0_21], %29 {strides = array<i32>} : memref<8x1xf32, #tpu.memory_space<vmem>>, vector<8x1xf32>,
    } else {
    }
    return
  }
  func.func @transform_0(%arg0: i32) -> (i32, i32) {
    %c0_i32 = arith.constant 0 : i32
    %c0_i32_0 = arith.constant 0 : i32
    return %c0_i32, %arg0 : i32, i32
  }
  func.func @transform_1(%arg0: i32) -> (i32, i32) {
    %c0_i32 = arith.constant 0 : i32
    %c0_i32_0 = arith.constant 0 : i32
    return %arg0, %c0_i32 : i32, i32
  }
  func.func @transform_2(%arg0: i32) -> (i32, i32) {
    %c0_i32 = arith.constant 0 : i32
    %c0_i32_0 = arith.constant 0 : i32
    %c0_i32_1 = arith.constant 0 : i32
    return %c0_i32, %c0_i32_0 : i32, i32
  }
  func.func @transform_3(%arg0: i32) -> (i32, i32) {
    %c0_i32 = arith.constant 0 : i32
    %c0_i32_0 = arith.constant 0 : i32
    %c0_i32_1 = arith.constant 0 : i32
    return %c0_i32, %c0_i32_0 : i32, i32
  }
  func.func @transform_4(%arg0: i32) -> (i32, i32) {
    %c0_i32 = arith.constant 0 : i32
    %c0_i32_0 = arith.constant 0 : i32
    %c0_i32_1 = arith.constant 0 : i32
    return %c0_i32, %c0_i32_0 : i32, i32
  }
}

</mosaic_0001>

<llo_original>
// kernel: _lambda_.3
$region0: #{_lambda_.3}
  #allocation0 [shape = 'u32[]', space=smem, size = 0x4, offset = 0x4, fixed_abs, tag = 'smem constant byte address 0x4 - core index']
  #allocation1 [shape = 'u32[144,128]{1,0:T(1,128)}', space=vmem, size = 0x12000, scoped, tag = 'internal scratch']
  %s0 = inlined_call_operand.hbm [shape: f32[8,8,8,32], index: 0, kind: input, shape index: {}]
  %s1 = inlined_call_operand.vmem [shape: f32[2,1], index: 1, kind: output, shape index: {}]
  %s2 = sld [smem:[#allocation0]]
  $region18: #{_lambda_.3} parent=0
    _
  %s4 = ssub.s32 1, %s2
  %s5 = scalar_select 0, %s4, %s2
  $region1: #{_lambda_.3} parent=0
    #allocation2 [shape = 'u8[262144]{0}', space=vmem, size = 0x40000, scoped, tag = 'input window, operand 0, single buffered']
    #allocation3 [shape = 's32[1]{0}', space=sflag, size = 0x4, scoped, tag = 'scoped memory for _lambda_.3']
    %6 = vsyncpa [#allocation3], 0
    // Predicated region
    $region2: #{_lambda_.3} parent=1 // pred_check
      _
    $region3: #{_lambda_.3} parent=1 // pred_check_branch
      %8 = sbr.rel (0) target = $region5
    $region4: #{_lambda_.3} parent=1 // pred_region
      %s10 = ssub.s32 8192, 8192
      %11 = vsyncadd [#allocation3], %s10
      %s12 = sshll.u32 [#allocation2], 4
      %s13 = int_to_ptr.vmem [resolvable:$true] %s12
      %18 = dma.hbm_to_vmem [thread:$0]  %s0, 8192, %s13, [#allocation3], 128, 128, 8
    $region5: #{_lambda_.3} parent=1 // pred_fallthru
      _
    // Predicated region
    $region6: #{_lambda_.3} parent=1 // pred_check
      _
    $region7: #{_lambda_.3} parent=1 // pred_check_branch
      %20 = sbr.rel (0) target = $region9
    $region8: #{_lambda_.3} parent=1 // pred_region
      %21 = dma.done [#allocation3], 8192
    $region9: #{_lambda_.3} parent=1 // pred_fallthru
      _
    %v22 = vld [vmem:[#allocation2] sm:$0xff]
    %v23 = vld [vmem:[#allocation2 + $0x8] sm:$0xff]
    %v24 = vld [vmem:[#allocation2 + $0x10] sm:$0xff]
    %v25 = vld [vmem:[#allocation2 + $0x18] sm:$0xff]
    %v26 = vld [vmem:[#allocation2 + $0x20] sm:$0xff]
    %v27 = vld [vmem:[#allocation2 + $0x28] sm:$0xff]
    %v28 = vld [vmem:[#allocation2 + $0x30] sm:$0xff]
    %v29 = vld [vmem:[#allocation2 + $0x38] sm:$0xff]
    %v30 = vld [vmem:[#allocation2 + $0x40] sm:$0xff]
    %v31 = vld [vmem:[#allocation2 + $0x48] sm:$0xff]
    %v32 = vld [vmem:[#allocation2 + $0x50] sm:$0xff]
    %v33 = vld [vmem:[#allocation2 + $0x58] sm:$0xff]
    %v34 = vld [vmem:[#allocation2 + $0x60] sm:$0xff]
    %v35 = vld [vmem:[#allocation2 + $0x68] sm:$0xff]
    %v36 = vld [vmem:[#allocation2 + $0x70] sm:$0xff]
    %v37 = vld [vmem:[#allocation2 + $0x78] sm:$0xff]
    %v38 = vld [vmem:[#allocation2 + $0x80] sm:$0xff]
    %v39 = vld [vmem:[#allocation2 + $0x88] sm:$0xff]
    %v40 = vld [vmem:[#allocation2 + $0x90] sm:$0xff]
    %v41 = vld [vmem:[#allocation2 + $0x98] sm:$0xff]
    %v42 = vld [vmem:[#allocation2 + $0xa0] sm:$0xff]
    %v43 = vld [vmem:[#allocation2 + $0xa8] sm:$0xff]
    %v44 = vld [vmem:[#allocation2 + $0xb0] sm:$0xff]
    %v45 = vld [vmem:[#allocation2 + $0xb8] sm:$0xff]
    %v46 = vld [vmem:[#allocation2 + $0xc0] sm:$0xff]
    %v47 = vld [vmem:[#allocation2 + $0xc8] sm:$0xff]
    %v48 = vld [vmem:[#allocation2 + $0xd0] sm:$0xff]
    %v49 = vld [vmem:[#allocation2 + $0xd8] sm:$0xff]
    %v50 = vld [vmem:[#allocation2 + $0xe0] sm:$0xff]
    %v51 = vld [vmem:[#allocation2 + $0xe8] sm:$0xff]
    %v52 = vld [vmem:[#allocation2 + $0xf0] sm:$0xff]
    %v53 = vld [vmem:[#allocation2 + $0xf8] sm:$0xff]
    %v54 = vld [vmem:[#allocation2 + $0x100] sm:$0xff]
    %v55 = vld [vmem:[#allocation2 + $0x108] sm:$0xff]
    %v56 = vld [vmem:[#allocation2 + $0x110] sm:$0xff]
    %v57 = vld [vmem:[#allocation2 + $0x118] sm:$0xff]
    %v58 = vld [vmem:[#allocation2 + $0x120] sm:$0xff]
    %v59 = vld [vmem:[#allocation2 + $0x128] sm:$0xff]
    %v60 = vld [vmem:[#allocation2 + $0x130] sm:$0xff]
    %v61 = vld [vmem:[#allocation2 + $0x138] sm:$0xff]
    %v62 = vld [vmem:[#allocation2 + $0x140] sm:$0xff]
    %v63 = vld [vmem:[#allocation2 + $0x148] sm:$0xff]
    %v64 = vld [vmem:[#allocation2 + $0x150] sm:$0xff]
    %v65 = vld [vmem:[#allocation2 + $0x158] sm:$0xff]
    %v66 = vld [vmem:[#allocation2 + $0x160] sm:$0xff]
    %v67 = vld [vmem:[#allocation2 + $0x168] sm:$0xff]
    %v68 = vld [vmem:[#allocation2 + $0x170] sm:$0xff]
    %v69 = vld [vmem:[#allocation2 + $0x178] sm:$0xff]
    %v70 = vld [vmem:[#allocation2 + $0x180] sm:$0xff]
    %v71 = vld [vmem:[#allocation2 + $0x188] sm:$0xff]
    %v72 = vld [vmem:[#allocation2 + $0x190] sm:$0xff]
    %v73 = vld [vmem:[#allocation2 + $0x198] sm:$0xff]
    %v74 = vld [vmem:[#allocation2 + $0x1a0] sm:$0xff]
    %v75 = vld [vmem:[#allocation2 + $0x1a8] sm:$0xff]
    %v76 = vld [vmem:[#allocation2 + $0x1b0] sm:$0xff]
    %v77 = vld [vmem:[#allocation2 + $0x1b8] sm:$0xff]
    %v78 = vld [vmem:[#allocation2 + $0x1c0] sm:$0xff]
    %v79 = vld [vmem:[#allocation2 + $0x1c8] sm:$0xff]
    %v80 = vld [vmem:[#allocation2 + $0x1d0] sm:$0xff]
    %v81 = vld [vmem:[#allocation2 + $0x1d8] sm:$0xff]
    %v82 = vld [vmem:[#allocation2 + $0x1e0] sm:$0xff]
    %v83 = vld [vmem:[#allocation2 + $0x1e8] sm:$0xff]
    %v84 = vld [vmem:[#allocation2 + $0x1f0] sm:$0xff]
    %v85 = vld [vmem:[#allocation2 + $0x1f8] sm:$0xff]
    %v86 = vadd.f32 %v22, 0.0
    %v87 = vadd.f32 %v23, 0.0
    %v88 = vadd.f32 %v24, 0.0
    %v89 = vadd.f32 %v25, 0.0
    %v90 = vadd.f32 %v26, 0.0
    %v91 = vadd.f32 %v27, 0.0
    %v92 = vadd.f32 %v28, 0.0
    %v93 = vadd.f32 %v29, 0.0
    %v94 = vadd.f32 %v30, 0.0
    %v95 = vadd.f32 %v31, 0.0
    %v96 = vadd.f32 %v32, 0.0
    %v97 = vadd.f32 %v33, 0.0
    %v98 = vadd.f32 %v34, 0.0
    %v99 = vadd.f32 %v35, 0.0
    %v100 = vadd.f32 %v36, 0.0
    %v101 = vadd.f32 %v37, 0.0
    %v102 = vadd.f32 %v86, %v38
    %v103 = vadd.f32 %v87, %v39
    %v104 = vadd.f32 %v88, %v40
    %v105 = vadd.f32 %v89, %v41
    %v106 = vadd.f32 %v90, %v42
    %v107 = vadd.f32 %v91, %v43
    %v108 = vadd.f32 %v92, %v44
    %v109 = vadd.f32 %v93, %v45
    %v110 = vadd.f32 %v94, %v46
    %v111 = vadd.f32 %v95, %v47
    %v112 = vadd.f32 %v96, %v48
    %v113 = vadd.f32 %v97, %v49
    %v114 = vadd.f32 %v98, %v50
    %v115 = vadd.f32 %v99, %v51
    %v116 = vadd.f32 %v100, %v52
    %v117 = vadd.f32 %v101, %v53
    %v118 = vadd.f32 %v102, %v54
    %v119 = vadd.f32 %v103, %v55
    %v120 = vadd.f32 %v104, %v56
    %v121 = vadd.f32 %v105, %v57
    %v122 = vadd.f32 %v106, %v58
    %v123 = vadd.f32 %v107, %v59
    %v124 = vadd.f32 %v108, %v60
    %v125 = vadd.f32 %v109, %v61
    %v126 = vadd.f32 %v110, %v62
    %v127 = vadd.f32 %v111, %v63
    %v128 = vadd.f32 %v112, %v64
    %v129 = vadd.f32 %v113, %v65
    %v130 = vadd.f32 %v114, %v66
    %v131 = vadd.f32 %v115, %v67
    %v132 = vadd.f32 %v116, %v68
    %v133 = vadd.f32 %v117, %v69
    %v134 = vadd.f32 %v118, %v70
    %v135 = vadd.f32 %v119, %v71
    %v136 = vadd.f32 %v120, %v72
    %v137 = vadd.f32 %v121, %v73
    %v138 = vadd.f32 %v122, %v74
    %v139 = vadd.f32 %v123, %v75
    %v140 = vadd.f32 %v124, %v76
    %v141 = vadd.f32 %v125, %v77
    %v142 = vadd.f32 %v126, %v78
    %v143 = vadd.f32 %v127, %v79
    %v144 = vadd.f32 %v128, %v80
    %v145 = vadd.f32 %v129, %v81
    %v146 = vadd.f32 %v130, %v82
    %v147 = vadd.f32 %v131, %v83
    %v148 = vadd.f32 %v132, %v84
    %v149 = vadd.f32 %v133, %v85
    %v150 = vmul.f32 %v134, 0.25
    %v151 = vmul.f32 %v135, 0.25
    %v152 = vmul.f32 %v136, 0.25
    %v153 = vmul.f32 %v137, 0.25
    %v154 = vmul.f32 %v138, 0.25
    %v155 = vmul.f32 %v139, 0.25
    %v156 = vmul.f32 %v140, 0.25
    %v157 = vmul.f32 %v141, 0.25
    %v158 = vmul.f32 %v142, 0.25
    %v159 = vmul.f32 %v143, 0.25
    %v160 = vmul.f32 %v144, 0.25
    %v161 = vmul.f32 %v145, 0.25
    %v162 = vmul.f32 %v146, 0.25
    %v163 = vmul.f32 %v147, 0.25
    %v164 = vmul.f32 %v148, 0.25
    %v165 = vmul.f32 %v149, 0.25
    %v166 = vsub.f32 %v22, %v150
    %v167 = vsub.f32 %v23, %v151
    %v168 = vsub.f32 %v24, %v152
    %v169 = vsub.f32 %v25, %v153
    %v170 = vsub.f32 %v26, %v154
    %v171 = vsub.f32 %v27, %v155
    %v172 = vsub.f32 %v28, %v156
    %v173 = vsub.f32 %v29, %v157
    %v174 = vsub.f32 %v30, %v158
    %v175 = vsub.f32 %v31, %v159
    %v176 = vsub.f32 %v32, %v160
    %v177 = vsub.f32 %v33, %v161
    %v178 = vsub.f32 %v34, %v162
    %v179 = vsub.f32 %v35, %v163
    %v180 = vsub.f32 %v36, %v164
    %v181 = vsub.f32 %v37, %v165
    %v182 = vmul.f32 %v166, %v166
    %v183 = vmul.f32 %v167, %v167
    %v184 = vmul.f32 %v168, %v168
    %v185 = vmul.f32 %v169, %v169
    %v186 = vmul.f32 %v170, %v170
    %v187 = vmul.f32 %v171, %v171
    %v188 = vmul.f32 %v172, %v172
    %v189 = vmul.f32 %v173, %v173
    %v190 = vmul.f32 %v174, %v174
    %v191 = vmul.f32 %v175, %v175
    %v192 = vmul.f32 %v176, %v176
    %v193 = vmul.f32 %v177, %v177
    %v194 = vmul.f32 %v178, %v178
    %v195 = vmul.f32 %v179, %v179
    %v196 = vmul.f32 %v180, %v180
    %v197 = vmul.f32 %v181, %v181
    %v198 = vadd.f32 %v182, 0.0
    %v199 = vadd.f32 %v183, 0.0
    %v200 = vadd.f32 %v184, 0.0
    %v201 = vadd.f32 %v185, 0.0
    %v202 = vadd.f32 %v186, 0.0
    %v203 = vadd.f32 %v187, 0.0
    %v204 = vadd.f32 %v188, 0.0
    %v205 = vadd.f32 %v189, 0.0
    %v206 = vadd.f32 %v190, 0.0
    %v207 = vadd.f32 %v191, 0.0
    %v208 = vadd.f32 %v192, 0.0
    %v209 = vadd.f32 %v193, 0.0
    %v210 = vadd.f32 %v194, 0.0
    %v211 = vadd.f32 %v195, 0.0
    %v212 = vadd.f32 %v196, 0.0
    %v213 = vadd.f32 %v197, 0.0
    %v214 = vsub.f32 %v38, %v150
    %v215 = vsub.f32 %v39, %v151
    %v216 = vsub.f32 %v40, %v152
    %v217 = vsub.f32 %v41, %v153
    %v218 = vsub.f32 %v42, %v154
    %v219 = vsub.f32 %v43, %v155
    %v220 = vsub.f32 %v44, %v156
    %v221 = vsub.f32 %v45, %v157
    %v222 = vsub.f32 %v46, %v158
    %v223 = vsub.f32 %v47, %v159
    %v224 = vsub.f32 %v48, %v160
    %v225 = vsub.f32 %v49, %v161
    %v226 = vsub.f32 %v50, %v162
    %v227 = vsub.f32 %v51, %v163
    %v228 = vsub.f32 %v52, %v164
    %v229 = vsub.f32 %v53, %v165
    %v230 = vmul.f32 %v214, %v214
    %v231 = vmul.f32 %v215, %v215
    %v232 = vmul.f32 %v216, %v216
    %v233 = vmul.f32 %v217, %v217
    %v234 = vmul.f32 %v218, %v218
    %v235 = vmul.f32 %v219, %v219
    %v236 = vmul.f32 %v220, %v220
    %v237 = vmul.f32 %v221, %v221
    %v238 = vmul.f32 %v222, %v222
    %v239 = vmul.f32 %v223, %v223
    %v240 = vmul.f32 %v224, %v224
    %v241 = vmul.f32 %v225, %v225
    %v242 = vmul.f32 %v226, %v226
    %v243 = vmul.f32 %v227, %v227
    %v244 = vmul.f32 %v228, %v228
    %v245 = vmul.f32 %v229, %v229
    %v246 = vadd.f32 %v198, %v230
    %v247 = vadd.f32 %v199, %v231
    %v248 = vadd.f32 %v200, %v232
    %v249 = vadd.f32 %v201, %v233
    %v250 = vadd.f32 %v202, %v234
    %v251 = vadd.f32 %v203, %v235
    %v252 = vadd.f32 %v204, %v236
    %v253 = vadd.f32 %v205, %v237
    %v254 = vadd.f32 %v206, %v238
    %v255 = vadd.f32 %v207, %v239
    %v256 = vadd.f32 %v208, %v240
    %v257 = vadd.f32 %v209, %v241
    %v258 = vadd.f32 %v210, %v242
    %v259 = vadd.f32 %v211, %v243
    %v260 = vadd.f32 %v212, %v244
    %v261 = vadd.f32 %v213, %v245
    %v262 = vsub.f32 %v54, %v150
    %v263 = vsub.f32 %v55, %v151
    %v264 = vsub.f32 %v56, %v152
    %v265 = vsub.f32 %v57, %v153
    %v266 = vsub.f32 %v58, %v154
    %v267 = vsub.f32 %v59, %v155
    %v268 = vsub.f32 %v60, %v156
    %v269 = vsub.f32 %v61, %v157
    %v270 = vsub.f32 %v62, %v158
    %v271 = vsub.f32 %v63, %v159
    %v272 = vsub.f32 %v64, %v160
    %v273 = vsub.f32 %v65, %v161
    %v274 = vsub.f32 %v66, %v162
    %v275 = vsub.f32 %v67, %v163
    %v276 = vsub.f32 %v68, %v164
    %v277 = vsub.f32 %v69, %v165
    %v278 = vmul.f32 %v262, %v262
    %v279 = vmul.f32 %v263, %v263
    %v280 = vmul.f32 %v264, %v264
    %v281 = vmul.f32 %v265, %v265
    %v282 = vmul.f32 %v266, %v266
    %v283 = vmul.f32 %v267, %v267
    %v284 = vmul.f32 %v268, %v268
    %v285 = vmul.f32 %v269, %v269
    %v286 = vmul.f32 %v270, %v270
    %v287 = vmul.f32 %v271, %v271
    %v288 = vmul.f32 %v272, %v272
    %v289 = vmul.f32 %v273, %v273
    %v290 = vmul.f32 %v274, %v274
    %v291 = vmul.f32 %v275, %v275
    %v292 = vmul.f32 %v276, %v276
    %v293 = vmul.f32 %v277, %v277
    %v294 = vadd.f32 %v246, %v278
    %v295 = vadd.f32 %v247, %v279
    %v296 = vadd.f32 %v248, %v280
    %v297 = vadd.f32 %v249, %v281
    %v298 = vadd.f32 %v250, %v282
    %v299 = vadd.f32 %v251, %v283
    %v300 = vadd.f32 %v252, %v284
    %v301 = vadd.f32 %v253, %v285
    %v302 = vadd.f32 %v254, %v286
    %v303 = vadd.f32 %v255, %v287
    %v304 = vadd.f32 %v256, %v288
    %v305 = vadd.f32 %v257, %v289
    %v306 = vadd.f32 %v258, %v290
    %v307 = vadd.f32 %v259, %v291
    %v308 = vadd.f32 %v260, %v292
    %v309 = vadd.f32 %v261, %v293
    %v310 = vsub.f32 %v70, %v150
    %v311 = vsub.f32 %v71, %v151
    %v312 = vsub.f32 %v72, %v152
    %v313 = vsub.f32 %v73, %v153
    %v314 = vsub.f32 %v74, %v154
    %v315 = vsub.f32 %v75, %v155
    %v316 = vsub.f32 %v76, %v156
    %v317 = vsub.f32 %v77, %v157
    %v318 = vsub.f32 %v78, %v158
    %v319 = vsub.f32 %v79, %v159
    %v320 = vsub.f32 %v80, %v160
    %v321 = vsub.f32 %v81, %v161
    %v322 = vsub.f32 %v82, %v162
    %v323 = vsub.f32 %v83, %v163
    %v324 = vsub.f32 %v84, %v164
    %v325 = vsub.f32 %v85, %v165
    %v326 = vmul.f32 %v310, %v310
    %v327 = vmul.f32 %v311, %v311
    %v328 = vmul.f32 %v312, %v312
    %v329 = vmul.f32 %v313, %v313
    %v330 = vmul.f32 %v314, %v314
    %v331 = vmul.f32 %v315, %v315
    %v332 = vmul.f32 %v316, %v316
    %v333 = vmul.f32 %v317, %v317
    %v334 = vmul.f32 %v318, %v318
    %v335 = vmul.f32 %v319, %v319
    %v336 = vmul.f32 %v320, %v320
    %v337 = vmul.f32 %v321, %v321
    %v338 = vmul.f32 %v322, %v322
    %v339 = vmul.f32 %v323, %v323
    %v340 = vmul.f32 %v324, %v324
    %v341 = vmul.f32 %v325, %v325
    %v342 = vadd.f32 %v294, %v326
    %v343 = vadd.f32 %v295, %v327
    %v344 = vadd.f32 %v296, %v328
    %v345 = vadd.f32 %v297, %v329
    %v346 = vadd.f32 %v298, %v330
    %v347 = vadd.f32 %v299, %v331
    %v348 = vadd.f32 %v300, %v332
    %v349 = vadd.f32 %v301, %v333
    %v350 = vadd.f32 %v302, %v334
    %v351 = vadd.f32 %v303, %v335
    %v352 = vadd.f32 %v304, %v336
    %v353 = vadd.f32 %v305, %v337
    %v354 = vadd.f32 %v306, %v338
    %v355 = vadd.f32 %v307, %v339
    %v356 = vadd.f32 %v308, %v340
    %v357 = vadd.f32 %v309, %v341
    %v358 = vmul.f32 %v342, 0.25
    %v359 = vmul.f32 %v343, 0.25
    %v360 = vmul.f32 %v344, 0.25
    %v361 = vmul.f32 %v345, 0.25
    %v362 = vmul.f32 %v346, 0.25
    %v363 = vmul.f32 %v347, 0.25
    %v364 = vmul.f32 %v348, 0.25
    %v365 = vmul.f32 %v349, 0.25
    %v366 = vmul.f32 %v350, 0.25
    %v367 = vmul.f32 %v351, 0.25
    %v368 = vmul.f32 %v352, 0.25
    %v369 = vmul.f32 %v353, 0.25
    %v370 = vmul.f32 %v354, 0.25
    %v371 = vmul.f32 %v355, 0.25
    %v372 = vmul.f32 %v356, 0.25
    %v373 = vmul.f32 %v357, 0.25
    %v374 = vadd.f32 %v358, 1e-08
    %v375 = vadd.f32 %v359, 1e-08
    %v376 = vadd.f32 %v360, 1e-08
    %v377 = vadd.f32 %v361, 1e-08
    %v378 = vadd.f32 %v362, 1e-08
    %v379 = vadd.f32 %v363, 1e-08
    %v380 = vadd.f32 %v364, 1e-08
    %v381 = vadd.f32 %v365, 1e-08
    %v382 = vadd.f32 %v366, 1e-08
    %v383 = vadd.f32 %v367, 1e-08
    %v384 = vadd.f32 %v368, 1e-08
    %v385 = vadd.f32 %v369, 1e-08
    %v386 = vadd.f32 %v370, 1e-08
    %v387 = vadd.f32 %v371, 1e-08
    %v388 = vadd.f32 %v372, 1e-08
    %v389 = vadd.f32 %v373, 1e-08
    %v390 = vrsqrt.pop %v374
    %v391 = vmul.f32 %v374, %v390
    %vm392 = vcmp.eq.f32.partialorder %v374, inf
    %v393 = vsel %vm392, %v374, %v391
    %vm394 = vcmp.eq.f32.partialorder %v374, 0.0
    %v395 = vand.u32 %v374, 2147483648
    %v396 = vsel %vm394, %v395, %v393
    %v397 = vrsqrt.pop %v375
    %v398 = vmul.f32 %v375, %v397
    %vm399 = vcmp.eq.f32.partialorder %v375, inf
    %v400 = vsel %vm399, %v375, %v398
    %vm401 = vcmp.eq.f32.partialorder %v375, 0.0
    %v402 = vand.u32 %v375, 2147483648
    %v403 = vsel %vm401, %v402, %v400
    %v404 = vrsqrt.pop %v376
    %v405 = vmul.f32 %v376, %v404
    %vm406 = vcmp.eq.f32.partialorder %v376, inf
    %v407 = vsel %vm406, %v376, %v405
    %vm408 = vcmp.eq.f32.partialorder %v376, 0.0
    %v409 = vand.u32 %v376, 2147483648
    %v410 = vsel %vm408, %v409, %v407
    %v411 = vrsqrt.pop %v377
    %v412 = vmul.f32 %v377, %v411
    %vm413 = vcmp.eq.f32.partialorder %v377, inf
    %v414 = vsel %vm413, %v377, %v412
    %vm415 = vcmp.eq.f32.partialorder %v377, 0.0
    %v416 = vand.u32 %v377, 2147483648
    %v417 = vsel %vm415, %v416, %v414
    %v418 = vrsqrt.pop %v378
    %v419 = vmul.f32 %v378, %v418
    %vm420 = vcmp.eq.f32.partialorder %v378, inf
    %v421 = vsel %vm420, %v378, %v419
    %vm422 = vcmp.eq.f32.partialorder %v378, 0.0
    %v423 = vand.u32 %v378, 2147483648
    %v424 = vsel %vm422, %v423, %v421
    %v425 = vrsqrt.pop %v379
    %v426 = vmul.f32 %v379, %v425
    %vm427 = vcmp.eq.f32.partialorder %v379, inf
    %v428 = vsel %vm427, %v379, %v426
    %vm429 = vcmp.eq.f32.partialorder %v379, 0.0
    %v430 = vand.u32 %v379, 2147483648
    %v431 = vsel %vm429, %v430, %v428
    %v432 = vrsqrt.pop %v380
    %v433 = vmul.f32 %v380, %v432
    %vm434 = vcmp.eq.f32.partialorder %v380, inf
    %v435 = vsel %vm434, %v380, %v433
    %vm436 = vcmp.eq.f32.partialorder %v380, 0.0
    %v437 = vand.u32 %v380, 2147483648
    %v438 = vsel %vm436, %v437, %v435
    %v439 = vrsqrt.pop %v381
    %v440 = vmul.f32 %v381, %v439
    %vm441 = vcmp.eq.f32.partialorder %v381, inf
    %v442 = vsel %vm441, %v381, %v440
    %vm443 = vcmp.eq.f32.partialorder %v381, 0.0
    %v444 = vand.u32 %v381, 2147483648
    %v445 = vsel %vm443, %v444, %v442
    %v446 = vrsqrt.pop %v382
    %v447 = vmul.f32 %v382, %v446
    %vm448 = vcmp.eq.f32.partialorder %v382, inf
    %v449 = vsel %vm448, %v382, %v447
    %vm450 = vcmp.eq.f32.partialorder %v382, 0.0
    %v451 = vand.u32 %v382, 2147483648
    %v452 = vsel %vm450, %v451, %v449
    %v453 = vrsqrt.pop %v383
    %v454 = vmul.f32 %v383, %v453
    %vm455 = vcmp.eq.f32.partialorder %v383, inf
    %v456 = vsel %vm455, %v383, %v454
    %vm457 = vcmp.eq.f32.partialorder %v383, 0.0
    %v458 = vand.u32 %v383, 2147483648
    %v459 = vsel %vm457, %v458, %v456
    %v460 = vrsqrt.pop %v384
    %v461 = vmul.f32 %v384, %v460
    %vm462 = vcmp.eq.f32.partialorder %v384, inf
    %v463 = vsel %vm462, %v384, %v461
    %vm464 = vcmp.eq.f32.partialorder %v384, 0.0
    %v465 = vand.u32 %v384, 2147483648
    %v466 = vsel %vm464, %v465, %v463
    %v467 = vrsqrt.pop %v385
    %v468 = vmul.f32 %v385, %v467
    %vm469 = vcmp.eq.f32.partialorder %v385, inf
    %v470 = vsel %vm469, %v385, %v468
    %vm471 = vcmp.eq.f32.partialorder %v385, 0.0
    %v472 = vand.u32 %v385, 2147483648
    %v473 = vsel %vm471, %v472, %v470
    %v474 = vrsqrt.pop %v386
    %v475 = vmul.f32 %v386, %v474
    %vm476 = vcmp.eq.f32.partialorder %v386, inf
    %v477 = vsel %vm476, %v386, %v475
    %vm478 = vcmp.eq.f32.partialorder %v386, 0.0
    %v479 = vand.u32 %v386, 2147483648
    %v480 = vsel %vm478, %v479, %v477
    %v481 = vrsqrt.pop %v387
    %v482 = vmul.f32 %v387, %v481
    %vm483 = vcmp.eq.f32.partialorder %v387, inf
    %v484 = vsel %vm483, %v387, %v482
    %vm485 = vcmp.eq.f32.partialorder %v387, 0.0
    %v486 = vand.u32 %v387, 2147483648
    %v487 = vsel %vm485, %v486, %v484
    %v488 = vrsqrt.pop %v388
    %v489 = vmul.f32 %v388, %v488
    %vm490 = vcmp.eq.f32.partialorder %v388, inf
    %v491 = vsel %vm490, %v388, %v489
    %vm492 = vcmp.eq.f32.partialorder %v388, 0.0
    %v493 = vand.u32 %v388, 2147483648
    %v494 = vsel %vm492, %v493, %v491
    %v495 = vrsqrt.pop %v389
    %v496 = vmul.f32 %v389, %v495
    %vm497 = vcmp.eq.f32.partialorder %v389, inf
    %v498 = vsel %vm497, %v389, %v496
    %vm499 = vcmp.eq.f32.partialorder %v389, 0.0
    %v500 = vand.u32 %v389, 2147483648
    %v501 = vsel %vm499, %v500, %v498
    %vm502 = vcmask 261120
    %v503 = vsel %vm502, %v396, 0.0
    %504 = vadd.xlane.f32.xlu0 %v503
    %v505 = vpop.xlane.xlu0 %504
    %v506 = vsel %vm502, %v403, 0.0
    %507 = vadd.xlane.f32.xlu0 %v506
    %v508 = vpop.xlane.xlu0 %507
    %v509 = vsel %vm502, %v410, 0.0
    %510 = vadd.xlane.f32.xlu0 %v509
    %v511 = vpop.xlane.xlu0 %510
    %v512 = vsel %vm502, %v417, 0.0
    %513 = vadd.xlane.f32.xlu0 %v512
    %v514 = vpop.xlane.xlu0 %513
    %v515 = vsel %vm502, %v424, 0.0
    %516 = vadd.xlane.f32.xlu0 %v515
    %v517 = vpop.xlane.xlu0 %516
    %v518 = vsel %vm502, %v431, 0.0
    %519 = vadd.xlane.f32.xlu0 %v518
    %v520 = vpop.xlane.xlu0 %519
    %v521 = vsel %vm502, %v438, 0.0
    %522 = vadd.xlane.f32.xlu0 %v521
    %v523 = vpop.xlane.xlu0 %522
    %v524 = vsel %vm502, %v445, 0.0
    %525 = vadd.xlane.f32.xlu0 %v524
    %v526 = vpop.xlane.xlu0 %525
    %v527 = vsel %vm502, %v452, 0.0
    %528 = vadd.xlane.f32.xlu0 %v527
    %v529 = vpop.xlane.xlu0 %528
    %v530 = vsel %vm502, %v459, 0.0
    %531 = vadd.xlane.f32.xlu0 %v530
    %v532 = vpop.xlane.xlu0 %531
    %v533 = vsel %vm502, %v466, 0.0
    %534 = vadd.xlane.f32.xlu0 %v533
    %v535 = vpop.xlane.xlu0 %534
    %v536 = vsel %vm502, %v473, 0.0
    %537 = vadd.xlane.f32.xlu0 %v536
    %v538 = vpop.xlane.xlu0 %537
    %v539 = vsel %vm502, %v480, 0.0
    %540 = vadd.xlane.f32.xlu0 %v539
    %v541 = vpop.xlane.xlu0 %540
    %v542 = vsel %vm502, %v487, 0.0
    %543 = vadd.xlane.f32.xlu0 %v542
    %v544 = vpop.xlane.xlu0 %543
    %v545 = vsel %vm502, %v494, 0.0
    %546 = vadd.xlane.f32.xlu0 %v545
    %v547 = vpop.xlane.xlu0 %546
    %v548 = vsel %vm502, %v501, 0.0
    %549 = vadd.xlane.f32.xlu0 %v548
    %v550 = vpop.xlane.xlu0 %549
    %v551 = vrot.slane %v505, 4
    %v552 = vadd.f32 %v505, %v551
    %v553 = vrot.slane %v552, 2
    %v554 = vadd.f32 %v552, %v553
    %v555 = vrot.slane %v554, 1
    %v556 = vadd.f32 %v554, %v555
    %v557 = vrot.slane %v508, 4
    %v558 = vadd.f32 %v508, %v557
    %v559 = vrot.slane %v558, 2
    %v560 = vadd.f32 %v558, %v559
    %v561 = vrot.slane %v560, 1
    %v562 = vadd.f32 %v560, %v561
    %v563 = vrot.slane %v511, 4
    %v564 = vadd.f32 %v511, %v563
    %v565 = vrot.slane %v564, 2
    %v566 = vadd.f32 %v564, %v565
    %v567 = vrot.slane %v566, 1
    %v568 = vadd.f32 %v566, %v567
    %v569 = vrot.slane %v514, 4
    %v570 = vadd.f32 %v514, %v569
    %v571 = vrot.slane %v570, 2
    %v572 = vadd.f32 %v570, %v571
    %v573 = vrot.slane %v572, 1
    %v574 = vadd.f32 %v572, %v573
    %v575 = vrot.slane %v517, 4
    %v576 = vadd.f32 %v517, %v575
    %v577 = vrot.slane %v576, 2
    %v578 = vadd.f32 %v576, %v577
    %v579 = vrot.slane %v578, 1
    %v580 = vadd.f32 %v578, %v579
    %v581 = vrot.slane %v520, 4
    %v582 = vadd.f32 %v520, %v581
    %v583 = vrot.slane %v582, 2
    %v584 = vadd.f32 %v582, %v583
    %v585 = vrot.slane %v584, 1
    %v586 = vadd.f32 %v584, %v585
    %v587 = vrot.slane %v523, 4
    %v588 = vadd.f32 %v523, %v587
    %v589 = vrot.slane %v588, 2
    %v590 = vadd.f32 %v588, %v589
    %v591 = vrot.slane %v590, 1
    %v592 = vadd.f32 %v590, %v591
    %v593 = vrot.slane %v526, 4
    %v594 = vadd.f32 %v526, %v593
    %v595 = vrot.slane %v594, 2
    %v596 = vadd.f32 %v594, %v595
    %v597 = vrot.slane %v596, 1
    %v598 = vadd.f32 %v596, %v597
    %v599 = vrot.slane %v529, 4
    %v600 = vadd.f32 %v529, %v599
    %v601 = vrot.slane %v600, 2
    %v602 = vadd.f32 %v600, %v601
    %v603 = vrot.slane %v602, 1
    %v604 = vadd.f32 %v602, %v603
    %v605 = vrot.slane %v532, 4
    %v606 = vadd.f32 %v532, %v605
    %v607 = vrot.slane %v606, 2
    %v608 = vadd.f32 %v606, %v607
    %v609 = vrot.slane %v608, 1
    %v610 = vadd.f32 %v608, %v609
    %v611 = vrot.slane %v535, 4
    %v612 = vadd.f32 %v535, %v611
    %v613 = vrot.slane %v612, 2
    %v614 = vadd.f32 %v612, %v613
    %v615 = vrot.slane %v614, 1
    %v616 = vadd.f32 %v614, %v615
    %v617 = vrot.slane %v538, 4
    %v618 = vadd.f32 %v538, %v617
    %v619 = vrot.slane %v618, 2
    %v620 = vadd.f32 %v618, %v619
    %v621 = vrot.slane %v620, 1
    %v622 = vadd.f32 %v620, %v621
    %v623 = vrot.slane %v541, 4
    %v624 = vadd.f32 %v541, %v623
    %v625 = vrot.slane %v624, 2
    %v626 = vadd.f32 %v624, %v625
    %v627 = vrot.slane %v626, 1
    %v628 = vadd.f32 %v626, %v627
    %v629 = vrot.slane %v544, 4
    %v630 = vadd.f32 %v544, %v629
    %v631 = vrot.slane %v630, 2
    %v632 = vadd.f32 %v630, %v631
    %v633 = vrot.slane %v632, 1
    %v634 = vadd.f32 %v632, %v633
    %v635 = vrot.slane %v547, 4
    %v636 = vadd.f32 %v547, %v635
    %v637 = vrot.slane %v636, 2
    %v638 = vadd.f32 %v636, %v637
    %v639 = vrot.slane %v638, 1
    %v640 = vadd.f32 %v638, %v639
    %v641 = vrot.slane %v550, 4
    %v642 = vadd.f32 %v550, %v641
    %v643 = vrot.slane %v642, 2
    %v644 = vadd.f32 %v642, %v643
    %v645 = vrot.slane %v644, 1
    %v646 = vadd.f32 %v644, %v645
    %v647 = vadd.f32 %v556, %v562
    %v648 = vadd.f32 %v647, %v568
    %v649 = vadd.f32 %v648, %v574
    %v650 = vadd.f32 %v649, %v580
    %v651 = vadd.f32 %v650, %v586
    %v652 = vadd.f32 %v651, %v592
    %v653 = vadd.f32 %v652, %v598
    %v654 = vadd.f32 %v604, %v610
    %v655 = vadd.f32 %v654, %v616
    %v656 = vadd.f32 %v655, %v622
    %v657 = vadd.f32 %v656, %v628
    %v658 = vadd.f32 %v657, %v634
    %v659 = vadd.f32 %v658, %v640
    %v660 = vadd.f32 %v659, %v646
    %v661 = vmul.f32 %v653, 0.00048828125
    %v662 = vmul.f32 %v660, 0.00048828125
    %vm665 = vcmask 1041409
    %v666 = vsel %vm665, %v662, %v661
    %vm668 = vcmask 1024
    %669 = vst.msk [vmem:[%s1] sm:$0x3] %vm668, %v666
    // Predicated region
    $region10: #{_lambda_.3} parent=1 // pred_check
      _
    $region11: #{_lambda_.3} parent=1 // pred_check_branch
      %671 = sbr.rel (0) target = $region13
    $region12: #{_lambda_.3} parent=1 // pred_region
      _
    $region13: #{_lambda_.3} parent=1 // pred_fallthru
      _
    // Predicated region
    $region14: #{_lambda_.3} parent=1 // pred_check
      _
    $region15: #{_lambda_.3} parent=1 // pred_check_branch
      %673 = sbr.rel (0) target = $region17
    $region16: #{_lambda_.3} parent=1 // pred_region
      _
    $region17: #{_lambda_.3} parent=1 // pred_fallthru
      _
    %674 = vsyncpa [#allocation3], 1

// kernel: _lambda_.4
$region0: #{_lambda_.4}
  #allocation0 [shape = 'u32[]', space=smem, size = 0x4, offset = 0x4, fixed_abs, tag = 'smem constant byte address 0x4 - core index']
  #allocation1 [shape = 'u32[144,128]{1,0:T(1,128)}', space=vmem, size = 0x12000, scoped, tag = 'internal scratch']
  %s0 = inlined_call_operand.vmem [shape: bf16[8,10,10,128], index: 0, kind: input, shape index: {}]
  %s1 = inlined_call_operand.vmem [shape: bf16[1152,128], index: 1, kind: input, shape index: {}]
  %s2 = inlined_call_operand.vmem [shape: f32[1,128], index: 2, kind: input, shape index: {}]
  %s3 = inlined_call_operand.vmem [shape: f32[8,64,128], index: 3, kind: output, shape index: {}]
  %s4 = sld [smem:[#allocation0]]
  $region45: #{_lambda_.4} parent=0
    _
  %s6 = ssub.s32 1, %s4
  %s7 = scalar_select 0, %s6, %s4
  loop: start=0, step=1, limit=10
  $region2: #{_lambda_.4} parent=0 // loop_pre_header
    _
  $region3: #{_lambda_.4} parent=0 // loop_header
    %s9 = sphi 0, %s13
    %p10 = scmp.ge.s32.totalorder %s9, 10
    %s19 = sphi 0, %s21
    %s22 = sphi 0, %s19
    %s23 = sphi 0, %s22
    %s39 = sphi 0, %s23
    %s43 = sphi 0, %s43
    %s45 = sphi 0, %s43
    %s46 = sphi 0, %s45
    %s60 = sphi 0, %s46
    %s64 = sphi 0, %s64
    %s66 = sphi 0, %s64
    %s67 = sphi 0, %s66
    %s81 = sphi 0, %s67
    %s87 = sphi 0, %s89
    %s90 = sphi 0, %s87
    %s91 = sphi 0, %s90
    %s107 = sphi 0, %s91
  $region4: #{_lambda_.4} parent=0 // loop_header_branch
    %12 = sbr.rel (%p10) target = $region8
  $region5: #{_lambda_.4} parent=0 // loop_body
    %s14 = ssub.s32 %s9, 1
    %s15 = ssub.s32 %s9, 2
    %s16 = sadd.s32 %s9, 1
    %s17 = ssub.s32 %s9, %s16
    %p18 = scmp.eq.s32.totalorder %s17, 0
    %s20 = sadd.s32 %s19, 1
    %s21 = scalar_select %p18, %s19, %s20
    %p24 = pneg %p18
    %p25 = scmp.eq.s32.totalorder %s9, 7
    %p26 = por %p24, %p25
    %p27 = scmp.ne.s32.totalorder %s19, %s22
    %p28 = scmp.eq.s32.totalorder %s9, 0
    %p29 = por %p27, %p28
    %p30 = scmp.ne.s32.totalorder %s19, %s22
    %p31 = scmp.eq.s32.totalorder %s14, 7
    %p32 = por %p30, %p31
    %p33 = scmp.ne.s32.totalorder %s22, %s23
    %p34 = scmp.eq.s32.totalorder %s14, 0
    %p35 = por %p33, %p34
    %p36 = scmp.ne.s32.totalorder %s22, %s23
    %p37 = scmp.eq.s32.totalorder %s15, 7
    %p38 = por %p36, %p37
    %p40 = scmp.ne.s32.totalorder %s23, %s39
    %p41 = scmp.eq.s32.totalorder %s15, 0
    %p42 = por %p40, %p41
    %s44 = sadd.s32 %s43, 1
    %p47 = scmp.eq.s32.totalorder %s9, 7
    %p48 = scmp.ne.s32.totalorder %s43, %s45
    %p49 = scmp.eq.s32.totalorder %s9, 0
    %p50 = por %p48, %p49
    %p51 = scmp.ne.s32.totalorder %s43, %s45
    %p52 = scmp.eq.s32.totalorder %s14, 7
    %p53 = por %p51, %p52
    %p54 = scmp.ne.s32.totalorder %s45, %s46
    %p55 = scmp.eq.s32.totalorder %s14, 0
    %p56 = por %p54, %p55
    %p57 = scmp.ne.s32.totalorder %s45, %s46
    %p58 = scmp.eq.s32.totalorder %s15, 7
    %p59 = por %p57, %p58
    %p61 = scmp.ne.s32.totalorder %s46, %s60
    %p62 = scmp.eq.s32.totalorder %s15, 0
    %p63 = por %p61, %p62
    %s65 = sadd.s32 %s64, 1
    %p68 = scmp.eq.s32.totalorder %s9, 7
    %p69 = scmp.ne.s32.totalorder %s64, %s66
    %p70 = scmp.eq.s32.totalorder %s9, 0
    %p71 = por %p69, %p70
    %p72 = scmp.ne.s32.totalorder %s64, %s66
    %p73 = scmp.eq.s32.totalorder %s14, 7
    %p74 = por %p72, %p73
    %p75 = scmp.ne.s32.totalorder %s66, %s67
    %p76 = scmp.eq.s32.totalorder %s14, 0
    %p77 = por %p75, %p76
    %p78 = scmp.ne.s32.totalorder %s66, %s67
    %p79 = scmp.eq.s32.totalorder %s15, 7
    %p80 = por %p78, %p79
    %p82 = scmp.ne.s32.totalorder %s67, %s81
    %p83 = scmp.eq.s32.totalorder %s15, 0
    %p84 = por %p82, %p83
    %s85 = ssub.s32 %s9, %s16
    %p86 = scmp.eq.s32.totalorder %s85, 0
    %s88 = sadd.s32 %s87, 1
    %s89 = scalar_select %p86, %s87, %s88
    %p92 = pneg %p86
    %p93 = scmp.eq.s32.totalorder %s9, 7
    %p94 = por %p92, %p93
    %p95 = scmp.ne.s32.totalorder %s87, %s90
    %p96 = scmp.eq.s32.totalorder %s9, 0
    %p97 = por %p95, %p96
    %p98 = scmp.ne.s32.totalorder %s87, %s90
    %p99 = scmp.eq.s32.totalorder %s14, 7
    %p100 = por %p98, %p99
    %p101 = scmp.ne.s32.totalorder %s90, %s91
    %p102 = scmp.eq.s32.totalorder %s14, 0
    %p103 = por %p101, %p102
    %p104 = scmp.ne.s32.totalorder %s90, %s91
    %p105 = scmp.eq.s32.totalorder %s15, 7
    %p106 = por %p104, %p105
    %p108 = scmp.ne.s32.totalorder %s91, %s107
    %p109 = scmp.eq.s32.totalorder %s15, 0
    %p110 = por %p108, %p109
    %p111 = scmp.le.s32.totalorder 1, %s9
    %p112 = scmp.lt.s32.totalorder %s9, 9
    %p113 = pnand %p111, %p112
    %p114 = pneg %p113
    // Predicated region
    $region9: #{_lambda_.4} parent=5 // pred_check
      _
    $region10: #{_lambda_.4} parent=5 // pred_check_branch
      %116 = sbr.rel (%p113) target = $region12
    $region11: #{_lambda_.4} parent=5 // pred_region
      %s117 = ssub.s32 %s9, 1
      // Predicated region
      $region13: #{_lambda_.4} parent=11 // pred_check
        %p118 = pneg %p56
      $region14: #{_lambda_.4} parent=11 // pred_check_branch
        %120 = sbr.rel (%p118) target = $region16
      $region15: #{_lambda_.4} parent=11 // pred_region
        _
      $region16: #{_lambda_.4} parent=11 // pred_fallthru
        _
      // Predicated region
      $region17: #{_lambda_.4} parent=11 // pred_check
        %p121 = pneg %p77
      $region18: #{_lambda_.4} parent=11 // pred_check_branch
        %123 = sbr.rel (%p121) target = $region20
      $region19: #{_lambda_.4} parent=11 // pred_region
        _
      $region20: #{_lambda_.4} parent=11 // pred_fallthru
        _
    $region12: #{_lambda_.4} parent=5 // pred_fallthru
      _
    %p124 = scmp.lt.s32.totalorder %s9, 8
    // Predicated region
    $region21: #{_lambda_.4} parent=5 // pred_check
      %p125 = pneg %p124
    $region22: #{_lambda_.4} parent=5 // pred_check_branch
      %127 = sbr.rel (%p125) target = $region24
    $region23: #{_lambda_.4} parent=5 // pred_region
      // Predicated region
      $region25: #{_lambda_.4} parent=23 // pred_check
        %p128 = pneg %p29
      $region26: #{_lambda_.4} parent=23 // pred_check_branch
        %130 = sbr.rel (%p128) target = $region28
      $region27: #{_lambda_.4} parent=23 // pred_region
        %p131 = scmp.lt.s32.totalorder %s9, 7
        %s132 = scalar_select %p131, %s9, 7
        %s133 = smul.addr %s132, 20
        %s134 = smul.addr %s133, 4
        %s135 = scalar_lea.vmem %s0, %s134
      $region28: #{_lambda_.4} parent=23 // pred_fallthru
        _
    $region24: #{_lambda_.4} parent=5 // pred_fallthru
      _
    %p136 = scmp.le.s32.totalorder 1, %s9
    %p137 = scmp.lt.s32.totalorder %s9, 9
    %p138 = pnand %p136, %p137
    %p139 = pneg %p138
    // Predicated region
    $region29: #{_lambda_.4} parent=5 // pred_check
      _
    $region30: #{_lambda_.4} parent=5 // pred_check_branch
      %141 = sbr.rel (%p138) target = $region32
    $region31: #{_lambda_.4} parent=5 // pred_region
      %s142 = ssub.s32 %s9, 1
      %p143 = scmp.lt.s32.totalorder %s14, 7
      %s144 = scalar_select %p143, %s14, 7
      %s145 = smul.addr %s144, 20
      %s146 = smul.addr %s145, 4
      %s147 = scalar_lea.vmem %s0, %s146
      %p148 = pneg %p35
      %p149 = pneg %p32
      %p150 = pneg %p56
      %p151 = pneg %p53
      %p152 = pneg %p77
      %p153 = pneg %p74
      %p154 = pneg %p103
      %p155 = pneg %p100
      %p156 = scmp.lt.s32.totalorder %s14, 7
      %s157 = scalar_select %p156, %s14, 7
      %s158 = smul.addr %s157, 8
      %s159 = smul.addr %s158, 8
      %s160 = scalar_lea.vmem %s3, %s159
      %p161 = scmp.lt.s32.totalorder %s14, 7
      %s162 = scalar_select %p161, %s14, 7
      %s163 = smul.addr %s162, 20
      %s164 = smul.addr %s163, 4
      %s165 = scalar_lea.vmem %s0, %s164
      %p166 = scmp.lt.s32.totalorder %s14, 7
      %s167 = scalar_select %p166, %s14, 7
      %s168 = smul.addr %s167, 8
      %s169 = smul.addr %s168, 8
      %s170 = scalar_lea.vmem %s3, %s169
      %v172 = vld [vmem:[%s165] sm:$0xf]
      %v173 = vld [vmem:[%s165 + $0x8] sm:$0xf]
      %v174 = vld [vmem:[%s165 + $0x10] sm:$0xf]
      %v175 = vld [vmem:[%s165 + $0x18] sm:$0xf]
      %v176 = vld [vmem:[%s165 + $0x20] sm:$0xf]
      %v177 = vld [vmem:[%s165 + $0x28] sm:$0xf]
      %v178 = vld [vmem:[%s165 + $0x30] sm:$0xf]
      %v179 = vld [vmem:[%s165 + $0x38] sm:$0xf]
      %v180 = vld [vmem:[%s1] sm:$0xf]
      %v181 = vld [vmem:[%s1 + $0x4] sm:$0xf]
      %v182 = vld [vmem:[%s1 + $0x8] sm:$0xf]
      %v183 = vld [vmem:[%s1 + $0xc] sm:$0xf]
      %v184 = vld [vmem:[%s1 + $0x10] sm:$0xf]
      %v185 = vld [vmem:[%s1 + $0x14] sm:$0xf]
      %v186 = vld [vmem:[%s1 + $0x18] sm:$0xf]
      %v187 = vld [vmem:[%s1 + $0x1c] sm:$0xf]
      %v188 = vld [vmem:[%s1 + $0x20] sm:$0xf]
      %v189 = vld [vmem:[%s1 + $0x24] sm:$0xf]
      %v190 = vld [vmem:[%s1 + $0x28] sm:$0xf]
      %v191 = vld [vmem:[%s1 + $0x2c] sm:$0xf]
      %v192 = vld [vmem:[%s1 + $0x30] sm:$0xf]
      %v193 = vld [vmem:[%s1 + $0x34] sm:$0xf]
      %v194 = vld [vmem:[%s1 + $0x38] sm:$0xf]
      %v195 = vld [vmem:[%s1 + $0x3c] sm:$0xf]
      %v196 = vld [vmem:[%s165 + $0x4] sm:$0x1]
      %v197 = vld [vmem:[%s165 + $0xc] sm:$0x1]
      %v198 = vld [vmem:[%s165 + $0x14] sm:$0x1]
      %v199 = vld [vmem:[%s165 + $0x1c] sm:$0x1]
      %v200 = vld [vmem:[%s165 + $0x24] sm:$0x1]
      %v201 = vld [vmem:[%s165 + $0x2c] sm:$0x1]
      %v202 = vld [vmem:[%s165 + $0x34] sm:$0x1]
      %v203 = vld [vmem:[%s165 + $0x3c] sm:$0x1]
      %vm204 = vsmask.f32 3328
      %vm205 = vsmask.f32 7440
      %vm206 = vmor %vm204, %vm205
      %v208 = vshrl.u32 %v172, 16
      %v210 = vrot.slane %v208, 4
      %v211 = vshll.u32 %v172, 16
      %v213 = vrot.slane %v211, 5
      %v214 = vor.u32 %v210, %v213
      %v215 = vrot.slane %v214, 4
      %v217 = vshll.u32 %v196, 16
      %v219 = vrot.slane %v217, 5
      %v220 = vsel %vm206, %v215, %v219
      %v222 = vshrl.u32 %v173, 16
      %v224 = vrot.slane %v222, 4
      %v225 = vshll.u32 %v173, 16
      %v227 = vrot.slane %v225, 5
      %v228 = vor.u32 %v224, %v227
      %v229 = vrot.slane %v228, 4
      %v231 = vshll.u32 %v197, 16
      %v233 = vrot.slane %v231, 5
      %v234 = vsel %vm206, %v229, %v233
      %v236 = vshrl.u32 %v174, 16
      %v238 = vrot.slane %v236, 4
      %v239 = vshll.u32 %v174, 16
      %v241 = vrot.slane %v239, 5
      %v242 = vor.u32 %v238, %v241
      %v243 = vrot.slane %v242, 4
      %v245 = vshll.u32 %v198, 16
      %v247 = vrot.slane %v245, 5
      %v248 = vsel %vm206, %v243, %v247
      %v250 = vshrl.u32 %v175, 16
      %v252 = vrot.slane %v250, 4
      %v253 = vshll.u32 %v175, 16
      %v255 = vrot.slane %v253, 5
      %v256 = vor.u32 %v252, %v255
      %v257 = vrot.slane %v256, 4
      %v259 = vshll.u32 %v199, 16
      %v261 = vrot.slane %v259, 5
      %v262 = vsel %vm206, %v257, %v261
      %v264 = vshrl.u32 %v176, 16
      %v266 = vrot.slane %v264, 4
      %v267 = vshll.u32 %v176, 16
      %v269 = vrot.slane %v267, 5
      %v270 = vor.u32 %v266, %v269
      %v271 = vrot.slane %v270, 4
      %v273 = vshll.u32 %v200, 16
      %v275 = vrot.slane %v273, 5
      %v276 = vsel %vm206, %v271, %v275
      %v278 = vshrl.u32 %v177, 16
      %v280 = vrot.slane %v278, 4
      %v281 = vshll.u32 %v177, 16
      %v283 = vrot.slane %v281, 5
      %v284 = vor.u32 %v280, %v283
      %v285 = vrot.slane %v284, 4
      %v287 = vshll.u32 %v201, 16
      %v289 = vrot.slane %v287, 5
      %v290 = vsel %vm206, %v285, %v289
      %v292 = vshrl.u32 %v178, 16
      %v294 = vrot.slane %v292, 4
      %v295 = vshll.u32 %v178, 16
      %v297 = vrot.slane %v295, 5
      %v298 = vor.u32 %v294, %v297
      %v299 = vrot.slane %v298, 4
      %v301 = vshll.u32 %v202, 16
      %v303 = vrot.slane %v301, 5
      %v304 = vsel %vm206, %v299, %v303
      %v306 = vshrl.u32 %v179, 16
      %v308 = vrot.slane %v306, 4
      %v309 = vshll.u32 %v179, 16
      %v311 = vrot.slane %v309, 5
      %v312 = vor.u32 %v308, %v311
      %v313 = vrot.slane %v312, 4
      %v315 = vshll.u32 %v203, 16
      %v317 = vrot.slane %v315, 5
      %v318 = vsel %vm206, %v313, %v317
      %v319 = vld [vmem:[%s1 + $0x40] sm:$0xf]
      %v320 = vld [vmem:[%s1 + $0x44] sm:$0xf]
      %v321 = vld [vmem:[%s1 + $0x48] sm:$0xf]
      %v322 = vld [vmem:[%s1 + $0x4c] sm:$0xf]
      %v323 = vld [vmem:[%s1 + $0x50] sm:$0xf]
      %v324 = vld [vmem:[%s1 + $0x54] sm:$0xf]
      %v325 = vld [vmem:[%s1 + $0x58] sm:$0xf]
      %v326 = vld [vmem:[%s1 + $0x5c] sm:$0xf]
      %v327 = vld [vmem:[%s1 + $0x60] sm:$0xf]
      %v328 = vld [vmem:[%s1 + $0x64] sm:$0xf]
      %v329 = vld [vmem:[%s1 + $0x68] sm:$0xf]
      %v330 = vld [vmem:[%s1 + $0x6c] sm:$0xf]
      %v331 = vld [vmem:[%s1 + $0x70] sm:$0xf]
      %v332 = vld [vmem:[%s1 + $0x74] sm:$0xf]
      %v333 = vld [vmem:[%s1 + $0x78] sm:$0xf]
      %v334 = vld [vmem:[%s1 + $0x7c] sm:$0xf]
      %v335 = vunpack.c.l.b16 %v220
      %v336 = vunpack.c.l.b16 %v234
      %v337 = vunpack.c.l.b16 %v248
      %v338 = vunpack.c.l.b16 %v262
      %v339 = vunpack.c.l.b16 %v276
      %v340 = vunpack.c.l.b16 %v290
      %v341 = vunpack.c.l.b16 %v304
      %v342 = vunpack.c.l.b16 %v318
      %v343 = vpack.c.b16 %v336, %v335
      %v344 = vpack.c.b16 %v338, %v337
      %v345 = vpack.c.b16 %v340, %v339
      %v346 = vpack.c.b16 %v342, %v341
      %v367 = vunpack.c.l.b16 %v319
      %v368 = vunpack.c.l.b16 %v320
      %v369 = vunpack.c.l.b16 %v321
      %v370 = vunpack.c.l.b16 %v322
      %v371 = vunpack.c.l.b16 %v323
      %v372 = vunpack.c.l.b16 %v324
      %v373 = vunpack.c.l.b16 %v325
      %v374 = vunpack.c.l.b16 %v326
      %v375 = vunpack.c.l.b16 %v327
      %v376 = vunpack.c.l.b16 %v328
      %v377 = vunpack.c.l.b16 %v329
      %v378 = vunpack.c.l.b16 %v330
      %v379 = vunpack.c.l.b16 %v331
      %v380 = vunpack.c.l.b16 %v332
      %v381 = vunpack.c.l.b16 %v333
      %v382 = vunpack.c.l.b16 %v334
      %v383 = vpack.c.b16 %v368, %v367
      %v384 = vpack.c.b16 %v370, %v369
      %v385 = vpack.c.b16 %v372, %v371
      %v386 = vpack.c.b16 %v374, %v373
      %v387 = vpack.c.b16 %v376, %v375
      %v388 = vpack.c.b16 %v378, %v377
      %v389 = vpack.c.b16 %v380, %v379
      %v390 = vpack.c.b16 %v382, %v381
      %399 = vmatprep.subr.bf16.mxu0 0
      %400 = vmatpush1.bf16.msra.mxu0 %v390
      %401 = vmatprep.subr.bf16.mxu0 0
      %402 = vmatpush1.bf16.msra.mxu0 %v389
      %403 = vmatprep.subr.bf16.mxu0 0
      %404 = vmatpush1.bf16.msra.mxu0 %v388
      %405 = vmatprep.subr.bf16.mxu0 0
      %406 = vmatpush1.bf16.msra.mxu0 %v387
      %407 = vmatprep.subr.bf16.mxu0 0
      %408 = vmatpush1.bf16.msra.mxu0 %v386
      %409 = vmatprep.subr.bf16.mxu0 0
      %410 = vmatpush1.bf16.msra.mxu0 %v385
      %411 = vmatprep.subr.bf16.mxu0 0
      %412 = vmatpush1.bf16.msra.mxu0 %v384
      %413 = vmatprep.subr.bf16.mxu0 0
      %414 = vmatpush1.bf16.msra.mxu0 %v383
      %415 = vmatprep.subr.bf16.mxu0 0
      %416 = vmatpush2.bf16.msra.mxu0 0
      %417 = vmatprep.subr.bf16.mxu0 0
      %418 = vmatpush2.bf16.msra.mxu0 0
      %419 = vmatprep.subr.bf16.mxu0 0
      %420 = vmatpush2.bf16.msra.mxu0 0
      %421 = vmatprep.subr.bf16.mxu0 0
      %422 = vmatpush2.bf16.msra.mxu0 0
      %423 = vmatprep.subr.bf16.mxu0 0
      %424 = vmatpush2.bf16.msra.mxu0 0
      %425 = vmatprep.subr.bf16.mxu0 0
      %426 = vmatpush2.bf16.msra.mxu0 0
      %427 = vmatprep.subr.bf16.mxu0 0
      %428 = vmatpush2.bf16.msra.mxu0 0
      %429 = vmatprep.subr.bf16.mxu0 0
      %430 = vmatpush2.bf16.msra.mxu0 0
      %431 = vmatprep.mubr.bf16.mxu0 0
      %432 = vmatmul.mubr.bf16.gmra.mxu0 %v343
      %v433 = vpop.f32.mrf.mxu0
      %v434 = vadd.f32 0.0, %v433
      %v435 = vpop.f32.mrf.mxu0
      %v436 = vpop.f32.mrf.mxu0
      %v437 = vadd.f32 0.0, %v436
      %v438 = vpop.f32.mrf.mxu0
      %439 = vmatprep.mubr.bf16.mxu0 0
      %440 = vmatmul.mubr.bf16.gmra.mxu0 %v344
      %v441 = vpop.f32.mrf.mxu0
      %v442 = vadd.f32 0.0, %v441
      %v443 = vpop.f32.mrf.mxu0
      %v444 = vpop.f32.mrf.mxu0
      %v445 = vadd.f32 0.0, %v444
      %v446 = vpop.f32.mrf.mxu0
      %447 = vmatprep.mubr.bf16.mxu0 0
      %448 = vmatmul.mubr.bf16.gmra.mxu0 %v345
      %v449 = vpop.f32.mrf.mxu0
      %v450 = vadd.f32 0.0, %v449
      %v451 = vpop.f32.mrf.mxu0
      %v452 = vpop.f32.mrf.mxu0
      %v453 = vadd.f32 0.0, %v452
      %v454 = vpop.f32.mrf.mxu0
      %455 = vmatprep.mubr.bf16.mxu0 0
      %456 = vmatmul.mubr.bf16.gmra.mxu0 %v346
      %v457 = vpop.f32.mrf.mxu0
      %v458 = vadd.f32 0.0, %v457
      %v459 = vpop.f32.mrf.mxu0
      %v460 = vpop.f32.mrf.mxu0
      %v461 = vadd.f32 0.0, %v460
      %v462 = vpop.f32.mrf.mxu0
      %463 = vdwg.mxu0
      %v472 = vunpack.c.l.b16 %v172
      %v473 = vunpack.c.l.b16 %v173
      %v474 = vunpack.c.l.b16 %v174
      %v475 = vunpack.c.l.b16 %v175
      %v476 = vunpack.c.l.b16 %v176
      %v477 = vunpack.c.l.b16 %v177
      %v478 = vunpack.c.l.b16 %v178
      %v479 = vunpack.c.l.b16 %v179
      %v480 = vpack.c.b16 %v473, %v472
      %v481 = vpack.c.b16 %v475, %v474
      %v482 = vpack.c.b16 %v477, %v476
      %v483 = vpack.c.b16 %v479, %v478
      %v504 = vunpack.c.l.b16 %v180
      %v505 = vunpack.c.l.b16 %v181
      %v506 = vunpack.c.l.b16 %v182
      %v507 = vunpack.c.l.b16 %v183
      %v508 = vunpack.c.l.b16 %v184
      %v509 = vunpack.c.l.b16 %v185
      %v510 = vunpack.c.l.b16 %v186
      %v511 = vunpack.c.l.b16 %v187
      %v512 = vunpack.c.l.b16 %v188
      %v513 = vunpack.c.l.b16 %v189
      %v514 = vunpack.c.l.b16 %v190
      %v515 = vunpack.c.l.b16 %v191
      %v516 = vunpack.c.l.b16 %v192
      %v517 = vunpack.c.l.b16 %v193
      %v518 = vunpack.c.l.b16 %v194
      %v519 = vunpack.c.l.b16 %v195
      %v520 = vpack.c.b16 %v505, %v504
      %v521 = vpack.c.b16 %v507, %v506
      %v522 = vpack.c.b16 %v509, %v508
      %v523 = vpack.c.b16 %v511, %v510
      %v524 = vpack.c.b16 %v513, %v512
      %v525 = vpack.c.b16 %v515, %v514
      %v526 = vpack.c.b16 %v517, %v516
      %v527 = vpack.c.b16 %v519, %v518
      %536 = vmatprep.subr.bf16.mxu0 0
      %537 = vmatpush1.bf16.msra.mxu0 %v527
      %538 = vmatprep.subr.bf16.mxu0 0
      %539 = vmatpush1.bf16.msra.mxu0 %v526
      %540 = vmatprep.subr.bf16.mxu0 0
      %541 = vmatpush1.bf16.msra.mxu0 %v525
      %542 = vmatprep.subr.bf16.mxu0 0
      %543 = vmatpush1.bf16.msra.mxu0 %v524
      %544 = vmatprep.subr.bf16.mxu0 0
      %545 = vmatpush1.bf16.msra.mxu0 %v523
      %546 = vmatprep.subr.bf16.mxu0 0
      %547 = vmatpush1.bf16.msra.mxu0 %v522
      %548 = vmatprep.subr.bf16.mxu0 0
      %549 = vmatpush1.bf16.msra.mxu0 %v521
      %550 = vmatprep.subr.bf16.mxu0 0
      %551 = vmatpush1.bf16.msra.mxu0 %v520
      %552 = vmatprep.subr.bf16.mxu0 0
      %553 = vmatpush2.bf16.msra.mxu0 0
      %554 = vmatprep.subr.bf16.mxu0 0
      %555 = vmatpush2.bf16.msra.mxu0 0
      %556 = vmatprep.subr.bf16.mxu0 0
      %557 = vmatpush2.bf16.msra.mxu0 0
      %558 = vmatprep.subr.bf16.mxu0 0
      %559 = vmatpush2.bf16.msra.mxu0 0
      %560 = vmatprep.subr.bf16.mxu0 0
      %561 = vmatpush2.bf16.msra.mxu0 0
      %562 = vmatprep.subr.bf16.mxu0 0
      %563 = vmatpush2.bf16.msra.mxu0 0
      %564 = vmatprep.subr.bf16.mxu0 0
      %565 = vmatpush2.bf16.msra.mxu0 0
      %566 = vmatprep.subr.bf16.mxu0 0
      %567 = vmatpush2.bf16.msra.mxu0 0
      %568 = vmatprep.mubr.bf16.mxu0 0
      %569 = vmatmul.mubr.bf16.gmra.mxu0 %v480
      %v570 = vpop.f32.mrf.mxu0
      %v571 = vadd.f32 %v434, %v570
      %v572 = vpop.f32.mrf.mxu0
      %v573 = vpop.f32.mrf.mxu0
      %v574 = vadd.f32 %v437, %v573
      %v575 = vpop.f32.mrf.mxu0
      %576 = vmatprep.mubr.bf16.mxu0 0
      %577 = vmatmul.mubr.bf16.gmra.mxu0 %v481
      %v578 = vpop.f32.mrf.mxu0
      %v579 = vadd.f32 %v442, %v578
      %v580 = vpop.f32.mrf.mxu0
      %v581 = vpop.f32.mrf.mxu0
      %v582 = vadd.f32 %v445, %v581
      %v583 = vpop.f32.mrf.mxu0
      %584 = vmatprep.mubr.bf16.mxu0 0
      %585 = vmatmul.mubr.bf16.gmra.mxu0 %v482
      %v586 = vpop.f32.mrf.mxu0
      %v587 = vadd.f32 %v450, %v586
      %v588 = vpop.f32.mrf.mxu0
      %v589 = vpop.f32.mrf.mxu0
      %v590 = vadd.f32 %v453, %v589
      %v591 = vpop.f32.mrf.mxu0
      %592 = vmatprep.mubr.bf16.mxu0 0
      %593 = vmatmul.mubr.bf16.gmra.mxu0 %v483
      %v594 = vpop.f32.mrf.mxu0
      %v595 = vadd.f32 %v458, %v594
      %v596 = vpop.f32.mrf.mxu0
      %v597 = vpop.f32.mrf.mxu0
      %v598 = vadd.f32 %v461, %v597
      %v599 = vpop.f32.mrf.mxu0
      %600 = vdwg.mxu0
      %v601 = vld [vmem:[%s165] sm:$0xe]
      %v602 = vld [vmem:[%s165 + $0x8] sm:$0xe]
      %v603 = vld [vmem:[%s165 + $0x10] sm:$0xe]
      %v604 = vld [vmem:[%s165 + $0x18] sm:$0xe]
      %v605 = vld [vmem:[%s165 + $0x20] sm:$0xe]
      %v606 = vld [vmem:[%s165 + $0x28] sm:$0xe]
      %v607 = vld [vmem:[%s165 + $0x30] sm:$0xe]
      %v608 = vld [vmem:[%s165 + $0x38] sm:$0xe]
      %vm625 = vcmask 1042432
      %vm626 = vcmask 1046532
      %vm627 = vmor %vm625, %vm626
      %v628 = vrot.slane %v601, 5
      %v629 = vrot.slane %v628, 4
      %v630 = vrot.slane %v196, 5
      %v631 = vsel %vm627, %v629, %v630
      %v632 = vrot.slane %v602, 5
      %v633 = vrot.slane %v632, 4
      %v634 = vrot.slane %v197, 5
      %v635 = vsel %vm627, %v633, %v634
      %v636 = vrot.slane %v603, 5
      %v637 = vrot.slane %v636, 4
      %v638 = vrot.slane %v198, 5
      %v639 = vsel %vm627, %v637, %v638
      %v640 = vrot.slane %v604, 5
      %v641 = vrot.slane %v640, 4
      %v642 = vrot.slane %v199, 5
      %v643 = vsel %vm627, %v641, %v642
      %v644 = vrot.slane %v605, 5
      %v645 = vrot.slane %v644, 4
      %v646 = vrot.slane %v200, 5
      %v647 = vsel %vm627, %v645, %v646
      %v648 = vrot.slane %v606, 5
      %v649 = vrot.slane %v648, 4
      %v650 = vrot.slane %v201, 5
      %v651 = vsel %vm627, %v649, %v650
      %v652 = vrot.slane %v607, 5
      %v653 = vrot.slane %v652, 4
      %v654 = vrot.slane %v202, 5
      %v655 = vsel %vm627, %v653, %v654
      %v656 = vrot.slane %v608, 5
      %v657 = vrot.slane %v656, 4
      %v658 = vrot.slane %v203, 5
      %v659 = vsel %vm627, %v657, %v658
      %v660 = vld [vmem:[%s1 + $0x80] sm:$0xf]
      %v661 = vld [vmem:[%s1 + $0x84] sm:$0xf]
      %v662 = vld [vmem:[%s1 + $0x88] sm:$0xf]
      %v663 = vld [vmem:[%s1 + $0x8c] sm:$0xf]
      %v664 = vld [vmem:[%s1 + $0x90] sm:$0xf]
      %v665 = vld [vmem:[%s1 + $0x94] sm:$0xf]
      %v666 = vld [vmem:[%s1 + $0x98] sm:$0xf]
      %v667 = vld [vmem:[%s1 + $0x9c] sm:$0xf]
      %v668 = vld [vmem:[%s1 + $0xa0] sm:$0xf]
      %v669 = vld [vmem:[%s1 + $0xa4] sm:$0xf]
      %v670 = vld [vmem:[%s1 + $0xa8] sm:$0xf]
      %v671 = vld [vmem:[%s1 + $0xac] sm:$0xf]
      %v672 = vld [vmem:[%s1 + $0xb0] sm:$0xf]
      %v673 = vld [vmem:[%s1 + $0xb4] sm:$0xf]
      %v674 = vld [vmem:[%s1 + $0xb8] sm:$0xf]
      %v675 = vld [vmem:[%s1 + $0xbc] sm:$0xf]
      %v676 = vunpack.c.l.b16 %v631
      %v677 = vunpack.c.l.b16 %v635
      %v678 = vunpack.c.l.b16 %v639
      %v679 = vunpack.c.l.b16 %v643
      %v680 = vunpack.c.l.b16 %v647
      %v681 = vunpack.c.l.b16 %v651
      %v682 = vunpack.c.l.b16 %v655
      %v683 = vunpack.c.l.b16 %v659
      %v684 = vpack.c.b16 %v677, %v676
      %v685 = vpack.c.b16 %v679, %v678
      %v686 = vpack.c.b16 %v681, %v680
      %v687 = vpack.c.b16 %v683, %v682
      %v708 = vunpack.c.l.b16 %v660
      %v709 = vunpack.c.l.b16 %v661
      %v710 = vunpack.c.l.b16 %v662
      %v711 = vunpack.c.l.b16 %v663
      %v712 = vunpack.c.l.b16 %v664
      %v713 = vunpack.c.l.b16 %v665
      %v714 = vunpack.c.l.b16 %v666
      %v715 = vunpack.c.l.b16 %v667
      %v716 = vunpack.c.l.b16 %v668
      %v717 = vunpack.c.l.b16 %v669
      %v718 = vunpack.c.l.b16 %v670
      %v719 = vunpack.c.l.b16 %v671
      %v720 = vunpack.c.l.b16 %v672
      %v721 = vunpack.c.l.b16 %v673
      %v722 = vunpack.c.l.b16 %v674
      %v723 = vunpack.c.l.b16 %v675
      %v724 = vpack.c.b16 %v709, %v708
      %v725 = vpack.c.b16 %v711, %v710
      %v726 = vpack.c.b16 %v713, %v712
      %v727 = vpack.c.b16 %v715, %v714
      %v728 = vpack.c.b16 %v717, %v716
      %v729 = vpack.c.b16 %v719, %v718
      %v730 = vpack.c.b16 %v721, %v720
      %v731 = vpack.c.b16 %v723, %v722
      %740 = vmatprep.subr.bf16.mxu0 0
      %741 = vmatpush1.bf16.msra.mxu0 %v731
      %742 = vmatprep.subr.bf16.mxu0 0
      %743 = vmatpush1.bf16.msra.mxu0 %v730
      %744 = vmatprep.subr.bf16.mxu0 0
      %745 = vmatpush1.bf16.msra.mxu0 %v729
      %746 = vmatprep.subr.bf16.mxu0 0
      %747 = vmatpush1.bf16.msra.mxu0 %v728
      %748 = vmatprep.subr.bf16.mxu0 0
      %749 = vmatpush1.bf16.msra.mxu0 %v727
      %750 = vmatprep.subr.bf16.mxu0 0
      %751 = vmatpush1.bf16.msra.mxu0 %v726
      %752 = vmatprep.subr.bf16.mxu0 0
      %753 = vmatpush1.bf16.msra.mxu0 %v725
      %754 = vmatprep.subr.bf16.mxu0 0
      %755 = vmatpush1.bf16.msra.mxu0 %v724
      %756 = vmatprep.subr.bf16.mxu0 0
      %757 = vmatpush2.bf16.msra.mxu0 0
      %758 = vmatprep.subr.bf16.mxu0 0
      %759 = vmatpush2.bf16.msra.mxu0 0
      %760 = vmatprep.subr.bf16.mxu0 0
      %761 = vmatpush2.bf16.msra.mxu0 0
      %762 = vmatprep.subr.bf16.mxu0 0
      %763 = vmatpush2.bf16.msra.mxu0 0
      %764 = vmatprep.subr.bf16.mxu0 0
      %765 = vmatpush2.bf16.msra.mxu0 0
      %766 = vmatprep.subr.bf16.mxu0 0
      %767 = vmatpush2.bf16.msra.mxu0 0
      %768 = vmatprep.subr.bf16.mxu0 0
      %769 = vmatpush2.bf16.msra.mxu0 0
      %770 = vmatprep.subr.bf16.mxu0 0
      %771 = vmatpush2.bf16.msra.mxu0 0
      %772 = vmatprep.mubr.bf16.mxu0 0
      %773 = vmatmul.mubr.bf16.gmra.mxu0 %v684
      %v774 = vpop.f32.mrf.mxu0
      %v775 = vadd.f32 0.0, %v774
      %v776 = vpop.f32.mrf.mxu0
      %v777 = vpop.f32.mrf.mxu0
      %v778 = vadd.f32 0.0, %v777
      %v779 = vpop.f32.mrf.mxu0
      %780 = vmatprep.mubr.bf16.mxu0 0
      %781 = vmatmul.mubr.bf16.gmra.mxu0 %v685
      %v782 = vpop.f32.mrf.mxu0
      %v783 = vadd.f32 0.0, %v782
      %v784 = vpop.f32.mrf.mxu0
      %v785 = vpop.f32.mrf.mxu0
      %v786 = vadd.f32 0.0, %v785
      %v787 = vpop.f32.mrf.mxu0
      %788 = vmatprep.mubr.bf16.mxu0 0
      %789 = vmatmul.mubr.bf16.gmra.mxu0 %v686
      %v790 = vpop.f32.mrf.mxu0
      %v791 = vadd.f32 0.0, %v790
      %v792 = vpop.f32.mrf.mxu0
      %v793 = vpop.f32.mrf.mxu0
      %v794 = vadd.f32 0.0, %v793
      %v795 = vpop.f32.mrf.mxu0
      %796 = vmatprep.mubr.bf16.mxu0 0
      %797 = vmatmul.mubr.bf16.gmra.mxu0 %v687
      %v798 = vpop.f32.mrf.mxu0
      %v799 = vadd.f32 0.0, %v798
      %v800 = vpop.f32.mrf.mxu0
      %v801 = vpop.f32.mrf.mxu0
      %v802 = vadd.f32 0.0, %v801
      %v803 = vpop.f32.mrf.mxu0
      %804 = vdwg.mxu0
      %v805 = vadd.f32 %v571, %v775
      %v806 = vadd.f32 %v574, %v778
      %v807 = vadd.f32 %v579, %v783
      %v808 = vadd.f32 %v582, %v786
      %v809 = vadd.f32 %v587, %v791
      %v810 = vadd.f32 %v590, %v794
      %v811 = vadd.f32 %v595, %v799
      %v812 = vadd.f32 %v598, %v802
      %s813 = scalar_lea.vmem %s165, 8
      %v814 = vld [vmem:[%s813] sm:$0xf]
      %v815 = vld [vmem:[%s813 + $0x8] sm:$0xf]
      %v816 = vld [vmem:[%s813 + $0x10] sm:$0xf]
      %v817 = vld [vmem:[%s813 + $0x18] sm:$0xf]
      %v818 = vld [vmem:[%s813 + $0x20] sm:$0xf]
      %v819 = vld [vmem:[%s813 + $0x28] sm:$0xf]
      %v820 = vld [vmem:[%s813 + $0x30] sm:$0xf]
      %v821 = vld [vmem:[%s813 + $0x38] sm:$0xf]
      %v822 = vld [vmem:[%s1 + $0xc0] sm:$0xf]
      %v823 = vld [vmem:[%s1 + $0xc4] sm:$0xf]
      %v824 = vld [vmem:[%s1 + $0xc8] sm:$0xf]
      %v825 = vld [vmem:[%s1 + $0xcc] sm:$0xf]
      %v826 = vld [vmem:[%s1 + $0xd0] sm:$0xf]
      %v827 = vld [vmem:[%s1 + $0xd4] sm:$0xf]
      %v828 = vld [vmem:[%s1 + $0xd8] sm:$0xf]
      %v829 = vld [vmem:[%s1 + $0xdc] sm:$0xf]
      %v830 = vld [vmem:[%s1 + $0xe0] sm:$0xf]
      %v831 = vld [vmem:[%s1 + $0xe4] sm:$0xf]
      %v832 = vld [vmem:[%s1 + $0xe8] sm:$0xf]
      %v833 = vld [vmem:[%s1 + $0xec] sm:$0xf]
      %v834 = vld [vmem:[%s1 + $0xf0] sm:$0xf]
      %v835 = vld [vmem:[%s1 + $0xf4] sm:$0xf]
      %v836 = vld [vmem:[%s1 + $0xf8] sm:$0xf]
      %v837 = vld [vmem:[%s1 + $0xfc] sm:$0xf]
      %v846 = vunpack.c.l.b16 %v814
      %v847 = vunpack.c.l.b16 %v815
      %v848 = vunpack.c.l.b16 %v816
      %v849 = vunpack.c.l.b16 %v817
      %v850 = vunpack.c.l.b16 %v818
      %v851 = vunpack.c.l.b16 %v819
      %v852 = vunpack.c.l.b16 %v820
      %v853 = vunpack.c.l.b16 %v821
      %v854 = vpack.c.b16 %v847, %v846
      %v855 = vpack.c.b16 %v849, %v848
      %v856 = vpack.c.b16 %v851, %v850
      %v857 = vpack.c.b16 %v853, %v852
      %v878 = vunpack.c.l.b16 %v822
      %v879 = vunpack.c.l.b16 %v823
      %v880 = vunpack.c.l.b16 %v824
      %v881 = vunpack.c.l.b16 %v825
      %v882 = vunpack.c.l.b16 %v826
      %v883 = vunpack.c.l.b16 %v827
      %v884 = vunpack.c.l.b16 %v828
      %v885 = vunpack.c.l.b16 %v829
      %v886 = vunpack.c.l.b16 %v830
      %v887 = vunpack.c.l.b16 %v831
      %v888 = vunpack.c.l.b16 %v832
      %v889 = vunpack.c.l.b16 %v833
      %v890 = vunpack.c.l.b16 %v834
      %v891 = vunpack.c.l.b16 %v835
      %v892 = vunpack.c.l.b16 %v836
      %v893 = vunpack.c.l.b16 %v837
      %v894 = vpack.c.b16 %v879, %v878
      %v895 = vpack.c.b16 %v881, %v880
      %v896 = vpack.c.b16 %v883, %v882
      %v897 = vpack.c.b16 %v885, %v884
      %v898 = vpack.c.b16 %v887, %v886
      %v899 = vpack.c.b16 %v889, %v888
      %v900 = vpack.c.b16 %v891, %v890
      %v901 = vpack.c.b16 %v893, %v892
      %910 = vmatprep.subr.bf16.mxu0 0
      %911 = vmatpush1.bf16.msra.mxu0 %v901
      %912 = vmatprep.subr.bf16.mxu0 0
      %913 = vmatpush1.bf16.msra.mxu0 %v900
      %914 = vmatprep.subr.bf16.mxu0 0
      %915 = vmatpush1.bf16.msra.mxu0 %v899
      %916 = vmatprep.subr.bf16.mxu0 0
      %917 = vmatpush1.bf16.msra.mxu0 %v898
      %918 = vmatprep.subr.bf16.mxu0 0
      %919 = vmatpush1.bf16.msra.mxu0 %v897
      %920 = vmatprep.subr.bf16.mxu0 0
      %921 = vmatpush1.bf16.msra.mxu0 %v896
      %922 = vmatprep.subr.bf16.mxu0 0
      %923 = vmatpush1.bf16.msra.mxu0 %v895
      %924 = vmatprep.subr.bf16.mxu0 0
      %925 = vmatpush1.bf16.msra.mxu0 %v894
      %926 = vmatprep.subr.bf16.mxu0 0
      %927 = vmatpush2.bf16.msra.mxu0 0
      %928 = vmatprep.subr.bf16.mxu0 0
      %929 = vmatpush2.bf16.msra.mxu0 0
      %930 = vmatprep.subr.bf16.mxu0 0
      %931 = vmatpush2.bf16.msra.mxu0 0
      %932 = vmatprep.subr.bf16.mxu0 0
      %933 = vmatpush2.bf16.msra.mxu0 0
      %934 = vmatprep.subr.bf16.mxu0 0
      %935 = vmatpush2.bf16.msra.mxu0 0
      %936 = vmatprep.subr.bf16.mxu0 0
      %937 = vmatpush2.bf16.msra.mxu0 0
      %938 = vmatprep.subr.bf16.mxu0 0
      %939 = vmatpush2.bf16.msra.mxu0 0
      %940 = vmatprep.subr.bf16.mxu0 0
      %941 = vmatpush2.bf16.msra.mxu0 0
      %942 = vmatprep.mubr.bf16.mxu0 0
      %943 = vmatmul.mubr.bf16.gmra.mxu0 %v854
      %v944 = vpop.f32.mrf.mxu0
      %v945 = vadd.f32 0.0, %v944
      %v946 = vpop.f32.mrf.mxu0
      %v947 = vpop.f32.mrf.mxu0
      %v948 = vadd.f32 0.0, %v947
      %v949 = vpop.f32.mrf.mxu0
      %950 = vmatprep.mubr.bf16.mxu0 0
      %951 = vmatmul.mubr.bf16.gmra.mxu0 %v855
      %v952 = vpop.f32.mrf.mxu0
      %v953 = vadd.f32 0.0, %v952
      %v954 = vpop.f32.mrf.mxu0
      %v955 = vpop.f32.mrf.mxu0
      %v956 = vadd.f32 0.0, %v955
      %v957 = vpop.f32.mrf.mxu0
      %958 = vmatprep.mubr.bf16.mxu0 0
      %959 = vmatmul.mubr.bf16.gmra.mxu0 %v856
      %v960 = vpop.f32.mrf.mxu0
      %v961 = vadd.f32 0.0, %v960
      %v962 = vpop.f32.mrf.mxu0
      %v963 = vpop.f32.mrf.mxu0
      %v964 = vadd.f32 0.0, %v963
      %v965 = vpop.f32.mrf.mxu0
      %966 = vmatprep.mubr.bf16.mxu0 0
      %967 = vmatmul.mubr.bf16.gmra.mxu0 %v857
      %v968 = vpop.f32.mrf.mxu0
      %v969 = vadd.f32 0.0, %v968
      %v970 = vpop.f32.mrf.mxu0
      %v971 = vpop.f32.mrf.mxu0
      %v972 = vadd.f32 0.0, %v971
      %v973 = vpop.f32.mrf.mxu0
      %974 = vdwg.mxu0
      %v975 = vadd.f32 %v805, %v945
      %v976 = vadd.f32 %v806, %v948
      %v977 = vadd.f32 %v807, %v953
      %v978 = vadd.f32 %v808, %v956
      %v979 = vadd.f32 %v809, %v961
      %v980 = vadd.f32 %v810, %v964
      %v981 = vadd.f32 %v811, %v969
      %v982 = vadd.f32 %v812, %v972
      %v983 = vld [vmem:[%s813] sm:$0xf]
      %v984 = vld [vmem:[%s813 + $0x4] sm:$0x1]
      %v985 = vld [vmem:[%s813 + $0x8] sm:$0xf]
      %v986 = vld [vmem:[%s813 + $0xc] sm:$0x1]
      %v987 = vld [vmem:[%s813 + $0x10] sm:$0xf]
      %v988 = vld [vmem:[%s813 + $0x14] sm:$0x1]
      %v989 = vld [vmem:[%s813 + $0x18] sm:$0xf]
      %v990 = vld [vmem:[%s813 + $0x1c] sm:$0x1]
      %v991 = vld [vmem:[%s813 + $0x20] sm:$0xf]
      %v992 = vld [vmem:[%s813 + $0x24] sm:$0x1]
      %v993 = vld [vmem:[%s813 + $0x28] sm:$0xf]
      %v994 = vld [vmem:[%s813 + $0x2c] sm:$0x1]
      %v995 = vld [vmem:[%s813 + $0x30] sm:$0xf]
      %v996 = vld [vmem:[%s813 + $0x34] sm:$0x1]
      %v997 = vld [vmem:[%s813 + $0x38] sm:$0xf]
      %v998 = vld [vmem:[%s813 + $0x3c] sm:$0x1]
      %v1000 = vshrl.u32 %v983, 16
      %v1002 = vrot.slane %v1000, 4
      %v1003 = vshll.u32 %v983, 16
      %v1005 = vrot.slane %v1003, 5
      %v1006 = vor.u32 %v1002, %v1005
      %v1007 = vrot.slane %v1006, 4
      %v1009 = vshll.u32 %v984, 16
      %v1011 = vrot.slane %v1009, 5
      %v1012 = vsel %vm206, %v1007, %v1011
      %v1014 = vshrl.u32 %v985, 16
      %v1016 = vrot.slane %v1014, 4
      %v1017 = vshll.u32 %v985, 16
      %v1019 = vrot.slane %v1017, 5
      %v1020 = vor.u32 %v1016, %v1019
      %v1021 = vrot.slane %v1020, 4
      %v1023 = vshll.u32 %v986, 16
      %v1025 = vrot.slane %v1023, 5
      %v1026 = vsel %vm206, %v1021, %v1025
      %v1028 = vshrl.u32 %v987, 16
      %v1030 = vrot.slane %v1028, 4
      %v1031 = vshll.u32 %v987, 16
      %v1033 = vrot.slane %v1031, 5
      %v1034 = vor.u32 %v1030, %v1033
      %v1035 = vrot.slane %v1034, 4
      %v1037 = vshll.u32 %v988, 16
      %v1039 = vrot.slane %v1037, 5
      %v1040 = vsel %vm206, %v1035, %v1039
      %v1042 = vshrl.u32 %v989, 16
      %v1044 = vrot.slane %v1042, 4
      %v1045 = vshll.u32 %v989, 16
      %v1047 = vrot.slane %v1045, 5
      %v1048 = vor.u32 %v1044, %v1047
      %v1049 = vrot.slane %v1048, 4
      %v1051 = vshll.u32 %v990, 16
      %v1053 = vrot.slane %v1051, 5
      %v1054 = vsel %vm206, %v1049, %v1053
      %v1056 = vshrl.u32 %v991, 16
      %v1058 = vrot.slane %v1056, 4
      %v1059 = vshll.u32 %v991, 16
      %v1061 = vrot.slane %v1059, 5
      %v1062 = vor.u32 %v1058, %v1061
      %v1063 = vrot.slane %v1062, 4
      %v1065 = vshll.u32 %v992, 16
      %v1067 = vrot.slane %v1065, 5
      %v1068 = vsel %vm206, %v1063, %v1067
      %v1070 = vshrl.u32 %v993, 16
      %v1072 = vrot.slane %v1070, 4
      %v1073 = vshll.u32 %v993, 16
      %v1075 = vrot.slane %v1073, 5
      %v1076 = vor.u32 %v1072, %v1075
      %v1077 = vrot.slane %v1076, 4
      %v1079 = vshll.u32 %v994, 16
      %v1081 = vrot.slane %v1079, 5
      %v1082 = vsel %vm206, %v1077, %v1081
      %v1084 = vshrl.u32 %v995, 16
      %v1086 = vrot.slane %v1084, 4
      %v1087 = vshll.u32 %v995, 16
      %v1089 = vrot.slane %v1087, 5
      %v1090 = vor.u32 %v1086, %v1089
      %v1091 = vrot.slane %v1090, 4
      %v1093 = vshll.u32 %v996, 16
      %v1095 = vrot.slane %v1093, 5
      %v1096 = vsel %vm206, %v1091, %v1095
      %v1098 = vshrl.u32 %v997, 16
      %v1100 = vrot.slane %v1098, 4
      %v1101 = vshll.u32 %v997, 16
      %v1103 = vrot.slane %v1101, 5
      %v1104 = vor.u32 %v1100, %v1103
      %v1105 = vrot.slane %v1104, 4
      %v1107 = vshll.u32 %v998, 16
      %v1109 = vrot.slane %v1107, 5
      %v1110 = vsel %vm206, %v1105, %v1109
      %v1111 = vld [vmem:[%s1 + $0x100] sm:$0xf]
      %v1112 = vld [vmem:[%s1 + $0x104] sm:$0xf]
      %v1113 = vld [vmem:[%s1 + $0x108] sm:$0xf]
      %v1114 = vld [vmem:[%s1 + $0x10c] sm:$0xf]
      %v1115 = vld [vmem:[%s1 + $0x110] sm:$0xf]
      %v1116 = vld [vmem:[%s1 + $0x114] sm:$0xf]
      %v1117 = vld [vmem:[%s1 + $0x118] sm:$0xf]
      %v1118 = vld [vmem:[%s1 + $0x11c] sm:$0xf]
      %v1119 = vld [vmem:[%s1 + $0x120] sm:$0xf]
      %v1120 = vld [vmem:[%s1 + $0x124] sm:$0xf]
      %v1121 = vld [vmem:[%s1 + $0x128] sm:$0xf]
      %v1122 = vld [vmem:[%s1 + $0x12c] sm:$0xf]
      %v1123 = vld [vmem:[%s1 + $0x130] sm:$0xf]
      %v1124 = vld [vmem:[%s1 + $0x134] sm:$0xf]
      %v1125 = vld [vmem:[%s1 + $0x138] sm:$0xf]
      %v1126 = vld [vmem:[%s1 + $0x13c] sm:$0xf]
      %v1127 = vunpack.c.l.b16 %v1012
      %v1128 = vunpack.c.l.b16 %v1026
      %v1129 = vunpack.c.l.b16 %v1040
      %v1130 = vunpack.c.l.b16 %v1054
      %v1131 = vunpack.c.l.b16 %v1068
      %v1132 = vunpack.c.l.b16 %v1082
      %v1133 = vunpack.c.l.b16 %v1096
      %v1134 = vunpack.c.l.b16 %v1110
      %v1135 = vpack.c.b16 %v1128, %v1127
      %v1136 = vpack.c.b16 %v1130, %v1129
      %v1137 = vpack.c.b16 %v1132, %v1131
      %v1138 = vpack.c.b16 %v1134, %v1133
      %v1159 = vunpack.c.l.b16 %v1111
      %v1160 = vunpack.c.l.b16 %v1112
      %v1161 = vunpack.c.l.b16 %v1113
      %v1162 = vunpack.c.l.b16 %v1114
      %v1163 = vunpack.c.l.b16 %v1115
      %v1164 = vunpack.c.l.b16 %v1116
      %v1165 = vunpack.c.l.b16 %v1117
      %v1166 = vunpack.c.l.b16 %v1118
      %v1167 = vunpack.c.l.b16 %v1119
      %v1168 = vunpack.c.l.b16 %v1120
      %v1169 = vunpack.c.l.b16 %v1121
      %v1170 = vunpack.c.l.b16 %v1122
      %v1171 = vunpack.c.l.b16 %v1123
      %v1172 = vunpack.c.l.b16 %v1124
      %v1173 = vunpack.c.l.b16 %v1125
      %v1174 = vunpack.c.l.b16 %v1126
      %v1175 = vpack.c.b16 %v1160, %v1159
      %v1176 = vpack.c.b16 %v1162, %v1161
      %v1177 = vpack.c.b16 %v1164, %v1163
      %v1178 = vpack.c.b16 %v1166, %v1165
      %v1179 = vpack.c.b16 %v1168, %v1167
      %v1180 = vpack.c.b16 %v1170, %v1169
      %v1181 = vpack.c.b16 %v1172, %v1171
      %v1182 = vpack.c.b16 %v1174, %v1173
      %1191 = vmatprep.subr.bf16.mxu0 0
      %1192 = vmatpush1.bf16.msra.mxu0 %v1182
      %1193 = vmatprep.subr.bf16.mxu0 0
      %1194 = vmatpush1.bf16.msra.mxu0 %v1181
      %1195 = vmatprep.subr.bf16.mxu0 0
      %1196 = vmatpush1.bf16.msra.mxu0 %v1180
      %1197 = vmatprep.subr.bf16.mxu0 0
      %1198 = vmatpush1.bf16.msra.mxu0 %v1179
      %1199 = vmatprep.subr.bf16.mxu0 0
      %1200 = vmatpush1.bf16.msra.mxu0 %v1178
      %1201 = vmatprep.subr.bf16.mxu0 0
      %1202 = vmatpush1.bf16.msra.mxu0 %v1177
      %1203 = vmatprep.subr.bf16.mxu0 0
      %1204 = vmatpush1.bf16.msra.mxu0 %v1176
      %1205 = vmatprep.subr.bf16.mxu0 0
      %1206 = vmatpush1.bf16.msra.mxu0 %v1175
      %1207 = vmatprep.subr.bf16.mxu0 0
      %1208 = vmatpush2.bf16.msra.mxu0 0
      %1209 = vmatprep.subr.bf16.mxu0 0
      %1210 = vmatpush2.bf16.msra.mxu0 0
      %1211 = vmatprep.subr.bf16.mxu0 0
      %1212 = vmatpush2.bf16.msra.mxu0 0
      %1213 = vmatprep.subr.bf16.mxu0 0
      %1214 = vmatpush2.bf16.msra.mxu0 0
      %1215 = vmatprep.subr.bf16.mxu0 0
      %1216 = vmatpush2.bf16.msra.mxu0 0
      %1217 = vmatprep.subr.bf16.mxu0 0
      %1218 = vmatpush2.bf16.msra.mxu0 0
      %1219 = vmatprep.subr.bf16.mxu0 0
      %1220 = vmatpush2.bf16.msra.mxu0 0
      %1221 = vmatprep.subr.bf16.mxu0 0
      %1222 = vmatpush2.bf16.msra.mxu0 0
      %1223 = vmatprep.mubr.bf16.mxu0 0
      %1224 = vmatmul.mubr.bf16.gmra.mxu0 %v1135
      %v1225 = vpop.f32.mrf.mxu0
      %v1226 = vadd.f32 0.0, %v1225
      %v1227 = vpop.f32.mrf.mxu0
      %v1228 = vpop.f32.mrf.mxu0
      %v1229 = vadd.f32 0.0, %v1228
      %v1230 = vpop.f32.mrf.mxu0
      %1231 = vmatprep.mubr.bf16.mxu0 0
      %1232 = vmatmul.mubr.bf16.gmra.mxu0 %v1136
      %v1233 = vpop.f32.mrf.mxu0
      %v1234 = vadd.f32 0.0, %v1233
      %v1235 = vpop.f32.mrf.mxu0
      %v1236 = vpop.f32.mrf.mxu0
      %v1237 = vadd.f32 0.0, %v1236
      %v1238 = vpop.f32.mrf.mxu0
      %1239 = vmatprep.mubr.bf16.mxu0 0
      %1240 = vmatmul.mubr.bf16.gmra.mxu0 %v1137
      %v1241 = vpop.f32.mrf.mxu0
      %v1242 = vadd.f32 0.0, %v1241
      %v1243 = vpop.f32.mrf.mxu0
      %v1244 = vpop.f32.mrf.mxu0
      %v1245 = vadd.f32 0.0, %v1244
      %v1246 = vpop.f32.mrf.mxu0
      %1247 = vmatprep.mubr.bf16.mxu0 0
      %1248 = vmatmul.mubr.bf16.gmra.mxu0 %v1138
      %v1249 = vpop.f32.mrf.mxu0
      %v1250 = vadd.f32 0.0, %v1249
      %v1251 = vpop.f32.mrf.mxu0
      %v1252 = vpop.f32.mrf.mxu0
      %v1253 = vadd.f32 0.0, %v1252
      %v1254 = vpop.f32.mrf.mxu0
      %1255 = vdwg.mxu0
      %v1256 = vadd.f32 %v975, %v1226
      %v1257 = vadd.f32 %v976, %v1229
      %v1258 = vadd.f32 %v977, %v1234
      %v1259 = vadd.f32 %v978, %v1237
      %v1260 = vadd.f32 %v979, %v1242
      %v1261 = vadd.f32 %v980, %v1245
      %v1262 = vadd.f32 %v981, %v1250
      %v1263 = vadd.f32 %v982, %v1253
      %v1264 = vld [vmem:[%s813] sm:$0xe]
      %v1265 = vld [vmem:[%s813 + $0x8] sm:$0xe]
      %v1266 = vld [vmem:[%s813 + $0x10] sm:$0xe]
      %v1267 = vld [vmem:[%s813 + $0x18] sm:$0xe]
      %v1268 = vld [vmem:[%s813 + $0x20] sm:$0xe]
      %v1269 = vld [vmem:[%s813 + $0x28] sm:$0xe]
      %v1270 = vld [vmem:[%s813 + $0x30] sm:$0xe]
      %v1271 = vld [vmem:[%s813 + $0x38] sm:$0xe]
      %v1288 = vrot.slane %v1264, 5
      %v1289 = vrot.slane %v1288, 4
      %v1290 = vrot.slane %v984, 5
      %v1291 = vsel %vm627, %v1289, %v1290
      %v1292 = vrot.slane %v1265, 5
      %v1293 = vrot.slane %v1292, 4
      %v1294 = vrot.slane %v986, 5
      %v1295 = vsel %vm627, %v1293, %v1294
      %v1296 = vrot.slane %v1266, 5
      %v1297 = vrot.slane %v1296, 4
      %v1298 = vrot.slane %v988, 5
      %v1299 = vsel %vm627, %v1297, %v1298
      %v1300 = vrot.slane %v1267, 5
      %v1301 = vrot.slane %v1300, 4
      %v1302 = vrot.slane %v990, 5
      %v1303 = vsel %vm627, %v1301, %v1302
      %v1304 = vrot.slane %v1268, 5
      %v1305 = vrot.slane %v1304, 4
      %v1306 = vrot.slane %v992, 5
      %v1307 = vsel %vm627, %v1305, %v1306
      %v1308 = vrot.slane %v1269, 5
      %v1309 = vrot.slane %v1308, 4
      %v1310 = vrot.slane %v994, 5
      %v1311 = vsel %vm627, %v1309, %v1310
      %v1312 = vrot.slane %v1270, 5
      %v1313 = vrot.slane %v1312, 4
      %v1314 = vrot.slane %v996, 5
      %v1315 = vsel %vm627, %v1313, %v1314
      %v1316 = vrot.slane %v1271, 5
      %v1317 = vrot.slane %v1316, 4
      %v1318 = vrot.slane %v998, 5
      %v1319 = vsel %vm627, %v1317, %v1318
      %v1320 = vld [vmem:[%s1 + $0x140] sm:$0xf]
      %v1321 = vld [vmem:[%s1 + $0x144] sm:$0xf]
      %v1322 = vld [vmem:[%s1 + $0x148] sm:$0xf]
      %v1323 = vld [vmem:[%s1 + $0x14c] sm:$0xf]
      %v1324 = vld [vmem:[%s1 + $0x150] sm:$0xf]
      %v1325 = vld [vmem:[%s1 + $0x154] sm:$0xf]
      %v1326 = vld [vmem:[%s1 + $0x158] sm:$0xf]
      %v1327 = vld [vmem:[%s1 + $0x15c] sm:$0xf]
      %v1328 = vld [vmem:[%s1 + $0x160] sm:$0xf]
      %v1329 = vld [vmem:[%s1 + $0x164] sm:$0xf]
      %v1330 = vld [vmem:[%s1 + $0x168] sm:$0xf]
      %v1331 = vld [vmem:[%s1 + $0x16c] sm:$0xf]
      %v1332 = vld [vmem:[%s1 + $0x170] sm:$0xf]
      %v1333 = vld [vmem:[%s1 + $0x174] sm:$0xf]
      %v1334 = vld [vmem:[%s1 + $0x178] sm:$0xf]
      %v1335 = vld [vmem:[%s1 + $0x17c] sm:$0xf]
      %v1336 = vunpack.c.l.b16 %v1291
      %v1337 = vunpack.c.l.b16 %v1295
      %v1338 = vunpack.c.l.b16 %v1299
      %v1339 = vunpack.c.l.b16 %v1303
      %v1340 = vunpack.c.l.b16 %v1307
      %v1341 = vunpack.c.l.b16 %v1311
      %v1342 = vunpack.c.l.b16 %v1315
      %v1343 = vunpack.c.l.b16 %v1319
      %v1344 = vpack.c.b16 %v1337, %v1336
      %v1345 = vpack.c.b16 %v1339, %v1338
      %v1346 = vpack.c.b16 %v1341, %v1340
      %v1347 = vpack.c.b16 %v1343, %v1342
      %v1368 = vunpack.c.l.b16 %v1320
      %v1369 = vunpack.c.l.b16 %v1321
      %v1370 = vunpack.c.l.b16 %v1322
      %v1371 = vunpack.c.l.b16 %v1323
      %v1372 = vunpack.c.l.b16 %v1324
      %v1373 = vunpack.c.l.b16 %v1325
      %v1374 = vunpack.c.l.b16 %v1326
      %v1375 = vunpack.c.l.b16 %v1327
      %v1376 = vunpack.c.l.b16 %v1328
      %v1377 = vunpack.c.l.b16 %v1329
      %v1378 = vunpack.c.l.b16 %v1330
      %v1379 = vunpack.c.l.b16 %v1331
      %v1380 = vunpack.c.l.b16 %v1332
      %v1381 = vunpack.c.l.b16 %v1333
      %v1382 = vunpack.c.l.b16 %v1334
      %v1383 = vunpack.c.l.b16 %v1335
      %v1384 = vpack.c.b16 %v1369, %v1368
      %v1385 = vpack.c.b16 %v1371, %v1370
      %v1386 = vpack.c.b16 %v1373, %v1372
      %v1387 = vpack.c.b16 %v1375, %v1374
      %v1388 = vpack.c.b16 %v1377, %v1376
      %v1389 = vpack.c.b16 %v1379, %v1378
      %v1390 = vpack.c.b16 %v1381, %v1380
      %v1391 = vpack.c.b16 %v1383, %v1382
      %1400 = vmatprep.subr.bf16.mxu0 0
      %1401 = vmatpush1.bf16.msra.mxu0 %v1391
      %1402 = vmatprep.subr.bf16.mxu0 0
      %1403 = vmatpush1.bf16.msra.mxu0 %v1390
      %1404 = vmatprep.subr.bf16.mxu0 0
      %1405 = vmatpush1.bf16.msra.mxu0 %v1389
      %1406 = vmatprep.subr.bf16.mxu0 0
      %1407 = vmatpush1.bf16.msra.mxu0 %v1388
      %1408 = vmatprep.subr.bf16.mxu0 0
      %1409 = vmatpush1.bf16.msra.mxu0 %v1387
      %1410 = vmatprep.subr.bf16.mxu0 0
      %1411 = vmatpush1.bf16.msra.mxu0 %v1386
      %1412 = vmatprep.subr.bf16.mxu0 0
      %1413 = vmatpush1.bf16.msra.mxu0 %v1385
      %1414 = vmatprep.subr.bf16.mxu0 0
      %1415 = vmatpush1.bf16.msra.mxu0 %v1384
      %1416 = vmatprep.subr.bf16.mxu0 0
      %1417 = vmatpush2.bf16.msra.mxu0 0
      %1418 = vmatprep.subr.bf16.mxu0 0
      %1419 = vmatpush2.bf16.msra.mxu0 0
      %1420 = vmatprep.subr.bf16.mxu0 0
      %1421 = vmatpush2.bf16.msra.mxu0 0
      %1422 = vmatprep.subr.bf16.mxu0 0
      %1423 = vmatpush2.bf16.msra.mxu0 0
      %1424 = vmatprep.subr.bf16.mxu0 0
      %1425 = vmatpush2.bf16.msra.mxu0 0
      %1426 = vmatprep.subr.bf16.mxu0 0
      %1427 = vmatpush2.bf16.msra.mxu0 0
      %1428 = vmatprep.subr.bf16.mxu0 0
      %1429 = vmatpush2.bf16.msra.mxu0 0
      %1430 = vmatprep.subr.bf16.mxu0 0
      %1431 = vmatpush2.bf16.msra.mxu0 0
      %1432 = vmatprep.mubr.bf16.mxu0 0
      %1433 = vmatmul.mubr.bf16.gmra.mxu0 %v1344
      %v1434 = vpop.f32.mrf.mxu0
      %v1435 = vadd.f32 0.0, %v1434
      %v1436 = vpop.f32.mrf.mxu0
      %v1437 = vpop.f32.mrf.mxu0
      %v1438 = vadd.f32 0.0, %v1437
      %v1439 = vpop.f32.mrf.mxu0
      %1440 = vmatprep.mubr.bf16.mxu0 0
      %1441 = vmatmul.mubr.bf16.gmra.mxu0 %v1345
      %v1442 = vpop.f32.mrf.mxu0
      %v1443 = vadd.f32 0.0, %v1442
      %v1444 = vpop.f32.mrf.mxu0
      %v1445 = vpop.f32.mrf.mxu0
      %v1446 = vadd.f32 0.0, %v1445
      %v1447 = vpop.f32.mrf.mxu0
      %1448 = vmatprep.mubr.bf16.mxu0 0
      %1449 = vmatmul.mubr.bf16.gmra.mxu0 %v1346
      %v1450 = vpop.f32.mrf.mxu0
      %v1451 = vadd.f32 0.0, %v1450
      %v1452 = vpop.f32.mrf.mxu0
      %v1453 = vpop.f32.mrf.mxu0
      %v1454 = vadd.f32 0.0, %v1453
      %v1455 = vpop.f32.mrf.mxu0
      %1456 = vmatprep.mubr.bf16.mxu0 0
      %1457 = vmatmul.mubr.bf16.gmra.mxu0 %v1347
      %v1458 = vpop.f32.mrf.mxu0
      %v1459 = vadd.f32 0.0, %v1458
      %v1460 = vpop.f32.mrf.mxu0
      %v1461 = vpop.f32.mrf.mxu0
      %v1462 = vadd.f32 0.0, %v1461
      %v1463 = vpop.f32.mrf.mxu0
      %1464 = vdwg.mxu0
      %v1465 = vadd.f32 %v1256, %v1435
      %v1466 = vadd.f32 %v1257, %v1438
      %v1467 = vadd.f32 %v1258, %v1443
      %v1468 = vadd.f32 %v1259, %v1446
      %v1469 = vadd.f32 %v1260, %v1451
      %v1470 = vadd.f32 %v1261, %v1454
      %v1471 = vadd.f32 %v1262, %v1459
      %v1472 = vadd.f32 %v1263, %v1462
      %s1473 = scalar_lea.vmem %s165, 16
      %v1474 = vld [vmem:[%s1473] sm:$0xf]
      %v1475 = vld [vmem:[%s1473 + $0x8] sm:$0xf]
      %v1476 = vld [vmem:[%s1473 + $0x10] sm:$0xf]
      %v1477 = vld [vmem:[%s1473 + $0x18] sm:$0xf]
      %v1478 = vld [vmem:[%s1473 + $0x20] sm:$0xf]
      %v1479 = vld [vmem:[%s1473 + $0x28] sm:$0xf]
      %v1480 = vld [vmem:[%s1473 + $0x30] sm:$0xf]
      %v1481 = vld [vmem:[%s1473 + $0x38] sm:$0xf]
      %v1482 = vld [vmem:[%s1 + $0x180] sm:$0xf]
      %v1483 = vld [vmem:[%s1 + $0x184] sm:$0xf]
      %v1484 = vld [vmem:[%s1 + $0x188] sm:$0xf]
      %v1485 = vld [vmem:[%s1 + $0x18c] sm:$0xf]
      %v1486 = vld [vmem:[%s1 + $0x190] sm:$0xf]
      %v1487 = vld [vmem:[%s1 + $0x194] sm:$0xf]
      %v1488 = vld [vmem:[%s1 + $0x198] sm:$0xf]
      %v1489 = vld [vmem:[%s1 + $0x19c] sm:$0xf]
      %v1490 = vld [vmem:[%s1 + $0x1a0] sm:$0xf]
      %v1491 = vld [vmem:[%s1 + $0x1a4] sm:$0xf]
      %v1492 = vld [vmem:[%s1 + $0x1a8] sm:$0xf]
      %v1493 = vld [vmem:[%s1 + $0x1ac] sm:$0xf]
      %v1494 = vld [vmem:[%s1 + $0x1b0] sm:$0xf]
      %v1495 = vld [vmem:[%s1 + $0x1b4] sm:$0xf]
      %v1496 = vld [vmem:[%s1 + $0x1b8] sm:$0xf]
      %v1497 = vld [vmem:[%s1 + $0x1bc] sm:$0xf]
      %v1506 = vunpack.c.l.b16 %v1474
      %v1507 = vunpack.c.l.b16 %v1475
      %v1508 = vunpack.c.l.b16 %v1476
      %v1509 = vunpack.c.l.b16 %v1477
      %v1510 = vunpack.c.l.b16 %v1478
      %v1511 = vunpack.c.l.b16 %v1479
      %v1512 = vunpack.c.l.b16 %v1480
      %v1513 = vunpack.c.l.b16 %v1481
      %v1514 = vpack.c.b16 %v1507, %v1506
      %v1515 = vpack.c.b16 %v1509, %v1508
      %v1516 = vpack.c.b16 %v1511, %v1510
      %v1517 = vpack.c.b16 %v1513, %v1512
      %v1538 = vunpack.c.l.b16 %v1482
      %v1539 = vunpack.c.l.b16 %v1483
      %v1540 = vunpack.c.l.b16 %v1484
      %v1541 = vunpack.c.l.b16 %v1485
      %v1542 = vunpack.c.l.b16 %v1486
      %v1543 = vunpack.c.l.b16 %v1487
      %v1544 = vunpack.c.l.b16 %v1488
      %v1545 = vunpack.c.l.b16 %v1489
      %v1546 = vunpack.c.l.b16 %v1490
      %v1547 = vunpack.c.l.b16 %v1491
      %v1548 = vunpack.c.l.b16 %v1492
      %v1549 = vunpack.c.l.b16 %v1493
      %v1550 = vunpack.c.l.b16 %v1494
      %v1551 = vunpack.c.l.b16 %v1495
      %v1552 = vunpack.c.l.b16 %v1496
      %v1553 = vunpack.c.l.b16 %v1497
      %v1554 = vpack.c.b16 %v1539, %v1538
      %v1555 = vpack.c.b16 %v1541, %v1540
      %v1556 = vpack.c.b16 %v1543, %v1542
      %v1557 = vpack.c.b16 %v1545, %v1544
      %v1558 = vpack.c.b16 %v1547, %v1546
      %v1559 = vpack.c.b16 %v1549, %v1548
      %v1560 = vpack.c.b16 %v1551, %v1550
      %v1561 = vpack.c.b16 %v1553, %v1552
      %1570 = vmatprep.subr.bf16.mxu0 0
      %1571 = vmatpush1.bf16.msra.mxu0 %v1561
      %1572 = vmatprep.subr.bf16.mxu0 0
      %1573 = vmatpush1.bf16.msra.mxu0 %v1560
      %1574 = vmatprep.subr.bf16.mxu0 0
      %1575 = vmatpush1.bf16.msra.mxu0 %v1559
      %1576 = vmatprep.subr.bf16.mxu0 0
      %1577 = vmatpush1.bf16.msra.mxu0 %v1558
      %1578 = vmatprep.subr.bf16.mxu0 0
      %1579 = vmatpush1.bf16.msra.mxu0 %v1557
      %1580 = vmatprep.subr.bf16.mxu0 0
      %1581 = vmatpush1.bf16.msra.mxu0 %v1556
      %1582 = vmatprep.subr.bf16.mxu0 0
      %1583 = vmatpush1.bf16.msra.mxu0 %v1555
      %1584 = vmatprep.subr.bf16.mxu0 0
      %1585 = vmatpush1.bf16.msra.mxu0 %v1554
      %1586 = vmatprep.subr.bf16.mxu0 0
      %1587 = vmatpush2.bf16.msra.mxu0 0
      %1588 = vmatprep.subr.bf16.mxu0 0
      %1589 = vmatpush2.bf16.msra.mxu0 0
      %1590 = vmatprep.subr.bf16.mxu0 0
      %1591 = vmatpush2.bf16.msra.mxu0 0
      %1592 = vmatprep.subr.bf16.mxu0 0
      %1593 = vmatpush2.bf16.msra.mxu0 0
      %1594 = vmatprep.subr.bf16.mxu0 0
      %1595 = vmatpush2.bf16.msra.mxu0 0
      %1596 = vmatprep.subr.bf16.mxu0 0
      %1597 = vmatpush2.bf16.msra.mxu0 0
      %1598 = vmatprep.subr.bf16.mxu0 0
      %1599 = vmatpush2.bf16.msra.mxu0 0
      %1600 = vmatprep.subr.bf16.mxu0 0
      %1601 = vmatpush2.bf16.msra.mxu0 0
      %1602 = vmatprep.mubr.bf16.mxu0 0
      %1603 = vmatmul.mubr.bf16.gmra.mxu0 %v1514
      %v1604 = vpop.f32.mrf.mxu0
      %v1605 = vadd.f32 0.0, %v1604
      %v1606 = vpop.f32.mrf.mxu0
      %v1607 = vpop.f32.mrf.mxu0
      %v1608 = vadd.f32 0.0, %v1607
      %v1609 = vpop.f32.mrf.mxu0
      %1610 = vmatprep.mubr.bf16.mxu0 0
      %1611 = vmatmul.mubr.bf16.gmra.mxu0 %v1515
      %v1612 = vpop.f32.mrf.mxu0
      %v1613 = vadd.f32 0.0, %v1612
      %v1614 = vpop.f32.mrf.mxu0
      %v1615 = vpop.f32.mrf.mxu0
      %v1616 = vadd.f32 0.0, %v1615
      %v1617 = vpop.f32.mrf.mxu0
      %1618 = vmatprep.mubr.bf16.mxu0 0
      %1619 = vmatmul.mubr.bf16.gmra.mxu0 %v1516
      %v1620 = vpop.f32.mrf.mxu0
      %v1621 = vadd.f32 0.0, %v1620
      %v1622 = vpop.f32.mrf.mxu0
      %v1623 = vpop.f32.mrf.mxu0
      %v1624 = vadd.f32 0.0, %v1623
      %v1625 = vpop.f32.mrf.mxu0
      %1626 = vmatprep.mubr.bf16.mxu0 0
      %1627 = vmatmul.mubr.bf16.gmra.mxu0 %v1517
      %v1628 = vpop.f32.mrf.mxu0
      %v1629 = vadd.f32 0.0, %v1628
      %v1630 = vpop.f32.mrf.mxu0
      %v1631 = vpop.f32.mrf.mxu0
      %v1632 = vadd.f32 0.0, %v1631
      %v1633 = vpop.f32.mrf.mxu0
      %1634 = vdwg.mxu0
      %v1635 = vadd.f32 %v1465, %v1605
      %v1636 = vadd.f32 %v1466, %v1608
      %v1637 = vadd.f32 %v1467, %v1613
      %v1638 = vadd.f32 %v1468, %v1616
      %v1639 = vadd.f32 %v1469, %v1621
      %v1640 = vadd.f32 %v1470, %v1624
      %v1641 = vadd.f32 %v1471, %v1629
      %v1642 = vadd.f32 %v1472, %v1632
      %v1643 = vld [vmem:[%s1473] sm:$0xf]
      %v1644 = vld [vmem:[%s1473 + $0x4] sm:$0x1]
      %v1645 = vld [vmem:[%s1473 + $0x8] sm:$0xf]
      %v1646 = vld [vmem:[%s1473 + $0xc] sm:$0x1]
      %v1647 = vld [vmem:[%s1473 + $0x10] sm:$0xf]
      %v1648 = vld [vmem:[%s1473 + $0x14] sm:$0x1]
      %v1649 = vld [vmem:[%s1473 + $0x18] sm:$0xf]
      %v1650 = vld [vmem:[%s1473 + $0x1c] sm:$0x1]
      %v1651 = vld [vmem:[%s1473 + $0x20] sm:$0xf]
      %v1652 = vld [vmem:[%s1473 + $0x24] sm:$0x1]
      %v1653 = vld [vmem:[%s1473 + $0x28] sm:$0xf]
      %v1654 = vld [vmem:[%s1473 + $0x2c] sm:$0x1]
      %v1655 = vld [vmem:[%s1473 + $0x30] sm:$0xf]
      %v1656 = vld [vmem:[%s1473 + $0x34] sm:$0x1]
      %v1657 = vld [vmem:[%s1473 + $0x38] sm:$0xf]
      %v1658 = vld [vmem:[%s1473 + $0x3c] sm:$0x1]
      %v1660 = vshrl.u32 %v1643, 16
      %v1662 = vrot.slane %v1660, 4
      %v1663 = vshll.u32 %v1643, 16
      %v1665 = vrot.slane %v1663, 5
      %v1666 = vor.u32 %v1662, %v1665
      %v1667 = vrot.slane %v1666, 4
      %v1669 = vshll.u32 %v1644, 16
      %v1671 = vrot.slane %v1669, 5
      %v1672 = vsel %vm206, %v1667, %v1671
      %v1674 = vshrl.u32 %v1645, 16
      %v1676 = vrot.slane %v1674, 4
      %v1677 = vshll.u32 %v1645, 16
      %v1679 = vrot.slane %v1677, 5
      %v1680 = vor.u32 %v1676, %v1679
      %v1681 = vrot.slane %v1680, 4
      %v1683 = vshll.u32 %v1646, 16
      %v1685 = vrot.slane %v1683, 5
      %v1686 = vsel %vm206, %v1681, %v1685
      %v1688 = vshrl.u32 %v1647, 16
      %v1690 = vrot.slane %v1688, 4
      %v1691 = vshll.u32 %v1647, 16
      %v1693 = vrot.slane %v1691, 5
      %v1694 = vor.u32 %v1690, %v1693
      %v1695 = vrot.slane %v1694, 4
      %v1697 = vshll.u32 %v1648, 16
      %v1699 = vrot.slane %v1697, 5
      %v1700 = vsel %vm206, %v1695, %v1699
      %v1702 = vshrl.u32 %v1649, 16
      %v1704 = vrot.slane %v1702, 4
      %v1705 = vshll.u32 %v1649, 16
      %v1707 = vrot.slane %v1705, 5
      %v1708 = vor.u32 %v1704, %v1707
      %v1709 = vrot.slane %v1708, 4
      %v1711 = vshll.u32 %v1650, 16
      %v1713 = vrot.slane %v1711, 5
      %v1714 = vsel %vm206, %v1709, %v1713
      %v1716 = vshrl.u32 %v1651, 16
      %v1718 = vrot.slane %v1716, 4
      %v1719 = vshll.u32 %v1651, 16
      %v1721 = vrot.slane %v1719, 5
      %v1722 = vor.u32 %v1718, %v1721
      %v1723 = vrot.slane %v1722, 4
      %v1725 = vshll.u32 %v1652, 16
      %v1727 = vrot.slane %v1725, 5
      %v1728 = vsel %vm206, %v1723, %v1727
      %v1730 = vshrl.u32 %v1653, 16
      %v1732 = vrot.slane %v1730, 4
      %v1733 = vshll.u32 %v1653, 16
      %v1735 = vrot.slane %v1733, 5
      %v1736 = vor.u32 %v1732, %v1735
      %v1737 = vrot.slane %v1736, 4
      %v1739 = vshll.u32 %v1654, 16
      %v1741 = vrot.slane %v1739, 5
      %v1742 = vsel %vm206, %v1737, %v1741
      %v1744 = vshrl.u32 %v1655, 16
      %v1746 = vrot.slane %v1744, 4
      %v1747 = vshll.u32 %v1655, 16
      %v1749 = vrot.slane %v1747, 5
      %v1750 = vor.u32 %v1746, %v1749
      %v1751 = vrot.slane %v1750, 4
      %v1753 = vshll.u32 %v1656, 16
      %v1755 = vrot.slane %v1753, 5
      %v1756 = vsel %vm206, %v1751, %v1755
      %v1758 = vshrl.u32 %v1657, 16
      %v1760 = vrot.slane %v1758, 4
      %v1761 = vshll.u32 %v1657, 16
      %v1763 = vrot.slane %v1761, 5
      %v1764 = vor.u32 %v1760, %v1763
      %v1765 = vrot.slane %v1764, 4
      %v1767 = vshll.u32 %v1658, 16
      %v1769 = vrot.slane %v1767, 5
      %v1770 = vsel %vm206, %v1765, %v1769
      %v1771 = vld [vmem:[%s1 + $0x1c0] sm:$0xf]
      %v1772 = vld [vmem:[%s1 + $0x1c4] sm:$0xf]
      %v1773 = vld [vmem:[%s1 + $0x1c8] sm:$0xf]
      %v1774 = vld [vmem:[%s1 + $0x1cc] sm:$0xf]
      %v1775 = vld [vmem:[%s1 + $0x1d0] sm:$0xf]
      %v1776 = vld [vmem:[%s1 + $0x1d4] sm:$0xf]
      %v1777 = vld [vmem:[%s1 + $0x1d8] sm:$0xf]
      %v1778 = vld [vmem:[%s1 + $0x1dc] sm:$0xf]
      %v1779 = vld [vmem:[%s1 + $0x1e0] sm:$0xf]
      %v1780 = vld [vmem:[%s1 + $0x1e4] sm:$0xf]
      %v1781 = vld [vmem:[%s1 + $0x1e8] sm:$0xf]
      %v1782 = vld [vmem:[%s1 + $0x1ec] sm:$0xf]
      %v1783 = vld [vmem:[%s1 + $0x1f0] sm:$0xf]
      %v1784 = vld [vmem:[%s1 + $0x1f4] sm:$0xf]
      %v1785 = vld [vmem:[%s1 + $0x1f8] sm:$0xf]
      %v1786 = vld [vmem:[%s1 + $0x1fc] sm:$0xf]
      %v1787 = vunpack.c.l.b16 %v1672
      %v1788 = vunpack.c.l.b16 %v1686
      %v1789 = vunpack.c.l.b16 %v1700
      %v1790 = vunpack.c.l.b16 %v1714
      %v1791 = vunpack.c.l.b16 %v1728
      %v1792 = vunpack.c.l.b16 %v1742
      %v1793 = vunpack.c.l.b16 %v1756
      %v1794 = vunpack.c.l.b16 %v1770
      %v1795 = vpack.c.b16 %v1788, %v1787
      %v1796 = vpack.c.b16 %v1790, %v1789
      %v1797 = vpack.c.b16 %v1792, %v1791
      %v1798 = vpack.c.b16 %v1794, %v1793
      %v1819 = vunpack.c.l.b16 %v1771
      %v1820 = vunpack.c.l.b16 %v1772
      %v1821 = vunpack.c.l.b16 %v1773
      %v1822 = vunpack.c.l.b16 %v1774
      %v1823 = vunpack.c.l.b16 %v1775
      %v1824 = vunpack.c.l.b16 %v1776
      %v1825 = vunpack.c.l.b16 %v1777
      %v1826 = vunpack.c.l.b16 %v1778
      %v1827 = vunpack.c.l.b16 %v1779
      %v1828 = vunpack.c.l.b16 %v1780
      %v1829 = vunpack.c.l.b16 %v1781
      %v1830 = vunpack.c.l.b16 %v1782
      %v1831 = vunpack.c.l.b16 %v1783
      %v1832 = vunpack.c.l.b16 %v1784
      %v1833 = vunpack.c.l.b16 %v1785
      %v1834 = vunpack.c.l.b16 %v1786
      %v1835 = vpack.c.b16 %v1820, %v1819
      %v1836 = vpack.c.b16 %v1822, %v1821
      %v1837 = vpack.c.b16 %v1824, %v1823
      %v1838 = vpack.c.b16 %v1826, %v1825
      %v1839 = vpack.c.b16 %v1828, %v1827
      %v1840 = vpack.c.b16 %v1830, %v1829
      %v1841 = vpack.c.b16 %v1832, %v1831
      %v1842 = vpack.c.b16 %v1834, %v1833
      %1851 = vmatprep.subr.bf16.mxu0 0
      %1852 = vmatpush1.bf16.msra.mxu0 %v1842
      %1853 = vmatprep.subr.bf16.mxu0 0
      %1854 = vmatpush1.bf16.msra.mxu0 %v1841
      %1855 = vmatprep.subr.bf16.mxu0 0
      %1856 = vmatpush1.bf16.msra.mxu0 %v1840
      %1857 = vmatprep.subr.bf16.mxu0 0
      %1858 = vmatpush1.bf16.msra.mxu0 %v1839
      %1859 = vmatprep.subr.bf16.mxu0 0
      %1860 = vmatpush1.bf16.msra.mxu0 %v1838
      %1861 = vmatprep.subr.bf16.mxu0 0
      %1862 = vmatpush1.bf16.msra.mxu0 %v1837
      %1863 = vmatprep.subr.bf16.mxu0 0
      %1864 = vmatpush1.bf16.msra.mxu0 %v1836
      %1865 = vmatprep.subr.bf16.mxu0 0
      %1866 = vmatpush1.bf16.msra.mxu0 %v1835
      %1867 = vmatprep.subr.bf16.mxu0 0
      %1868 = vmatpush2.bf16.msra.mxu0 0
      %1869 = vmatprep.subr.bf16.mxu0 0
      %1870 = vmatpush2.bf16.msra.mxu0 0
      %1871 = vmatprep.subr.bf16.mxu0 0
      %1872 = vmatpush2.bf16.msra.mxu0 0
      %1873 = vmatprep.subr.bf16.mxu0 0
      %1874 = vmatpush2.bf16.msra.mxu0 0
      %1875 = vmatprep.subr.bf16.mxu0 0
      %1876 = vmatpush2.bf16.msra.mxu0 0
      %1877 = vmatprep.subr.bf16.mxu0 0
      %1878 = vmatpush2.bf16.msra.mxu0 0
      %1879 = vmatprep.subr.bf16.mxu0 0
      %1880 = vmatpush2.bf16.msra.mxu0 0
      %1881 = vmatprep.subr.bf16.mxu0 0
      %1882 = vmatpush2.bf16.msra.mxu0 0
      %1883 = vmatprep.mubr.bf16.mxu0 0
      %1884 = vmatmul.mubr.bf16.gmra.mxu0 %v1795
      %v1885 = vpop.f32.mrf.mxu0
      %v1886 = vadd.f32 0.0, %v1885
      %v1887 = vpop.f32.mrf.mxu0
      %v1888 = vpop.f32.mrf.mxu0
      %v1889 = vadd.f32 0.0, %v1888
      %v1890 = vpop.f32.mrf.mxu0
      %1891 = vmatprep.mubr.bf16.mxu0 0
      %1892 = vmatmul.mubr.bf16.gmra.mxu0 %v1796
      %v1893 = vpop.f32.mrf.mxu0
      %v1894 = vadd.f32 0.0, %v1893
      %v1895 = vpop.f32.mrf.mxu0
      %v1896 = vpop.f32.mrf.mxu0
      %v1897 = vadd.f32 0.0, %v1896
      %v1898 = vpop.f32.mrf.mxu0
      %1899 = vmatprep.mubr.bf16.mxu0 0
      %1900 = vmatmul.mubr.bf16.gmra.mxu0 %v1797
      %v1901 = vpop.f32.mrf.mxu0
      %v1902 = vadd.f32 0.0, %v1901
      %v1903 = vpop.f32.mrf.mxu0
      %v1904 = vpop.f32.mrf.mxu0
      %v1905 = vadd.f32 0.0, %v1904
      %v1906 = vpop.f32.mrf.mxu0
      %1907 = vmatprep.mubr.bf16.mxu0 0
      %1908 = vmatmul.mubr.bf16.gmra.mxu0 %v1798
      %v1909 = vpop.f32.mrf.mxu0
      %v1910 = vadd.f32 0.0, %v1909
      %v1911 = vpop.f32.mrf.mxu0
      %v1912 = vpop.f32.mrf.mxu0
      %v1913 = vadd.f32 0.0, %v1912
      %v1914 = vpop.f32.mrf.mxu0
      %1915 = vdwg.mxu0
      %v1916 = vadd.f32 %v1635, %v1886
      %v1917 = vadd.f32 %v1636, %v1889
      %v1918 = vadd.f32 %v1637, %v1894
      %v1919 = vadd.f32 %v1638, %v1897
      %v1920 = vadd.f32 %v1639, %v1902
      %v1921 = vadd.f32 %v1640, %v1905
      %v1922 = vadd.f32 %v1641, %v1910
      %v1923 = vadd.f32 %v1642, %v1913
      %v1924 = vld [vmem:[%s1473] sm:$0xe]
      %v1925 = vld [vmem:[%s1473 + $0x8] sm:$0xe]
      %v1926 = vld [vmem:[%s1473 + $0x10] sm:$0xe]
      %v1927 = vld [vmem:[%s1473 + $0x18] sm:$0xe]
      %v1928 = vld [vmem:[%s1473 + $0x20] sm:$0xe]
      %v1929 = vld [vmem:[%s1473 + $0x28] sm:$0xe]
      %v1930 = vld [vmem:[%s1473 + $0x30] sm:$0xe]
      %v1931 = vld [vmem:[%s1473 + $0x38] sm:$0xe]
      %v1948 = vrot.slane %v1924, 5
      %v1949 = vrot.slane %v1948, 4
      %v1950 = vrot.slane %v1644, 5
      %v1951 = vsel %vm627, %v1949, %v1950
      %v1952 = vrot.slane %v1925, 5
      %v1953 = vrot.slane %v1952, 4
      %v1954 = vrot.slane %v1646, 5
      %v1955 = vsel %vm627, %v1953, %v1954
      %v1956 = vrot.slane %v1926, 5
      %v1957 = vrot.slane %v1956, 4
      %v1958 = vrot.slane %v1648, 5
      %v1959 = vsel %vm627, %v1957, %v1958
      %v1960 = vrot.slane %v1927, 5
      %v1961 = vrot.slane %v1960, 4
      %v1962 = vrot.slane %v1650, 5
      %v1963 = vsel %vm627, %v1961, %v1962
      %v1964 = vrot.slane %v1928, 5
      %v1965 = vrot.slane %v1964, 4
      %v1966 = vrot.slane %v1652, 5
      %v1967 = vsel %vm627, %v1965, %v1966
      %v1968 = vrot.slane %v1929, 5
      %v1969 = vrot.slane %v1968, 4
      %v1970 = vrot.slane %v1654, 5
      %v1971 = vsel %vm627, %v1969, %v1970
      %v1972 = vrot.slane %v1930, 5
      %v1973 = vrot.slane %v1972, 4
      %v1974 = vrot.slane %v1656, 5
      %v1975 = vsel %vm627, %v1973, %v1974
      %v1976 = vrot.slane %v1931, 5
      %v1977 = vrot.slane %v1976, 4
      %v1978 = vrot.slane %v1658, 5
      %v1979 = vsel %vm627, %v1977, %v1978
      %v1980 = vld [vmem:[%s1 + $0x200] sm:$0xf]
      %v1981 = vld [vmem:[%s1 + $0x204] sm:$0xf]
      %v1982 = vld [vmem:[%s1 + $0x208] sm:$0xf]
      %v1983 = vld [vmem:[%s1 + $0x20c] sm:$0xf]
      %v1984 = vld [vmem:[%s1 + $0x210] sm:$0xf]
      %v1985 = vld [vmem:[%s1 + $0x214] sm:$0xf]
      %v1986 = vld [vmem:[%s1 + $0x218] sm:$0xf]
      %v1987 = vld [vmem:[%s1 + $0x21c] sm:$0xf]
      %v1988 = vld [vmem:[%s1 + $0x220] sm:$0xf]
      %v1989 = vld [vmem:[%s1 + $0x224] sm:$0xf]
      %v1990 = vld [vmem:[%s1 + $0x228] sm:$0xf]
      %v1991 = vld [vmem:[%s1 + $0x22c] sm:$0xf]
      %v1992 = vld [vmem:[%s1 + $0x230] sm:$0xf]
      %v1993 = vld [vmem:[%s1 + $0x234] sm:$0xf]
      %v1994 = vld [vmem:[%s1 + $0x238] sm:$0xf]
      %v1995 = vld [vmem:[%s1 + $0x23c] sm:$0xf]
      %v1996 = vunpack.c.l.b16 %v1951
      %v1997 = vunpack.c.l.b16 %v1955
      %v1998 = vunpack.c.l.b16 %v1959
      %v1999 = vunpack.c.l.b16 %v1963
      %v2000 = vunpack.c.l.b16 %v1967
      %v2001 = vunpack.c.l.b16 %v1971
      %v2002 = vunpack.c.l.b16 %v1975
      %v2003 = vunpack.c.l.b16 %v1979
      %v2004 = vpack.c.b16 %v1997, %v1996
      %v2005 = vpack.c.b16 %v1999, %v1998
      %v2006 = vpack.c.b16 %v2001, %v2000
      %v2007 = vpack.c.b16 %v2003, %v2002
      %v2028 = vunpack.c.l.b16 %v1980
      %v2029 = vunpack.c.l.b16 %v1981
      %v2030 = vunpack.c.l.b16 %v1982
      %v2031 = vunpack.c.l.b16 %v1983
      %v2032 = vunpack.c.l.b16 %v1984
      %v2033 = vunpack.c.l.b16 %v1985
      %v2034 = vunpack.c.l.b16 %v1986
      %v2035 = vunpack.c.l.b16 %v1987
      %v2036 = vunpack.c.l.b16 %v1988
      %v2037 = vunpack.c.l.b16 %v1989
      %v2038 = vunpack.c.l.b16 %v1990
      %v2039 = vunpack.c.l.b16 %v1991
      %v2040 = vunpack.c.l.b16 %v1992
      %v2041 = vunpack.c.l.b16 %v1993
      %v2042 = vunpack.c.l.b16 %v1994
      %v2043 = vunpack.c.l.b16 %v1995
      %v2044 = vpack.c.b16 %v2029, %v2028
      %v2045 = vpack.c.b16 %v2031, %v2030
      %v2046 = vpack.c.b16 %v2033, %v2032
      %v2047 = vpack.c.b16 %v2035, %v2034
      %v2048 = vpack.c.b16 %v2037, %v2036
      %v2049 = vpack.c.b16 %v2039, %v2038
      %v2050 = vpack.c.b16 %v2041, %v2040
      %v2051 = vpack.c.b16 %v2043, %v2042
      %2060 = vmatprep.subr.bf16.mxu0 0
      %2061 = vmatpush1.bf16.msra.mxu0 %v2051
      %2062 = vmatprep.subr.bf16.mxu0 0
      %2063 = vmatpush1.bf16.msra.mxu0 %v2050
      %2064 = vmatprep.subr.bf16.mxu0 0
      %2065 = vmatpush1.bf16.msra.mxu0 %v2049
      %2066 = vmatprep.subr.bf16.mxu0 0
      %2067 = vmatpush1.bf16.msra.mxu0 %v2048
      %2068 = vmatprep.subr.bf16.mxu0 0
      %2069 = vmatpush1.bf16.msra.mxu0 %v2047
      %2070 = vmatprep.subr.bf16.mxu0 0
      %2071 = vmatpush1.bf16.msra.mxu0 %v2046
      %2072 = vmatprep.subr.bf16.mxu0 0
      %2073 = vmatpush1.bf16.msra.mxu0 %v2045
      %2074 = vmatprep.subr.bf16.mxu0 0
      %2075 = vmatpush1.bf16.msra.mxu0 %v2044
      %2076 = vmatprep.subr.bf16.mxu0 0
      %2077 = vmatpush2.bf16.msra.mxu0 0
      %2078 = vmatprep.subr.bf16.mxu0 0
      %2079 = vmatpush2.bf16.msra.mxu0 0
      %2080 = vmatprep.subr.bf16.mxu0 0
      %2081 = vmatpush2.bf16.msra.mxu0 0
      %2082 = vmatprep.subr.bf16.mxu0 0
      %2083 = vmatpush2.bf16.msra.mxu0 0
      %2084 = vmatprep.subr.bf16.mxu0 0
      %2085 = vmatpush2.bf16.msra.mxu0 0
      %2086 = vmatprep.subr.bf16.mxu0 0
      %2087 = vmatpush2.bf16.msra.mxu0 0
      %2088 = vmatprep.subr.bf16.mxu0 0
      %2089 = vmatpush2.bf16.msra.mxu0 0
      %2090 = vmatprep.subr.bf16.mxu0 0
      %2091 = vmatpush2.bf16.msra.mxu0 0
      %2092 = vmatprep.mubr.bf16.mxu0 0
      %2093 = vmatmul.mubr.bf16.gmra.mxu0 %v2004
      %v2094 = vpop.f32.mrf.mxu0
      %v2095 = vadd.f32 0.0, %v2094
      %v2096 = vpop.f32.mrf.mxu0
      %v2097 = vpop.f32.mrf.mxu0
      %v2098 = vadd.f32 0.0, %v2097
      %v2099 = vpop.f32.mrf.mxu0
      %2100 = vmatprep.mubr.bf16.mxu0 0
      %2101 = vmatmul.mubr.bf16.gmra.mxu0 %v2005
      %v2102 = vpop.f32.mrf.mxu0
      %v2103 = vadd.f32 0.0, %v2102
      %v2104 = vpop.f32.mrf.mxu0
      %v2105 = vpop.f32.mrf.mxu0
      %v2106 = vadd.f32 0.0, %v2105
      %v2107 = vpop.f32.mrf.mxu0
      %2108 = vmatprep.mubr.bf16.mxu0 0
      %2109 = vmatmul.mubr.bf16.gmra.mxu0 %v2006
      %v2110 = vpop.f32.mrf.mxu0
      %v2111 = vadd.f32 0.0, %v2110
      %v2112 = vpop.f32.mrf.mxu0
      %v2113 = vpop.f32.mrf.mxu0
      %v2114 = vadd.f32 0.0, %v2113
      %v2115 = vpop.f32.mrf.mxu0
      %2116 = vmatprep.mubr.bf16.mxu0 0
      %2117 = vmatmul.mubr.bf16.gmra.mxu0 %v2007
      %v2118 = vpop.f32.mrf.mxu0
      %v2119 = vadd.f32 0.0, %v2118
      %v2120 = vpop.f32.mrf.mxu0
      %v2121 = vpop.f32.mrf.mxu0
      %v2122 = vadd.f32 0.0, %v2121
      %v2123 = vpop.f32.mrf.mxu0
      %2124 = vdwg.mxu0
      %v2125 = vadd.f32 %v1916, %v2095
      %v2126 = vadd.f32 %v1917, %v2098
      %v2127 = vadd.f32 %v1918, %v2103
      %v2128 = vadd.f32 %v1919, %v2106
      %v2129 = vadd.f32 %v1920, %v2111
      %v2130 = vadd.f32 %v1921, %v2114
      %v2131 = vadd.f32 %v1922, %v2119
      %v2132 = vadd.f32 %v1923, %v2122
      %v2133 = vld [vmem:[%s2] sm:$0x1]
      %v2135 = vlaneseq
      %v2136 = vshrl.u32 %v2135, 7
      %v2137 = vsub.s32 0, %v2136
      %v2138 = vrot.slane %v2133, %v2137
      %v2140 = vadd.f32 %v2125, %v2138
      %v2141 = vadd.f32 %v2126, %v2138
      %v2142 = vadd.f32 %v2127, %v2138
      %v2143 = vadd.f32 %v2128, %v2138
      %v2144 = vadd.f32 %v2129, %v2138
      %v2145 = vadd.f32 %v2130, %v2138
      %v2146 = vadd.f32 %v2131, %v2138
      %v2147 = vadd.f32 %v2132, %v2138
      %vm2148 = vcmp.ge.f32.partialorder %v2140, 0.0
      %vm2149 = vcmp.ge.f32.partialorder %v2141, 0.0
      %vm2150 = vcmp.ge.f32.partialorder %v2142, 0.0
      %vm2151 = vcmp.ge.f32.partialorder %v2143, 0.0
      %vm2152 = vcmp.ge.f32.partialorder %v2144, 0.0
      %vm2153 = vcmp.ge.f32.partialorder %v2145, 0.0
      %vm2154 = vcmp.ge.f32.partialorder %v2146, 0.0
      %vm2155 = vcmp.ge.f32.partialorder %v2147, 0.0
      %v2156 = vmul.f32 %v2140, 0.2
      %v2157 = vmul.f32 %v2141, 0.2
      %v2158 = vmul.f32 %v2142, 0.2
      %v2159 = vmul.f32 %v2143, 0.2
      %v2160 = vmul.f32 %v2144, 0.2
      %v2161 = vmul.f32 %v2145, 0.2
      %v2162 = vmul.f32 %v2146, 0.2
      %v2163 = vmul.f32 %v2147, 0.2
      %v2164 = vsel %vm2148, %v2140, %v2156
      %v2165 = vsel %vm2149, %v2141, %v2157
      %v2166 = vsel %vm2150, %v2142, %v2158
      %v2167 = vsel %vm2151, %v2143, %v2159
      %v2168 = vsel %vm2152, %v2144, %v2160
      %v2169 = vsel %vm2153, %v2145, %v2161
      %v2170 = vsel %vm2154, %v2146, %v2162
      %v2171 = vsel %vm2155, %v2147, %v2163
      %v2172 = vmul.f32 %v2164, 1.4142135
      %v2173 = vmul.f32 %v2165, 1.4142135
      %v2174 = vmul.f32 %v2166, 1.4142135
      %v2175 = vmul.f32 %v2167, 1.4142135
      %v2176 = vmul.f32 %v2168, 1.4142135
      %v2177 = vmul.f32 %v2169, 1.4142135
      %v2178 = vmul.f32 %v2170, 1.4142135
      %v2179 = vmul.f32 %v2171, 1.4142135
      %2180 = vst [vmem:[%s170] sm:$0xff] %v2172
      %2181 = vst [vmem:[%s170 + $0x8] sm:$0xff] %v2173
      %2182 = vst [vmem:[%s170 + $0x10] sm:$0xff] %v2174
      %2183 = vst [vmem:[%s170 + $0x18] sm:$0xff] %v2175
      %2184 = vst [vmem:[%s170 + $0x20] sm:$0xff] %v2176
      %2185 = vst [vmem:[%s170 + $0x28] sm:$0xff] %v2177
      %2186 = vst [vmem:[%s170 + $0x30] sm:$0xff] %v2178
      %2187 = vst [vmem:[%s170 + $0x38] sm:$0xff] %v2179
      %p2188 = scmp.lt.s32.totalorder %s14, 7
      %s2189 = scalar_select %p2188, %s14, 7
      %s2190 = smul.addr %s2189, 8
      %s2191 = smul.addr %s2190, 8
      %s2192 = scalar_lea.vmem %s3, %s2191
      // Predicated region
      $region33: #{_lambda_.4} parent=31 // pred_check
        %p2193 = pneg %p100
      $region34: #{_lambda_.4} parent=31 // pred_check_branch
        %2195 = sbr.rel (%p2193) target = $region36
      $region35: #{_lambda_.4} parent=31 // pred_region
        _
      $region36: #{_lambda_.4} parent=31 // pred_fallthru
        _
    $region32: #{_lambda_.4} parent=5 // pred_fallthru
      _
    %p2196 = scmp.le.s32.totalorder 2, %s9
    // Predicated region
    $region37: #{_lambda_.4} parent=5 // pred_check
      %p2197 = pneg %p2196
    $region38: #{_lambda_.4} parent=5 // pred_check_branch
      %2199 = sbr.rel (%p2197) target = $region40
    $region39: #{_lambda_.4} parent=5 // pred_region
      %s2200 = ssub.s32 %s9, 2
      // Predicated region
      $region41: #{_lambda_.4} parent=39 // pred_check
        %p2201 = pneg %p106
      $region42: #{_lambda_.4} parent=39 // pred_check_branch
        %2203 = sbr.rel (%p2201) target = $region44
      $region43: #{_lambda_.4} parent=39 // pred_region
        %p2204 = scmp.lt.s32.totalorder %s15, 7
        %s2205 = scalar_select %p2204, %s15, 7
        %s2206 = smul.addr %s2205, 8
        %s2207 = smul.addr %s2206, 8
        %s2208 = scalar_lea.vmem %s3, %s2207
      $region44: #{_lambda_.4} parent=39 // pred_fallthru
        _
    $region40: #{_lambda_.4} parent=5 // pred_fallthru
      _
  $region6: #{_lambda_.4} parent=0 // loop_footer
    %s13 = sadd.s32 1, %s9
  $region7: #{_lambda_.4} parent=0 // loop_footer_branch
    %8 = sbr.rel target = $region3
  $region8: #{_lambda_.4} parent=0 // loop_exit
    _

// kernel: _lambda_.5
$region0: #{_lambda_.5}
  #allocation0 [shape = 'u32[]', space=smem, size = 0x4, offset = 0x4, fixed_abs, tag = 'smem constant byte address 0x4 - core index']
  #allocation1 [shape = 'u32[144,128]{1,0:T(1,128)}', space=vmem, size = 0x12000, scoped, tag = 'internal scratch']
  #allocation2 [shape = 'f32[8,128]{1,0:T(8,128)}', space=vmem, size = 0x1000, scoped, tag = 'scratch operand']
  %s0 = inlined_call_operand.vmem [shape: f32[8,8192], index: 0, kind: input, shape index: {}]
  %s1 = inlined_call_operand.vmem [shape: bf16[8192,128], index: 1, kind: input, shape index: {}]
  %s2 = inlined_call_operand.vmem [shape: f32[1,128], index: 2, kind: input, shape index: {}]
  %s3 = inlined_call_operand.vmem [shape: f32[8,128], index: 3, kind: input, shape index: {}]
  %s4 = inlined_call_operand.vmem [shape: f32[8,1], index: 4, kind: output, shape index: {}]
  %s5 = sld [smem:[#allocation0]]
  $region57: #{_lambda_.5} parent=0
    _
  %s7 = ssub.s32 1, %s5
  %s8 = scalar_select 0, %s7, %s5
  loop: start=0, step=1, limit=6
  $region2: #{_lambda_.5} parent=0 // loop_pre_header
    _
  $region3: #{_lambda_.5} parent=0 // loop_header
    %s10 = sphi 0, %s14
    %p11 = scmp.ge.s32.totalorder %s10, 6
    %s20 = sphi 0, %s22
    %s23 = sphi 0, %s20
    %s24 = sphi 0, %s23
    %s40 = sphi 0, %s24
    %s46 = sphi 0, %s48
    %s49 = sphi 0, %s46
    %s50 = sphi 0, %s49
    %s66 = sphi 0, %s50
    %s70 = sphi 0, %s70
    %s72 = sphi 0, %s70
    %s73 = sphi 0, %s72
    %s87 = sphi 0, %s73
    %s91 = sphi 0, %s91
    %s93 = sphi 0, %s91
    %s94 = sphi 0, %s93
    %s108 = sphi 0, %s94
    %s112 = sphi 0, %s112
    %s114 = sphi 0, %s112
    %s115 = sphi 0, %s114
    %s129 = sphi 0, %s115
  $region4: #{_lambda_.5} parent=0 // loop_header_branch
    %13 = sbr.rel (%p11) target = $region8
  $region5: #{_lambda_.5} parent=0 // loop_body
    %s15 = ssub.s32 %s10, 1
    %s16 = ssub.s32 %s10, 2
    %s17 = sadd.s32 %s10, 1
    %s18 = ssub.s32 %s10, %s17
    %p19 = scmp.eq.s32.totalorder %s18, 0
    %s21 = sadd.s32 %s20, 1
    %s22 = scalar_select %p19, %s20, %s21
    %p25 = pneg %p19
    %p26 = scmp.eq.s32.totalorder %s10, 3
    %p27 = por %p25, %p26
    %p28 = scmp.ne.s32.totalorder %s20, %s23
    %p29 = scmp.eq.s32.totalorder %s10, 0
    %p30 = por %p28, %p29
    %p31 = scmp.ne.s32.totalorder %s20, %s23
    %p32 = scmp.eq.s32.totalorder %s15, 3
    %p33 = por %p31, %p32
    %p34 = scmp.ne.s32.totalorder %s23, %s24
    %p35 = scmp.eq.s32.totalorder %s15, 0
    %p36 = por %p34, %p35
    %p37 = scmp.ne.s32.totalorder %s23, %s24
    %p38 = scmp.eq.s32.totalorder %s16, 3
    %p39 = por %p37, %p38
    %p41 = scmp.ne.s32.totalorder %s24, %s40
    %p42 = scmp.eq.s32.totalorder %s16, 0
    %p43 = por %p41, %p42
    %s44 = ssub.s32 %s10, %s17
    %p45 = scmp.eq.s32.totalorder %s44, 0
    %s47 = sadd.s32 %s46, 1
    %s48 = scalar_select %p45, %s46, %s47
    %p51 = pneg %p45
    %p52 = scmp.eq.s32.totalorder %s10, 3
    %p53 = por %p51, %p52
    %p54 = scmp.ne.s32.totalorder %s46, %s49
    %p55 = scmp.eq.s32.totalorder %s10, 0
    %p56 = por %p54, %p55
    %p57 = scmp.ne.s32.totalorder %s46, %s49
    %p58 = scmp.eq.s32.totalorder %s15, 3
    %p59 = por %p57, %p58
    %p60 = scmp.ne.s32.totalorder %s49, %s50
    %p61 = scmp.eq.s32.totalorder %s15, 0
    %p62 = por %p60, %p61
    %p63 = scmp.ne.s32.totalorder %s49, %s50
    %p64 = scmp.eq.s32.totalorder %s16, 3
    %p65 = por %p63, %p64
    %p67 = scmp.ne.s32.totalorder %s50, %s66
    %p68 = scmp.eq.s32.totalorder %s16, 0
    %p69 = por %p67, %p68
    %s71 = sadd.s32 %s70, 1
    %p74 = scmp.eq.s32.totalorder %s10, 3
    %p75 = scmp.ne.s32.totalorder %s70, %s72
    %p76 = scmp.eq.s32.totalorder %s10, 0
    %p77 = por %p75, %p76
    %p78 = scmp.ne.s32.totalorder %s70, %s72
    %p79 = scmp.eq.s32.totalorder %s15, 3
    %p80 = por %p78, %p79
    %p81 = scmp.ne.s32.totalorder %s72, %s73
    %p82 = scmp.eq.s32.totalorder %s15, 0
    %p83 = por %p81, %p82
    %p84 = scmp.ne.s32.totalorder %s72, %s73
    %p85 = scmp.eq.s32.totalorder %s16, 3
    %p86 = por %p84, %p85
    %p88 = scmp.ne.s32.totalorder %s73, %s87
    %p89 = scmp.eq.s32.totalorder %s16, 0
    %p90 = por %p88, %p89
    %s92 = sadd.s32 %s91, 1
    %p95 = scmp.eq.s32.totalorder %s10, 3
    %p96 = scmp.ne.s32.totalorder %s91, %s93
    %p97 = scmp.eq.s32.totalorder %s10, 0
    %p98 = por %p96, %p97
    %p99 = scmp.ne.s32.totalorder %s91, %s93
    %p100 = scmp.eq.s32.totalorder %s15, 3
    %p101 = por %p99, %p100
    %p102 = scmp.ne.s32.totalorder %s93, %s94
    %p103 = scmp.eq.s32.totalorder %s15, 0
    %p104 = por %p102, %p103
    %p105 = scmp.ne.s32.totalorder %s93, %s94
    %p106 = scmp.eq.s32.totalorder %s16, 3
    %p107 = por %p105, %p106
    %p109 = scmp.ne.s32.totalorder %s94, %s108
    %p110 = scmp.eq.s32.totalorder %s16, 0
    %p111 = por %p109, %p110
    %s113 = sadd.s32 %s112, 1
    %p116 = scmp.eq.s32.totalorder %s10, 3
    %p117 = scmp.ne.s32.totalorder %s112, %s114
    %p118 = scmp.eq.s32.totalorder %s10, 0
    %p119 = por %p117, %p118
    %p120 = scmp.ne.s32.totalorder %s112, %s114
    %p121 = scmp.eq.s32.totalorder %s15, 3
    %p122 = por %p120, %p121
    %p123 = scmp.ne.s32.totalorder %s114, %s115
    %p124 = scmp.eq.s32.totalorder %s15, 0
    %p125 = por %p123, %p124
    %p126 = scmp.ne.s32.totalorder %s114, %s115
    %p127 = scmp.eq.s32.totalorder %s16, 3
    %p128 = por %p126, %p127
    %p130 = scmp.ne.s32.totalorder %s115, %s129
    %p131 = scmp.eq.s32.totalorder %s16, 0
    %p132 = por %p130, %p131
    %p133 = scmp.le.s32.totalorder 1, %s10
    %p134 = scmp.lt.s32.totalorder %s10, 5
    %p135 = pnand %p133, %p134
    %p136 = pneg %p135
    // Predicated region
    $region9: #{_lambda_.5} parent=5 // pred_check
      _
    $region10: #{_lambda_.5} parent=5 // pred_check_branch
      %138 = sbr.rel (%p135) target = $region12
    $region11: #{_lambda_.5} parent=5 // pred_region
      %s139 = ssub.s32 %s10, 1
      // Predicated region
      $region13: #{_lambda_.5} parent=11 // pred_check
        %p140 = pneg %p83
      $region14: #{_lambda_.5} parent=11 // pred_check_branch
        %142 = sbr.rel (%p140) target = $region16
      $region15: #{_lambda_.5} parent=11 // pred_region
        _
      $region16: #{_lambda_.5} parent=11 // pred_fallthru
        _
      // Predicated region
      $region17: #{_lambda_.5} parent=11 // pred_check
        %p143 = pneg %p104
      $region18: #{_lambda_.5} parent=11 // pred_check_branch
        %145 = sbr.rel (%p143) target = $region20
      $region19: #{_lambda_.5} parent=11 // pred_region
        _
      $region20: #{_lambda_.5} parent=11 // pred_fallthru
        _
    $region12: #{_lambda_.5} parent=5 // pred_fallthru
      _
    %p146 = scmp.lt.s32.totalorder %s10, 4
    // Predicated region
    $region21: #{_lambda_.5} parent=5 // pred_check
      %p147 = pneg %p146
    $region22: #{_lambda_.5} parent=5 // pred_check_branch
      %149 = sbr.rel (%p147) target = $region24
    $region23: #{_lambda_.5} parent=5 // pred_region
      // Predicated region
      $region25: #{_lambda_.5} parent=23 // pred_check
        %p150 = pneg %p30
      $region26: #{_lambda_.5} parent=23 // pred_check_branch
        %152 = sbr.rel (%p150) target = $region28
      $region27: #{_lambda_.5} parent=23 // pred_region
        %s153 = smul.u32 16, %s10
        %p154 = scmp.lt.s32.totalorder %s153, 63
        %s155 = scalar_select %p154, %s153, 63
        %s156 = smul.addr %s155, 8
        %s157 = scalar_lea.vmem %s0, %s156
        %s158 = smul.u32 16, %s10
      $region28: #{_lambda_.5} parent=23 // pred_fallthru
        _
      // Predicated region
      $region29: #{_lambda_.5} parent=23 // pred_check
        %p159 = pneg %p56
      $region30: #{_lambda_.5} parent=23 // pred_check_branch
        %161 = sbr.rel (%p159) target = $region32
      $region31: #{_lambda_.5} parent=23 // pred_region
        %s162 = smul.u32 256, %s10
        %p163 = scmp.lt.s32.totalorder %s162, 1023
        %s164 = scalar_select %p163, %s162, 1023
        %s165 = smul.addr %s164, 4
        %s166 = scalar_lea.vmem %s1, %s165
        %s167 = smul.u32 256, %s10
      $region32: #{_lambda_.5} parent=23 // pred_fallthru
        _
    $region24: #{_lambda_.5} parent=5 // pred_fallthru
      _
    %p168 = scmp.le.s32.totalorder 1, %s10
    %p169 = scmp.lt.s32.totalorder %s10, 5
    %p170 = pnand %p168, %p169
    %p171 = pneg %p170
    // Predicated region
    $region33: #{_lambda_.5} parent=5 // pred_check
      _
    $region34: #{_lambda_.5} parent=5 // pred_check_branch
      %173 = sbr.rel (%p170) target = $region36
    $region35: #{_lambda_.5} parent=5 // pred_region
      %s174 = ssub.s32 %s10, 1
      %s175 = smul.u32 16, %s15
      %p176 = scmp.lt.s32.totalorder %s175, 63
      %s177 = scalar_select %p176, %s175, 63
      %s178 = smul.addr %s177, 8
      %s179 = scalar_lea.vmem %s0, %s178
      %p180 = pneg %p36
      %p181 = pneg %p33
      %s182 = smul.u32 256, %s15
      %p183 = scmp.lt.s32.totalorder %s182, 1023
      %s184 = scalar_select %p183, %s182, 1023
      %s185 = smul.addr %s184, 4
      %s186 = scalar_lea.vmem %s1, %s185
      %p187 = pneg %p62
      %p188 = pneg %p59
      %p189 = pneg %p83
      %p190 = pneg %p80
      %p191 = pneg %p104
      %p192 = pneg %p101
      %p193 = pneg %p125
      %p194 = pneg %p122
      %s195 = smul.u32 16, %s15
      %p196 = scmp.lt.s32.totalorder %s195, 63
      %s197 = scalar_select %p196, %s195, 63
      %s198 = smul.addr %s197, 8
      %s199 = scalar_lea.vmem %s0, %s198
      %s200 = smul.u32 16, %s15
      %s201 = smul.u32 256, %s15
      %p202 = scmp.lt.s32.totalorder %s201, 1023
      %s203 = scalar_select %p202, %s201, 1023
      %s204 = smul.addr %s203, 4
      %s205 = scalar_lea.vmem %s1, %s204
      %s206 = smul.u32 256, %s15
      %p208 = scmp.eq.s32.totalorder %s15, 0
      // Predicated region
      $region37: #{_lambda_.5} parent=35 // pred_check
        %p209 = pneg %p208
      $region38: #{_lambda_.5} parent=35 // pred_check_branch
        %211 = sbr.rel (%p209) target = $region40
      $region39: #{_lambda_.5} parent=35 // pred_region
        %212 = vst [vmem:[#allocation2] sm:$0xff] 0.0
      $region40: #{_lambda_.5} parent=35 // pred_fallthru
        _
      %v213 = vld [vmem:[%s199] sm:$0xff]
      %v214 = vld [vmem:[%s199 + $0x8] sm:$0xff]
      %v215 = vld [vmem:[%s199 + $0x10] sm:$0xff]
      %v216 = vld [vmem:[%s199 + $0x18] sm:$0xff]
      %v217 = vld [vmem:[%s199 + $0x20] sm:$0xff]
      %v218 = vld [vmem:[%s199 + $0x28] sm:$0xff]
      %v219 = vld [vmem:[%s199 + $0x30] sm:$0xff]
      %v220 = vld [vmem:[%s199 + $0x38] sm:$0xff]
      %v221 = vld [vmem:[%s199 + $0x40] sm:$0xff]
      %v222 = vld [vmem:[%s199 + $0x48] sm:$0xff]
      %v223 = vld [vmem:[%s199 + $0x50] sm:$0xff]
      %v224 = vld [vmem:[%s199 + $0x58] sm:$0xff]
      %v225 = vld [vmem:[%s199 + $0x60] sm:$0xff]
      %v226 = vld [vmem:[%s199 + $0x68] sm:$0xff]
      %v227 = vld [vmem:[%s199 + $0x70] sm:$0xff]
      %v228 = vld [vmem:[%s199 + $0x78] sm:$0xff]
      %v229 = vpack.c.bf16 %v213, %v213
      %v230 = vpack.c.bf16 %v214, %v214
      %v231 = vpack.c.bf16 %v215, %v215
      %v232 = vpack.c.bf16 %v216, %v216
      %v233 = vpack.c.bf16 %v217, %v217
      %v234 = vpack.c.bf16 %v218, %v218
      %v235 = vpack.c.bf16 %v219, %v219
      %v236 = vpack.c.bf16 %v220, %v220
      %v237 = vpack.c.bf16 %v221, %v221
      %v238 = vpack.c.bf16 %v222, %v222
      %v239 = vpack.c.bf16 %v223, %v223
      %v240 = vpack.c.bf16 %v224, %v224
      %v241 = vpack.c.bf16 %v225, %v225
      %v242 = vpack.c.bf16 %v226, %v226
      %v243 = vpack.c.bf16 %v227, %v227
      %v244 = vpack.c.bf16 %v228, %v228
      %v245 = vld [vmem:[#allocation2] sm:$0xff]
      %v246 = vld [vmem:[%s205] sm:$0xf]
      %v247 = vld [vmem:[%s205 + $0x4] sm:$0xf]
      %v248 = vld [vmem:[%s205 + $0x8] sm:$0xf]
      %v249 = vld [vmem:[%s205 + $0xc] sm:$0xf]
      %v250 = vld [vmem:[%s205 + $0x10] sm:$0xf]
      %v251 = vld [vmem:[%s205 + $0x14] sm:$0xf]
      %v252 = vld [vmem:[%s205 + $0x18] sm:$0xf]
      %v253 = vld [vmem:[%s205 + $0x1c] sm:$0xf]
      %v254 = vld [vmem:[%s205 + $0x20] sm:$0xf]
      %v255 = vld [vmem:[%s205 + $0x24] sm:$0xf]
      %v256 = vld [vmem:[%s205 + $0x28] sm:$0xf]
      %v257 = vld [vmem:[%s205 + $0x2c] sm:$0xf]
      %v258 = vld [vmem:[%s205 + $0x30] sm:$0xf]
      %v259 = vld [vmem:[%s205 + $0x34] sm:$0xf]
      %v260 = vld [vmem:[%s205 + $0x38] sm:$0xf]
      %v261 = vld [vmem:[%s205 + $0x3c] sm:$0xf]
      %v262 = vld [vmem:[%s205 + $0x40] sm:$0xf]
      %v263 = vld [vmem:[%s205 + $0x44] sm:$0xf]
      %v264 = vld [vmem:[%s205 + $0x48] sm:$0xf]
      %v265 = vld [vmem:[%s205 + $0x4c] sm:$0xf]
      %v266 = vld [vmem:[%s205 + $0x50] sm:$0xf]
      %v267 = vld [vmem:[%s205 + $0x54] sm:$0xf]
      %v268 = vld [vmem:[%s205 + $0x58] sm:$0xf]
      %v269 = vld [vmem:[%s205 + $0x5c] sm:$0xf]
      %v270 = vld [vmem:[%s205 + $0x60] sm:$0xf]
      %v271 = vld [vmem:[%s205 + $0x64] sm:$0xf]
      %v272 = vld [vmem:[%s205 + $0x68] sm:$0xf]
      %v273 = vld [vmem:[%s205 + $0x6c] sm:$0xf]
      %v274 = vld [vmem:[%s205 + $0x70] sm:$0xf]
      %v275 = vld [vmem:[%s205 + $0x74] sm:$0xf]
      %v276 = vld [vmem:[%s205 + $0x78] sm:$0xf]
      %v277 = vld [vmem:[%s205 + $0x7c] sm:$0xf]
      %v278 = vld [vmem:[%s205 + $0x80] sm:$0xf]
      %v279 = vld [vmem:[%s205 + $0x84] sm:$0xf]
      %v280 = vld [vmem:[%s205 + $0x88] sm:$0xf]
      %v281 = vld [vmem:[%s205 + $0x8c] sm:$0xf]
      %v282 = vld [vmem:[%s205 + $0x90] sm:$0xf]
      %v283 = vld [vmem:[%s205 + $0x94] sm:$0xf]
      %v284 = vld [vmem:[%s205 + $0x98] sm:$0xf]
      %v285 = vld [vmem:[%s205 + $0x9c] sm:$0xf]
      %v286 = vld [vmem:[%s205 + $0xa0] sm:$0xf]
      %v287 = vld [vmem:[%s205 + $0xa4] sm:$0xf]
      %v288 = vld [vmem:[%s205 + $0xa8] sm:$0xf]
      %v289 = vld [vmem:[%s205 + $0xac] sm:$0xf]
      %v290 = vld [vmem:[%s205 + $0xb0] sm:$0xf]
      %v291 = vld [vmem:[%s205 + $0xb4] sm:$0xf]
      %v292 = vld [vmem:[%s205 + $0xb8] sm:$0xf]
      %v293 = vld [vmem:[%s205 + $0xbc] sm:$0xf]
      %v294 = vld [vmem:[%s205 + $0xc0] sm:$0xf]
      %v295 = vld [vmem:[%s205 + $0xc4] sm:$0xf]
      %v296 = vld [vmem:[%s205 + $0xc8] sm:$0xf]
      %v297 = vld [vmem:[%s205 + $0xcc] sm:$0xf]
      %v298 = vld [vmem:[%s205 + $0xd0] sm:$0xf]
      %v299 = vld [vmem:[%s205 + $0xd4] sm:$0xf]
      %v300 = vld [vmem:[%s205 + $0xd8] sm:$0xf]
      %v301 = vld [vmem:[%s205 + $0xdc] sm:$0xf]
      %v302 = vld [vmem:[%s205 + $0xe0] sm:$0xf]
      %v303 = vld [vmem:[%s205 + $0xe4] sm:$0xf]
      %v304 = vld [vmem:[%s205 + $0xe8] sm:$0xf]
      %v305 = vld [vmem:[%s205 + $0xec] sm:$0xf]
      %v306 = vld [vmem:[%s205 + $0xf0] sm:$0xf]
      %v307 = vld [vmem:[%s205 + $0xf4] sm:$0xf]
      %v308 = vld [vmem:[%s205 + $0xf8] sm:$0xf]
      %v309 = vld [vmem:[%s205 + $0xfc] sm:$0xf]
      %v310 = vld [vmem:[%s205 + $0x100] sm:$0xf]
      %v311 = vld [vmem:[%s205 + $0x104] sm:$0xf]
      %v312 = vld [vmem:[%s205 + $0x108] sm:$0xf]
      %v313 = vld [vmem:[%s205 + $0x10c] sm:$0xf]
      %v314 = vld [vmem:[%s205 + $0x110] sm:$0xf]
      %v315 = vld [vmem:[%s205 + $0x114] sm:$0xf]
      %v316 = vld [vmem:[%s205 + $0x118] sm:$0xf]
      %v317 = vld [vmem:[%s205 + $0x11c] sm:$0xf]
      %v318 = vld [vmem:[%s205 + $0x120] sm:$0xf]
      %v319 = vld [vmem:[%s205 + $0x124] sm:$0xf]
      %v320 = vld [vmem:[%s205 + $0x128] sm:$0xf]
      %v321 = vld [vmem:[%s205 + $0x12c] sm:$0xf]
      %v322 = vld [vmem:[%s205 + $0x130] sm:$0xf]
      %v323 = vld [vmem:[%s205 + $0x134] sm:$0xf]
      %v324 = vld [vmem:[%s205 + $0x138] sm:$0xf]
      %v325 = vld [vmem:[%s205 + $0x13c] sm:$0xf]
      %v326 = vld [vmem:[%s205 + $0x140] sm:$0xf]
      %v327 = vld [vmem:[%s205 + $0x144] sm:$0xf]
      %v328 = vld [vmem:[%s205 + $0x148] sm:$0xf]
      %v329 = vld [vmem:[%s205 + $0x14c] sm:$0xf]
      %v330 = vld [vmem:[%s205 + $0x150] sm:$0xf]
      %v331 = vld [vmem:[%s205 + $0x154] sm:$0xf]
      %v332 = vld [vmem:[%s205 + $0x158] sm:$0xf]
      %v333 = vld [vmem:[%s205 + $0x15c] sm:$0xf]
      %v334 = vld [vmem:[%s205 + $0x160] sm:$0xf]
      %v335 = vld [vmem:[%s205 + $0x164] sm:$0xf]
      %v336 = vld [vmem:[%s205 + $0x168] sm:$0xf]
      %v337 = vld [vmem:[%s205 + $0x16c] sm:$0xf]
      %v338 = vld [vmem:[%s205 + $0x170] sm:$0xf]
      %v339 = vld [vmem:[%s205 + $0x174] sm:$0xf]
      %v340 = vld [vmem:[%s205 + $0x178] sm:$0xf]
      %v341 = vld [vmem:[%s205 + $0x17c] sm:$0xf]
      %v342 = vld [vmem:[%s205 + $0x180] sm:$0xf]
      %v343 = vld [vmem:[%s205 + $0x184] sm:$0xf]
      %v344 = vld [vmem:[%s205 + $0x188] sm:$0xf]
      %v345 = vld [vmem:[%s205 + $0x18c] sm:$0xf]
      %v346 = vld [vmem:[%s205 + $0x190] sm:$0xf]
      %v347 = vld [vmem:[%s205 + $0x194] sm:$0xf]
      %v348 = vld [vmem:[%s205 + $0x198] sm:$0xf]
      %v349 = vld [vmem:[%s205 + $0x19c] sm:$0xf]
      %v350 = vld [vmem:[%s205 + $0x1a0] sm:$0xf]
      %v351 = vld [vmem:[%s205 + $0x1a4] sm:$0xf]
      %v352 = vld [vmem:[%s205 + $0x1a8] sm:$0xf]
      %v353 = vld [vmem:[%s205 + $0x1ac] sm:$0xf]
      %v354 = vld [vmem:[%s205 + $0x1b0] sm:$0xf]
      %v355 = vld [vmem:[%s205 + $0x1b4] sm:$0xf]
      %v356 = vld [vmem:[%s205 + $0x1b8] sm:$0xf]
      %v357 = vld [vmem:[%s205 + $0x1bc] sm:$0xf]
      %v358 = vld [vmem:[%s205 + $0x1c0] sm:$0xf]
      %v359 = vld [vmem:[%s205 + $0x1c4] sm:$0xf]
      %v360 = vld [vmem:[%s205 + $0x1c8] sm:$0xf]
      %v361 = vld [vmem:[%s205 + $0x1cc] sm:$0xf]
      %v362 = vld [vmem:[%s205 + $0x1d0] sm:$0xf]
      %v363 = vld [vmem:[%s205 + $0x1d4] sm:$0xf]
      %v364 = vld [vmem:[%s205 + $0x1d8] sm:$0xf]
      %v365 = vld [vmem:[%s205 + $0x1dc] sm:$0xf]
      %v366 = vld [vmem:[%s205 + $0x1e0] sm:$0xf]
      %v367 = vld [vmem:[%s205 + $0x1e4] sm:$0xf]
      %v368 = vld [vmem:[%s205 + $0x1e8] sm:$0xf]
      %v369 = vld [vmem:[%s205 + $0x1ec] sm:$0xf]
      %v370 = vld [vmem:[%s205 + $0x1f0] sm:$0xf]
      %v371 = vld [vmem:[%s205 + $0x1f4] sm:$0xf]
      %v372 = vld [vmem:[%s205 + $0x1f8] sm:$0xf]
      %v373 = vld [vmem:[%s205 + $0x1fc] sm:$0xf]
      %v374 = vld [vmem:[%s205 + $0x200] sm:$0xf]
      %v375 = vld [vmem:[%s205 + $0x204] sm:$0xf]
      %v376 = vld [vmem:[%s205 + $0x208] sm:$0xf]
      %v377 = vld [vmem:[%s205 + $0x20c] sm:$0xf]
      %v378 = vld [vmem:[%s205 + $0x210] sm:$0xf]
      %v379 = vld [vmem:[%s205 + $0x214] sm:$0xf]
      %v380 = vld [vmem:[%s205 + $0x218] sm:$0xf]
      %v381 = vld [vmem:[%s205 + $0x21c] sm:$0xf]
      %v382 = vld [vmem:[%s205 + $0x220] sm:$0xf]
      %v383 = vld [vmem:[%s205 + $0x224] sm:$0xf]
      %v384 = vld [vmem:[%s205 + $0x228] sm:$0xf]
      %v385 = vld [vmem:[%s205 + $0x22c] sm:$0xf]
      %v386 = vld [vmem:[%s205 + $0x230] sm:$0xf]
      %v387 = vld [vmem:[%s205 + $0x234] sm:$0xf]
      %v388 = vld [vmem:[%s205 + $0x238] sm:$0xf]
      %v389 = vld [vmem:[%s205 + $0x23c] sm:$0xf]
      %v390 = vld [vmem:[%s205 + $0x240] sm:$0xf]
      %v391 = vld [vmem:[%s205 + $0x244] sm:$0xf]
      %v392 = vld [vmem:[%s205 + $0x248] sm:$0xf]
      %v393 = vld [vmem:[%s205 + $0x24c] sm:$0xf]
      %v394 = vld [vmem:[%s205 + $0x250] sm:$0xf]
      %v395 = vld [vmem:[%s205 + $0x254] sm:$0xf]
      %v396 = vld [vmem:[%s205 + $0x258] sm:$0xf]
      %v397 = vld [vmem:[%s205 + $0x25c] sm:$0xf]
      %v398 = vld [vmem:[%s205 + $0x260] sm:$0xf]
      %v399 = vld [vmem:[%s205 + $0x264] sm:$0xf]
      %v400 = vld [vmem:[%s205 + $0x268] sm:$0xf]
      %v401 = vld [vmem:[%s205 + $0x26c] sm:$0xf]
      %v402 = vld [vmem:[%s205 + $0x270] sm:$0xf]
      %v403 = vld [vmem:[%s205 + $0x274] sm:$0xf]
      %v404 = vld [vmem:[%s205 + $0x278] sm:$0xf]
      %v405 = vld [vmem:[%s205 + $0x27c] sm:$0xf]
      %v406 = vld [vmem:[%s205 + $0x280] sm:$0xf]
      %v407 = vld [vmem:[%s205 + $0x284] sm:$0xf]
      %v408 = vld [vmem:[%s205 + $0x288] sm:$0xf]
      %v409 = vld [vmem:[%s205 + $0x28c] sm:$0xf]
      %v410 = vld [vmem:[%s205 + $0x290] sm:$0xf]
      %v411 = vld [vmem:[%s205 + $0x294] sm:$0xf]
      %v412 = vld [vmem:[%s205 + $0x298] sm:$0xf]
      %v413 = vld [vmem:[%s205 + $0x29c] sm:$0xf]
      %v414 = vld [vmem:[%s205 + $0x2a0] sm:$0xf]
      %v415 = vld [vmem:[%s205 + $0x2a4] sm:$0xf]
      %v416 = vld [vmem:[%s205 + $0x2a8] sm:$0xf]
      %v417 = vld [vmem:[%s205 + $0x2ac] sm:$0xf]
      %v418 = vld [vmem:[%s205 + $0x2b0] sm:$0xf]
      %v419 = vld [vmem:[%s205 + $0x2b4] sm:$0xf]
      %v420 = vld [vmem:[%s205 + $0x2b8] sm:$0xf]
      %v421 = vld [vmem:[%s205 + $0x2bc] sm:$0xf]
      %v422 = vld [vmem:[%s205 + $0x2c0] sm:$0xf]
      %v423 = vld [vmem:[%s205 + $0x2c4] sm:$0xf]
      %v424 = vld [vmem:[%s205 + $0x2c8] sm:$0xf]
      %v425 = vld [vmem:[%s205 + $0x2cc] sm:$0xf]
      %v426 = vld [vmem:[%s205 + $0x2d0] sm:$0xf]
      %v427 = vld [vmem:[%s205 + $0x2d4] sm:$0xf]
      %v428 = vld [vmem:[%s205 + $0x2d8] sm:$0xf]
      %v429 = vld [vmem:[%s205 + $0x2dc] sm:$0xf]
      %v430 = vld [vmem:[%s205 + $0x2e0] sm:$0xf]
      %v431 = vld [vmem:[%s205 + $0x2e4] sm:$0xf]
      %v432 = vld [vmem:[%s205 + $0x2e8] sm:$0xf]
      %v433 = vld [vmem:[%s205 + $0x2ec] sm:$0xf]
      %v434 = vld [vmem:[%s205 + $0x2f0] sm:$0xf]
      %v435 = vld [vmem:[%s205 + $0x2f4] sm:$0xf]
      %v436 = vld [vmem:[%s205 + $0x2f8] sm:$0xf]
      %v437 = vld [vmem:[%s205 + $0x2fc] sm:$0xf]
      %v438 = vld [vmem:[%s205 + $0x300] sm:$0xf]
      %v439 = vld [vmem:[%s205 + $0x304] sm:$0xf]
      %v440 = vld [vmem:[%s205 + $0x308] sm:$0xf]
      %v441 = vld [vmem:[%s205 + $0x30c] sm:$0xf]
      %v442 = vld [vmem:[%s205 + $0x310] sm:$0xf]
      %v443 = vld [vmem:[%s205 + $0x314] sm:$0xf]
      %v444 = vld [vmem:[%s205 + $0x318] sm:$0xf]
      %v445 = vld [vmem:[%s205 + $0x31c] sm:$0xf]
      %v446 = vld [vmem:[%s205 + $0x320] sm:$0xf]
      %v447 = vld [vmem:[%s205 + $0x324] sm:$0xf]
      %v448 = vld [vmem:[%s205 + $0x328] sm:$0xf]
      %v449 = vld [vmem:[%s205 + $0x32c] sm:$0xf]
      %v450 = vld [vmem:[%s205 + $0x330] sm:$0xf]
      %v451 = vld [vmem:[%s205 + $0x334] sm:$0xf]
      %v452 = vld [vmem:[%s205 + $0x338] sm:$0xf]
      %v453 = vld [vmem:[%s205 + $0x33c] sm:$0xf]
      %v454 = vld [vmem:[%s205 + $0x340] sm:$0xf]
      %v455 = vld [vmem:[%s205 + $0x344] sm:$0xf]
      %v456 = vld [vmem:[%s205 + $0x348] sm:$0xf]
      %v457 = vld [vmem:[%s205 + $0x34c] sm:$0xf]
      %v458 = vld [vmem:[%s205 + $0x350] sm:$0xf]
      %v459 = vld [vmem:[%s205 + $0x354] sm:$0xf]
      %v460 = vld [vmem:[%s205 + $0x358] sm:$0xf]
      %v461 = vld [vmem:[%s205 + $0x35c] sm:$0xf]
      %v462 = vld [vmem:[%s205 + $0x360] sm:$0xf]
      %v463 = vld [vmem:[%s205 + $0x364] sm:$0xf]
      %v464 = vld [vmem:[%s205 + $0x368] sm:$0xf]
      %v465 = vld [vmem:[%s205 + $0x36c] sm:$0xf]
      %v466 = vld [vmem:[%s205 + $0x370] sm:$0xf]
      %v467 = vld [vmem:[%s205 + $0x374] sm:$0xf]
      %v468 = vld [vmem:[%s205 + $0x378] sm:$0xf]
      %v469 = vld [vmem:[%s205 + $0x37c] sm:$0xf]
      %v470 = vld [vmem:[%s205 + $0x380] sm:$0xf]
      %v471 = vld [vmem:[%s205 + $0x384] sm:$0xf]
      %v472 = vld [vmem:[%s205 + $0x388] sm:$0xf]
      %v473 = vld [vmem:[%s205 + $0x38c] sm:$0xf]
      %v474 = vld [vmem:[%s205 + $0x390] sm:$0xf]
      %v475 = vld [vmem:[%s205 + $0x394] sm:$0xf]
      %v476 = vld [vmem:[%s205 + $0x398] sm:$0xf]
      %v477 = vld [vmem:[%s205 + $0x39c] sm:$0xf]
      %v478 = vld [vmem:[%s205 + $0x3a0] sm:$0xf]
      %v479 = vld [vmem:[%s205 + $0x3a4] sm:$0xf]
      %v480 = vld [vmem:[%s205 + $0x3a8] sm:$0xf]
      %v481 = vld [vmem:[%s205 + $0x3ac] sm:$0xf]
      %v482 = vld [vmem:[%s205 + $0x3b0] sm:$0xf]
      %v483 = vld [vmem:[%s205 + $0x3b4] sm:$0xf]
      %v484 = vld [vmem:[%s205 + $0x3b8] sm:$0xf]
      %v485 = vld [vmem:[%s205 + $0x3bc] sm:$0xf]
      %v486 = vld [vmem:[%s205 + $0x3c0] sm:$0xf]
      %v487 = vld [vmem:[%s205 + $0x3c4] sm:$0xf]
      %v488 = vld [vmem:[%s205 + $0x3c8] sm:$0xf]
      %v489 = vld [vmem:[%s205 + $0x3cc] sm:$0xf]
      %v490 = vld [vmem:[%s205 + $0x3d0] sm:$0xf]
      %v491 = vld [vmem:[%s205 + $0x3d4] sm:$0xf]
      %v492 = vld [vmem:[%s205 + $0x3d8] sm:$0xf]
      %v493 = vld [vmem:[%s205 + $0x3dc] sm:$0xf]
      %v494 = vld [vmem:[%s205 + $0x3e0] sm:$0xf]
      %v495 = vld [vmem:[%s205 + $0x3e4] sm:$0xf]
      %v496 = vld [vmem:[%s205 + $0x3e8] sm:$0xf]
      %v497 = vld [vmem:[%s205 + $0x3ec] sm:$0xf]
      %v498 = vld [vmem:[%s205 + $0x3f0] sm:$0xf]
      %v499 = vld [vmem:[%s205 + $0x3f4] sm:$0xf]
      %v500 = vld [vmem:[%s205 + $0x3f8] sm:$0xf]
      %v501 = vld [vmem:[%s205 + $0x3fc] sm:$0xf]
      %v758 = vunpack.c.l.b16 %v246
      %v759 = vunpack.c.l.b16 %v247
      %v760 = vunpack.c.l.b16 %v248
      %v761 = vunpack.c.l.b16 %v249
      %v762 = vunpack.c.l.b16 %v250
      %v763 = vunpack.c.l.b16 %v251
      %v764 = vunpack.c.l.b16 %v252
      %v765 = vunpack.c.l.b16 %v253
      %v766 = vunpack.c.l.b16 %v254
      %v767 = vunpack.c.l.b16 %v255
      %v768 = vunpack.c.l.b16 %v256
      %v769 = vunpack.c.l.b16 %v257
      %v770 = vunpack.c.l.b16 %v258
      %v771 = vunpack.c.l.b16 %v259
      %v772 = vunpack.c.l.b16 %v260
      %v773 = vunpack.c.l.b16 %v261
      %v774 = vunpack.c.l.b16 %v262
      %v775 = vunpack.c.l.b16 %v263
      %v776 = vunpack.c.l.b16 %v264
      %v777 = vunpack.c.l.b16 %v265
      %v778 = vunpack.c.l.b16 %v266
      %v779 = vunpack.c.l.b16 %v267
      %v780 = vunpack.c.l.b16 %v268
      %v781 = vunpack.c.l.b16 %v269
      %v782 = vunpack.c.l.b16 %v270
      %v783 = vunpack.c.l.b16 %v271
      %v784 = vunpack.c.l.b16 %v272
      %v785 = vunpack.c.l.b16 %v273
      %v786 = vunpack.c.l.b16 %v274
      %v787 = vunpack.c.l.b16 %v275
      %v788 = vunpack.c.l.b16 %v276
      %v789 = vunpack.c.l.b16 %v277
      %v790 = vunpack.c.l.b16 %v278
      %v791 = vunpack.c.l.b16 %v279
      %v792 = vunpack.c.l.b16 %v280
      %v793 = vunpack.c.l.b16 %v281
      %v794 = vunpack.c.l.b16 %v282
      %v795 = vunpack.c.l.b16 %v283
      %v796 = vunpack.c.l.b16 %v284
      %v797 = vunpack.c.l.b16 %v285
      %v798 = vunpack.c.l.b16 %v286
      %v799 = vunpack.c.l.b16 %v287
      %v800 = vunpack.c.l.b16 %v288
      %v801 = vunpack.c.l.b16 %v289
      %v802 = vunpack.c.l.b16 %v290
      %v803 = vunpack.c.l.b16 %v291
      %v804 = vunpack.c.l.b16 %v292
      %v805 = vunpack.c.l.b16 %v293
      %v806 = vunpack.c.l.b16 %v294
      %v807 = vunpack.c.l.b16 %v295
      %v808 = vunpack.c.l.b16 %v296
      %v809 = vunpack.c.l.b16 %v297
      %v810 = vunpack.c.l.b16 %v298
      %v811 = vunpack.c.l.b16 %v299
      %v812 = vunpack.c.l.b16 %v300
      %v813 = vunpack.c.l.b16 %v301
      %v814 = vunpack.c.l.b16 %v302
      %v815 = vunpack.c.l.b16 %v303
      %v816 = vunpack.c.l.b16 %v304
      %v817 = vunpack.c.l.b16 %v305
      %v818 = vunpack.c.l.b16 %v306
      %v819 = vunpack.c.l.b16 %v307
      %v820 = vunpack.c.l.b16 %v308
      %v821 = vunpack.c.l.b16 %v309
      %v822 = vunpack.c.l.b16 %v310
      %v823 = vunpack.c.l.b16 %v311
      %v824 = vunpack.c.l.b16 %v312
      %v825 = vunpack.c.l.b16 %v313
      %v826 = vunpack.c.l.b16 %v314
      %v827 = vunpack.c.l.b16 %v315
      %v828 = vunpack.c.l.b16 %v316
      %v829 = vunpack.c.l.b16 %v317
      %v830 = vunpack.c.l.b16 %v318
      %v831 = vunpack.c.l.b16 %v319
      %v832 = vunpack.c.l.b16 %v320
      %v833 = vunpack.c.l.b16 %v321
      %v834 = vunpack.c.l.b16 %v322
      %v835 = vunpack.c.l.b16 %v323
      %v836 = vunpack.c.l.b16 %v324
      %v837 = vunpack.c.l.b16 %v325
      %v838 = vunpack.c.l.b16 %v326
      %v839 = vunpack.c.l.b16 %v327
      %v840 = vunpack.c.l.b16 %v328
      %v841 = vunpack.c.l.b16 %v329
      %v842 = vunpack.c.l.b16 %v330
      %v843 = vunpack.c.l.b16 %v331
      %v844 = vunpack.c.l.b16 %v332
      %v845 = vunpack.c.l.b16 %v333
      %v846 = vunpack.c.l.b16 %v334
      %v847 = vunpack.c.l.b16 %v335
      %v848 = vunpack.c.l.b16 %v336
      %v849 = vunpack.c.l.b16 %v337
      %v850 = vunpack.c.l.b16 %v338
      %v851 = vunpack.c.l.b16 %v339
      %v852 = vunpack.c.l.b16 %v340
      %v853 = vunpack.c.l.b16 %v341
      %v854 = vunpack.c.l.b16 %v342
      %v855 = vunpack.c.l.b16 %v343
      %v856 = vunpack.c.l.b16 %v344
      %v857 = vunpack.c.l.b16 %v345
      %v858 = vunpack.c.l.b16 %v346
      %v859 = vunpack.c.l.b16 %v347
      %v860 = vunpack.c.l.b16 %v348
      %v861 = vunpack.c.l.b16 %v349
      %v862 = vunpack.c.l.b16 %v350
      %v863 = vunpack.c.l.b16 %v351
      %v864 = vunpack.c.l.b16 %v352
      %v865 = vunpack.c.l.b16 %v353
      %v866 = vunpack.c.l.b16 %v354
      %v867 = vunpack.c.l.b16 %v355
      %v868 = vunpack.c.l.b16 %v356
      %v869 = vunpack.c.l.b16 %v357
      %v870 = vunpack.c.l.b16 %v358
      %v871 = vunpack.c.l.b16 %v359
      %v872 = vunpack.c.l.b16 %v360
      %v873 = vunpack.c.l.b16 %v361
      %v874 = vunpack.c.l.b16 %v362
      %v875 = vunpack.c.l.b16 %v363
      %v876 = vunpack.c.l.b16 %v364
      %v877 = vunpack.c.l.b16 %v365
      %v878 = vunpack.c.l.b16 %v366
      %v879 = vunpack.c.l.b16 %v367
      %v880 = vunpack.c.l.b16 %v368
      %v881 = vunpack.c.l.b16 %v369
      %v882 = vunpack.c.l.b16 %v370
      %v883 = vunpack.c.l.b16 %v371
      %v884 = vunpack.c.l.b16 %v372
      %v885 = vunpack.c.l.b16 %v373
      %v886 = vunpack.c.l.b16 %v374
      %v887 = vunpack.c.l.b16 %v375
      %v888 = vunpack.c.l.b16 %v376
      %v889 = vunpack.c.l.b16 %v377
      %v890 = vunpack.c.l.b16 %v378
      %v891 = vunpack.c.l.b16 %v379
      %v892 = vunpack.c.l.b16 %v380
      %v893 = vunpack.c.l.b16 %v381
      %v894 = vunpack.c.l.b16 %v382
      %v895 = vunpack.c.l.b16 %v383
      %v896 = vunpack.c.l.b16 %v384
      %v897 = vunpack.c.l.b16 %v385
      %v898 = vunpack.c.l.b16 %v386
      %v899 = vunpack.c.l.b16 %v387
      %v900 = vunpack.c.l.b16 %v388
      %v901 = vunpack.c.l.b16 %v389
      %v902 = vunpack.c.l.b16 %v390
      %v903 = vunpack.c.l.b16 %v391
      %v904 = vunpack.c.l.b16 %v392
      %v905 = vunpack.c.l.b16 %v393
      %v906 = vunpack.c.l.b16 %v394
      %v907 = vunpack.c.l.b16 %v395
      %v908 = vunpack.c.l.b16 %v396
      %v909 = vunpack.c.l.b16 %v397
      %v910 = vunpack.c.l.b16 %v398
      %v911 = vunpack.c.l.b16 %v399
      %v912 = vunpack.c.l.b16 %v400
      %v913 = vunpack.c.l.b16 %v401
      %v914 = vunpack.c.l.b16 %v402
      %v915 = vunpack.c.l.b16 %v403
      %v916 = vunpack.c.l.b16 %v404
      %v917 = vunpack.c.l.b16 %v405
      %v918 = vunpack.c.l.b16 %v406
      %v919 = vunpack.c.l.b16 %v407
      %v920 = vunpack.c.l.b16 %v408
      %v921 = vunpack.c.l.b16 %v409
      %v922 = vunpack.c.l.b16 %v410
      %v923 = vunpack.c.l.b16 %v411
      %v924 = vunpack.c.l.b16 %v412
      %v925 = vunpack.c.l.b16 %v413
      %v926 = vunpack.c.l.b16 %v414
      %v927 = vunpack.c.l.b16 %v415
      %v928 = vunpack.c.l.b16 %v416
      %v929 = vunpack.c.l.b16 %v417
      %v930 = vunpack.c.l.b16 %v418
      %v931 = vunpack.c.l.b16 %v419
      %v932 = vunpack.c.l.b16 %v420
      %v933 = vunpack.c.l.b16 %v421
      %v934 = vunpack.c.l.b16 %v422
      %v935 = vunpack.c.l.b16 %v423
      %v936 = vunpack.c.l.b16 %v424
      %v937 = vunpack.c.l.b16 %v425
      %v938 = vunpack.c.l.b16 %v426
      %v939 = vunpack.c.l.b16 %v427
      %v940 = vunpack.c.l.b16 %v428
      %v941 = vunpack.c.l.b16 %v429
      %v942 = vunpack.c.l.b16 %v430
      %v943 = vunpack.c.l.b16 %v431
      %v944 = vunpack.c.l.b16 %v432
      %v945 = vunpack.c.l.b16 %v433
      %v946 = vunpack.c.l.b16 %v434
      %v947 = vunpack.c.l.b16 %v435
      %v948 = vunpack.c.l.b16 %v436
      %v949 = vunpack.c.l.b16 %v437
      %v950 = vunpack.c.l.b16 %v438
      %v951 = vunpack.c.l.b16 %v439
      %v952 = vunpack.c.l.b16 %v440
      %v953 = vunpack.c.l.b16 %v441
      %v954 = vunpack.c.l.b16 %v442
      %v955 = vunpack.c.l.b16 %v443
      %v956 = vunpack.c.l.b16 %v444
      %v957 = vunpack.c.l.b16 %v445
      %v958 = vunpack.c.l.b16 %v446
      %v959 = vunpack.c.l.b16 %v447
      %v960 = vunpack.c.l.b16 %v448
      %v961 = vunpack.c.l.b16 %v449
      %v962 = vunpack.c.l.b16 %v450
      %v963 = vunpack.c.l.b16 %v451
      %v964 = vunpack.c.l.b16 %v452
      %v965 = vunpack.c.l.b16 %v453
      %v966 = vunpack.c.l.b16 %v454
      %v967 = vunpack.c.l.b16 %v455
      %v968 = vunpack.c.l.b16 %v456
      %v969 = vunpack.c.l.b16 %v457
      %v970 = vunpack.c.l.b16 %v458
      %v971 = vunpack.c.l.b16 %v459
      %v972 = vunpack.c.l.b16 %v460
      %v973 = vunpack.c.l.b16 %v461
      %v974 = vunpack.c.l.b16 %v462
      %v975 = vunpack.c.l.b16 %v463
      %v976 = vunpack.c.l.b16 %v464
      %v977 = vunpack.c.l.b16 %v465
      %v978 = vunpack.c.l.b16 %v466
      %v979 = vunpack.c.l.b16 %v467
      %v980 = vunpack.c.l.b16 %v468
      %v981 = vunpack.c.l.b16 %v469
      %v982 = vunpack.c.l.b16 %v470
      %v983 = vunpack.c.l.b16 %v471
      %v984 = vunpack.c.l.b16 %v472
      %v985 = vunpack.c.l.b16 %v473
      %v986 = vunpack.c.l.b16 %v474
      %v987 = vunpack.c.l.b16 %v475
      %v988 = vunpack.c.l.b16 %v476
      %v989 = vunpack.c.l.b16 %v477
      %v990 = vunpack.c.l.b16 %v478
      %v991 = vunpack.c.l.b16 %v479
      %v992 = vunpack.c.l.b16 %v480
      %v993 = vunpack.c.l.b16 %v481
      %v994 = vunpack.c.l.b16 %v482
      %v995 = vunpack.c.l.b16 %v483
      %v996 = vunpack.c.l.b16 %v484
      %v997 = vunpack.c.l.b16 %v485
      %v998 = vunpack.c.l.b16 %v486
      %v999 = vunpack.c.l.b16 %v487
      %v1000 = vunpack.c.l.b16 %v488
      %v1001 = vunpack.c.l.b16 %v489
      %v1002 = vunpack.c.l.b16 %v490
      %v1003 = vunpack.c.l.b16 %v491
      %v1004 = vunpack.c.l.b16 %v492
      %v1005 = vunpack.c.l.b16 %v493
      %v1006 = vunpack.c.l.b16 %v494
      %v1007 = vunpack.c.l.b16 %v495
      %v1008 = vunpack.c.l.b16 %v496
      %v1009 = vunpack.c.l.b16 %v497
      %v1010 = vunpack.c.l.b16 %v498
      %v1011 = vunpack.c.l.b16 %v499
      %v1012 = vunpack.c.l.b16 %v500
      %v1013 = vunpack.c.l.b16 %v501
      %v1014 = vpack.c.b16 %v759, %v758
      %v1015 = vpack.c.b16 %v761, %v760
      %v1016 = vpack.c.b16 %v763, %v762
      %v1017 = vpack.c.b16 %v765, %v764
      %v1018 = vpack.c.b16 %v767, %v766
      %v1019 = vpack.c.b16 %v769, %v768
      %v1020 = vpack.c.b16 %v771, %v770
      %v1021 = vpack.c.b16 %v773, %v772
      %v1022 = vpack.c.b16 %v775, %v774
      %v1023 = vpack.c.b16 %v777, %v776
      %v1024 = vpack.c.b16 %v779, %v778
      %v1025 = vpack.c.b16 %v781, %v780
      %v1026 = vpack.c.b16 %v783, %v782
      %v1027 = vpack.c.b16 %v785, %v784
      %v1028 = vpack.c.b16 %v787, %v786
      %v1029 = vpack.c.b16 %v789, %v788
      %v1030 = vpack.c.b16 %v791, %v790
      %v1031 = vpack.c.b16 %v793, %v792
      %v1032 = vpack.c.b16 %v795, %v794
      %v1033 = vpack.c.b16 %v797, %v796
      %v1034 = vpack.c.b16 %v799, %v798
      %v1035 = vpack.c.b16 %v801, %v800
      %v1036 = vpack.c.b16 %v803, %v802
      %v1037 = vpack.c.b16 %v805, %v804
      %v1038 = vpack.c.b16 %v807, %v806
      %v1039 = vpack.c.b16 %v809, %v808
      %v1040 = vpack.c.b16 %v811, %v810
      %v1041 = vpack.c.b16 %v813, %v812
      %v1042 = vpack.c.b16 %v815, %v814
      %v1043 = vpack.c.b16 %v817, %v816
      %v1044 = vpack.c.b16 %v819, %v818
      %v1045 = vpack.c.b16 %v821, %v820
      %v1046 = vpack.c.b16 %v823, %v822
      %v1047 = vpack.c.b16 %v825, %v824
      %v1048 = vpack.c.b16 %v827, %v826
      %v1049 = vpack.c.b16 %v829, %v828
      %v1050 = vpack.c.b16 %v831, %v830
      %v1051 = vpack.c.b16 %v833, %v832
      %v1052 = vpack.c.b16 %v835, %v834
      %v1053 = vpack.c.b16 %v837, %v836
      %v1054 = vpack.c.b16 %v839, %v838
      %v1055 = vpack.c.b16 %v841, %v840
      %v1056 = vpack.c.b16 %v843, %v842
      %v1057 = vpack.c.b16 %v845, %v844
      %v1058 = vpack.c.b16 %v847, %v846
      %v1059 = vpack.c.b16 %v849, %v848
      %v1060 = vpack.c.b16 %v851, %v850
      %v1061 = vpack.c.b16 %v853, %v852
      %v1062 = vpack.c.b16 %v855, %v854
      %v1063 = vpack.c.b16 %v857, %v856
      %v1064 = vpack.c.b16 %v859, %v858
      %v1065 = vpack.c.b16 %v861, %v860
      %v1066 = vpack.c.b16 %v863, %v862
      %v1067 = vpack.c.b16 %v865, %v864
      %v1068 = vpack.c.b16 %v867, %v866
      %v1069 = vpack.c.b16 %v869, %v868
      %v1070 = vpack.c.b16 %v871, %v870
      %v1071 = vpack.c.b16 %v873, %v872
      %v1072 = vpack.c.b16 %v875, %v874
      %v1073 = vpack.c.b16 %v877, %v876
      %v1074 = vpack.c.b16 %v879, %v878
      %v1075 = vpack.c.b16 %v881, %v880
      %v1076 = vpack.c.b16 %v883, %v882
      %v1077 = vpack.c.b16 %v885, %v884
      %v1078 = vpack.c.b16 %v887, %v886
      %v1079 = vpack.c.b16 %v889, %v888
      %v1080 = vpack.c.b16 %v891, %v890
      %v1081 = vpack.c.b16 %v893, %v892
      %v1082 = vpack.c.b16 %v895, %v894
      %v1083 = vpack.c.b16 %v897, %v896
      %v1084 = vpack.c.b16 %v899, %v898
      %v1085 = vpack.c.b16 %v901, %v900
      %v1086 = vpack.c.b16 %v903, %v902
      %v1087 = vpack.c.b16 %v905, %v904
      %v1088 = vpack.c.b16 %v907, %v906
      %v1089 = vpack.c.b16 %v909, %v908
      %v1090 = vpack.c.b16 %v911, %v910
      %v1091 = vpack.c.b16 %v913, %v912
      %v1092 = vpack.c.b16 %v915, %v914
      %v1093 = vpack.c.b16 %v917, %v916
      %v1094 = vpack.c.b16 %v919, %v918
      %v1095 = vpack.c.b16 %v921, %v920
      %v1096 = vpack.c.b16 %v923, %v922
      %v1097 = vpack.c.b16 %v925, %v924
      %v1098 = vpack.c.b16 %v927, %v926
      %v1099 = vpack.c.b16 %v929, %v928
      %v1100 = vpack.c.b16 %v931, %v930
      %v1101 = vpack.c.b16 %v933, %v932
      %v1102 = vpack.c.b16 %v935, %v934
      %v1103 = vpack.c.b16 %v937, %v936
      %v1104 = vpack.c.b16 %v939, %v938
      %v1105 = vpack.c.b16 %v941, %v940
      %v1106 = vpack.c.b16 %v943, %v942
      %v1107 = vpack.c.b16 %v945, %v944
      %v1108 = vpack.c.b16 %v947, %v946
      %v1109 = vpack.c.b16 %v949, %v948
      %v1110 = vpack.c.b16 %v951, %v950
      %v1111 = vpack.c.b16 %v953, %v952
      %v1112 = vpack.c.b16 %v955, %v954
      %v1113 = vpack.c.b16 %v957, %v956
      %v1114 = vpack.c.b16 %v959, %v958
      %v1115 = vpack.c.b16 %v961, %v960
      %v1116 = vpack.c.b16 %v963, %v962
      %v1117 = vpack.c.b16 %v965, %v964
      %v1118 = vpack.c.b16 %v967, %v966
      %v1119 = vpack.c.b16 %v969, %v968
      %v1120 = vpack.c.b16 %v971, %v970
      %v1121 = vpack.c.b16 %v973, %v972
      %v1122 = vpack.c.b16 %v975, %v974
      %v1123 = vpack.c.b16 %v977, %v976
      %v1124 = vpack.c.b16 %v979, %v978
      %v1125 = vpack.c.b16 %v981, %v980
      %v1126 = vpack.c.b16 %v983, %v982
      %v1127 = vpack.c.b16 %v985, %v984
      %v1128 = vpack.c.b16 %v987, %v986
      %v1129 = vpack.c.b16 %v989, %v988
      %v1130 = vpack.c.b16 %v991, %v990
      %v1131 = vpack.c.b16 %v993, %v992
      %v1132 = vpack.c.b16 %v995, %v994
      %v1133 = vpack.c.b16 %v997, %v996
      %v1134 = vpack.c.b16 %v999, %v998
      %v1135 = vpack.c.b16 %v1001, %v1000
      %v1136 = vpack.c.b16 %v1003, %v1002
      %v1137 = vpack.c.b16 %v1005, %v1004
      %v1138 = vpack.c.b16 %v1007, %v1006
      %v1139 = vpack.c.b16 %v1009, %v1008
      %v1140 = vpack.c.b16 %v1011, %v1010
      %v1141 = vpack.c.b16 %v1013, %v1012
      %1270 = vmatprep.subr.bf16.mxu0 0
      %1271 = vmatpush1.bf16.msra.mxu0 %v1021
      %1272 = vmatprep.subr.bf16.mxu0 0
      %1273 = vmatpush1.bf16.msra.mxu0 %v1020
      %1274 = vmatprep.subr.bf16.mxu0 0
      %1275 = vmatpush1.bf16.msra.mxu0 %v1019
      %1276 = vmatprep.subr.bf16.mxu0 0
      %1277 = vmatpush1.bf16.msra.mxu0 %v1018
      %1278 = vmatprep.subr.bf16.mxu0 0
      %1279 = vmatpush1.bf16.msra.mxu0 %v1017
      %1280 = vmatprep.subr.bf16.mxu0 0
      %1281 = vmatpush1.bf16.msra.mxu0 %v1016
      %1282 = vmatprep.subr.bf16.mxu0 0
      %1283 = vmatpush1.bf16.msra.mxu0 %v1015
      %1284 = vmatprep.subr.bf16.mxu0 0
      %1285 = vmatpush1.bf16.msra.mxu0 %v1014
      %1286 = vmatprep.subr.bf16.mxu0 0
      %1287 = vmatpush2.bf16.msra.mxu0 %v1029
      %1288 = vmatprep.subr.bf16.mxu0 0
      %1289 = vmatpush2.bf16.msra.mxu0 %v1028
      %1290 = vmatprep.subr.bf16.mxu0 0
      %1291 = vmatpush2.bf16.msra.mxu0 %v1027
      %1292 = vmatprep.subr.bf16.mxu0 0
      %1293 = vmatpush2.bf16.msra.mxu0 %v1026
      %1294 = vmatprep.subr.bf16.mxu0 0
      %1295 = vmatpush2.bf16.msra.mxu0 %v1025
      %1296 = vmatprep.subr.bf16.mxu0 0
      %1297 = vmatpush2.bf16.msra.mxu0 %v1024
      %1298 = vmatprep.subr.bf16.mxu0 0
      %1299 = vmatpush2.bf16.msra.mxu0 %v1023
      %1300 = vmatprep.subr.bf16.mxu0 0
      %1301 = vmatpush2.bf16.msra.mxu0 %v1022
      %1302 = vmatprep.mubr.bf16.mxu0 %v230
      %1303 = vmatmul.mubr.bf16.gmra.mxu0 %v229
      %v1304 = vpop.f32.mrf.mxu0
      %v1305 = vadd.f32 0.0, %v1304
      %v1306 = vpop.f32.mrf.mxu0
      %v1307 = vpop.f32.mrf.mxu0
      %v1308 = vpop.f32.mrf.mxu0
      %1309 = vdwg.mxu0
      %1310 = vmatprep.subr.bf16.mxu0 0
      %1311 = vmatpush1.bf16.msra.mxu0 %v1037
      %1312 = vmatprep.subr.bf16.mxu0 0
      %1313 = vmatpush1.bf16.msra.mxu0 %v1036
      %1314 = vmatprep.subr.bf16.mxu0 0
      %1315 = vmatpush1.bf16.msra.mxu0 %v1035
      %1316 = vmatprep.subr.bf16.mxu0 0
      %1317 = vmatpush1.bf16.msra.mxu0 %v1034
      %1318 = vmatprep.subr.bf16.mxu0 0
      %1319 = vmatpush1.bf16.msra.mxu0 %v1033
      %1320 = vmatprep.subr.bf16.mxu0 0
      %1321 = vmatpush1.bf16.msra.mxu0 %v1032
      %1322 = vmatprep.subr.bf16.mxu0 0
      %1323 = vmatpush1.bf16.msra.mxu0 %v1031
      %1324 = vmatprep.subr.bf16.mxu0 0
      %1325 = vmatpush1.bf16.msra.mxu0 %v1030
      %1326 = vmatprep.subr.bf16.mxu0 0
      %1327 = vmatpush2.bf16.msra.mxu0 %v1045
      %1328 = vmatprep.subr.bf16.mxu0 0
      %1329 = vmatpush2.bf16.msra.mxu0 %v1044
      %1330 = vmatprep.subr.bf16.mxu0 0
      %1331 = vmatpush2.bf16.msra.mxu0 %v1043
      %1332 = vmatprep.subr.bf16.mxu0 0
      %1333 = vmatpush2.bf16.msra.mxu0 %v1042
      %1334 = vmatprep.subr.bf16.mxu0 0
      %1335 = vmatpush2.bf16.msra.mxu0 %v1041
      %1336 = vmatprep.subr.bf16.mxu0 0
      %1337 = vmatpush2.bf16.msra.mxu0 %v1040
      %1338 = vmatprep.subr.bf16.mxu0 0
      %1339 = vmatpush2.bf16.msra.mxu0 %v1039
      %1340 = vmatprep.subr.bf16.mxu0 0
      %1341 = vmatpush2.bf16.msra.mxu0 %v1038
      %1342 = vmatprep.mubr.bf16.mxu0 %v232
      %1343 = vmatmul.mubr.bf16.gmra.mxu0 %v231
      %v1344 = vpop.f32.mrf.mxu0
      %v1345 = vadd.f32 %v1305, %v1344
      %v1346 = vpop.f32.mrf.mxu0
      %v1347 = vpop.f32.mrf.mxu0
      %v1348 = vpop.f32.mrf.mxu0
      %1349 = vdwg.mxu0
      %1350 = vmatprep.subr.bf16.mxu0 0
      %1351 = vmatpush1.bf16.msra.mxu0 %v1053
      %1352 = vmatprep.subr.bf16.mxu0 0
      %1353 = vmatpush1.bf16.msra.mxu0 %v1052
      %1354 = vmatprep.subr.bf16.mxu0 0
      %1355 = vmatpush1.bf16.msra.mxu0 %v1051
      %1356 = vmatprep.subr.bf16.mxu0 0
      %1357 = vmatpush1.bf16.msra.mxu0 %v1050
      %1358 = vmatprep.subr.bf16.mxu0 0
      %1359 = vmatpush1.bf16.msra.mxu0 %v1049
      %1360 = vmatprep.subr.bf16.mxu0 0
      %1361 = vmatpush1.bf16.msra.mxu0 %v1048
      %1362 = vmatprep.subr.bf16.mxu0 0
      %1363 = vmatpush1.bf16.msra.mxu0 %v1047
      %1364 = vmatprep.subr.bf16.mxu0 0
      %1365 = vmatpush1.bf16.msra.mxu0 %v1046
      %1366 = vmatprep.subr.bf16.mxu0 0
      %1367 = vmatpush2.bf16.msra.mxu0 %v1061
      %1368 = vmatprep.subr.bf16.mxu0 0
      %1369 = vmatpush2.bf16.msra.mxu0 %v1060
      %1370 = vmatprep.subr.bf16.mxu0 0
      %1371 = vmatpush2.bf16.msra.mxu0 %v1059
      %1372 = vmatprep.subr.bf16.mxu0 0
      %1373 = vmatpush2.bf16.msra.mxu0 %v1058
      %1374 = vmatprep.subr.bf16.mxu0 0
      %1375 = vmatpush2.bf16.msra.mxu0 %v1057
      %1376 = vmatprep.subr.bf16.mxu0 0
      %1377 = vmatpush2.bf16.msra.mxu0 %v1056
      %1378 = vmatprep.subr.bf16.mxu0 0
      %1379 = vmatpush2.bf16.msra.mxu0 %v1055
      %1380 = vmatprep.subr.bf16.mxu0 0
      %1381 = vmatpush2.bf16.msra.mxu0 %v1054
      %1382 = vmatprep.mubr.bf16.mxu0 %v234
      %1383 = vmatmul.mubr.bf16.gmra.mxu0 %v233
      %v1384 = vpop.f32.mrf.mxu0
      %v1385 = vadd.f32 %v1345, %v1384
      %v1386 = vpop.f32.mrf.mxu0
      %v1387 = vpop.f32.mrf.mxu0
      %v1388 = vpop.f32.mrf.mxu0
      %1389 = vdwg.mxu0
      %1390 = vmatprep.subr.bf16.mxu0 0
      %1391 = vmatpush1.bf16.msra.mxu0 %v1069
      %1392 = vmatprep.subr.bf16.mxu0 0
      %1393 = vmatpush1.bf16.msra.mxu0 %v1068
      %1394 = vmatprep.subr.bf16.mxu0 0
      %1395 = vmatpush1.bf16.msra.mxu0 %v1067
      %1396 = vmatprep.subr.bf16.mxu0 0
      %1397 = vmatpush1.bf16.msra.mxu0 %v1066
      %1398 = vmatprep.subr.bf16.mxu0 0
      %1399 = vmatpush1.bf16.msra.mxu0 %v1065
      %1400 = vmatprep.subr.bf16.mxu0 0
      %1401 = vmatpush1.bf16.msra.mxu0 %v1064
      %1402 = vmatprep.subr.bf16.mxu0 0
      %1403 = vmatpush1.bf16.msra.mxu0 %v1063
      %1404 = vmatprep.subr.bf16.mxu0 0
      %1405 = vmatpush1.bf16.msra.mxu0 %v1062
      %1406 = vmatprep.subr.bf16.mxu0 0
      %1407 = vmatpush2.bf16.msra.mxu0 %v1077
      %1408 = vmatprep.subr.bf16.mxu0 0
      %1409 = vmatpush2.bf16.msra.mxu0 %v1076
      %1410 = vmatprep.subr.bf16.mxu0 0
      %1411 = vmatpush2.bf16.msra.mxu0 %v1075
      %1412 = vmatprep.subr.bf16.mxu0 0
      %1413 = vmatpush2.bf16.msra.mxu0 %v1074
      %1414 = vmatprep.subr.bf16.mxu0 0
      %1415 = vmatpush2.bf16.msra.mxu0 %v1073
      %1416 = vmatprep.subr.bf16.mxu0 0
      %1417 = vmatpush2.bf16.msra.mxu0 %v1072
      %1418 = vmatprep.subr.bf16.mxu0 0
      %1419 = vmatpush2.bf16.msra.mxu0 %v1071
      %1420 = vmatprep.subr.bf16.mxu0 0
      %1421 = vmatpush2.bf16.msra.mxu0 %v1070
      %1422 = vmatprep.mubr.bf16.mxu0 %v236
      %1423 = vmatmul.mubr.bf16.gmra.mxu0 %v235
      %v1424 = vpop.f32.mrf.mxu0
      %v1425 = vadd.f32 %v1385, %v1424
      %v1426 = vpop.f32.mrf.mxu0
      %v1427 = vpop.f32.mrf.mxu0
      %v1428 = vpop.f32.mrf.mxu0
      %1429 = vdwg.mxu0
      %1430 = vmatprep.subr.bf16.mxu0 0
      %1431 = vmatpush1.bf16.msra.mxu0 %v1085
      %1432 = vmatprep.subr.bf16.mxu0 0
      %1433 = vmatpush1.bf16.msra.mxu0 %v1084
      %1434 = vmatprep.subr.bf16.mxu0 0
      %1435 = vmatpush1.bf16.msra.mxu0 %v1083
      %1436 = vmatprep.subr.bf16.mxu0 0
      %1437 = vmatpush1.bf16.msra.mxu0 %v1082
      %1438 = vmatprep.subr.bf16.mxu0 0
      %1439 = vmatpush1.bf16.msra.mxu0 %v1081
      %1440 = vmatprep.subr.bf16.mxu0 0
      %1441 = vmatpush1.bf16.msra.mxu0 %v1080
      %1442 = vmatprep.subr.bf16.mxu0 0
      %1443 = vmatpush1.bf16.msra.mxu0 %v1079
      %1444 = vmatprep.subr.bf16.mxu0 0
      %1445 = vmatpush1.bf16.msra.mxu0 %v1078
      %1446 = vmatprep.subr.bf16.mxu0 0
      %1447 = vmatpush2.bf16.msra.mxu0 %v1093
      %1448 = vmatprep.subr.bf16.mxu0 0
      %1449 = vmatpush2.bf16.msra.mxu0 %v1092
      %1450 = vmatprep.subr.bf16.mxu0 0
      %1451 = vmatpush2.bf16.msra.mxu0 %v1091
      %1452 = vmatprep.subr.bf16.mxu0 0
      %1453 = vmatpush2.bf16.msra.mxu0 %v1090
      %1454 = vmatprep.subr.bf16.mxu0 0
      %1455 = vmatpush2.bf16.msra.mxu0 %v1089
      %1456 = vmatprep.subr.bf16.mxu0 0
      %1457 = vmatpush2.bf16.msra.mxu0 %v1088
      %1458 = vmatprep.subr.bf16.mxu0 0
      %1459 = vmatpush2.bf16.msra.mxu0 %v1087
      %1460 = vmatprep.subr.bf16.mxu0 0
      %1461 = vmatpush2.bf16.msra.mxu0 %v1086
      %1462 = vmatprep.mubr.bf16.mxu0 %v238
      %1463 = vmatmul.mubr.bf16.gmra.mxu0 %v237
      %v1464 = vpop.f32.mrf.mxu0
      %v1465 = vadd.f32 %v1425, %v1464
      %v1466 = vpop.f32.mrf.mxu0
      %v1467 = vpop.f32.mrf.mxu0
      %v1468 = vpop.f32.mrf.mxu0
      %1469 = vdwg.mxu0
      %1470 = vmatprep.subr.bf16.mxu0 0
      %1471 = vmatpush1.bf16.msra.mxu0 %v1101
      %1472 = vmatprep.subr.bf16.mxu0 0
      %1473 = vmatpush1.bf16.msra.mxu0 %v1100
      %1474 = vmatprep.subr.bf16.mxu0 0
      %1475 = vmatpush1.bf16.msra.mxu0 %v1099
      %1476 = vmatprep.subr.bf16.mxu0 0
      %1477 = vmatpush1.bf16.msra.mxu0 %v1098
      %1478 = vmatprep.subr.bf16.mxu0 0
      %1479 = vmatpush1.bf16.msra.mxu0 %v1097
      %1480 = vmatprep.subr.bf16.mxu0 0
      %1481 = vmatpush1.bf16.msra.mxu0 %v1096
      %1482 = vmatprep.subr.bf16.mxu0 0
      %1483 = vmatpush1.bf16.msra.mxu0 %v1095
      %1484 = vmatprep.subr.bf16.mxu0 0
      %1485 = vmatpush1.bf16.msra.mxu0 %v1094
      %1486 = vmatprep.subr.bf16.mxu0 0
      %1487 = vmatpush2.bf16.msra.mxu0 %v1109
      %1488 = vmatprep.subr.bf16.mxu0 0
      %1489 = vmatpush2.bf16.msra.mxu0 %v1108
      %1490 = vmatprep.subr.bf16.mxu0 0
      %1491 = vmatpush2.bf16.msra.mxu0 %v1107
      %1492 = vmatprep.subr.bf16.mxu0 0
      %1493 = vmatpush2.bf16.msra.mxu0 %v1106
      %1494 = vmatprep.subr.bf16.mxu0 0
      %1495 = vmatpush2.bf16.msra.mxu0 %v1105
      %1496 = vmatprep.subr.bf16.mxu0 0
      %1497 = vmatpush2.bf16.msra.mxu0 %v1104
      %1498 = vmatprep.subr.bf16.mxu0 0
      %1499 = vmatpush2.bf16.msra.mxu0 %v1103
      %1500 = vmatprep.subr.bf16.mxu0 0
      %1501 = vmatpush2.bf16.msra.mxu0 %v1102
      %1502 = vmatprep.mubr.bf16.mxu0 %v240
      %1503 = vmatmul.mubr.bf16.gmra.mxu0 %v239
      %v1504 = vpop.f32.mrf.mxu0
      %v1505 = vadd.f32 %v1465, %v1504
      %v1506 = vpop.f32.mrf.mxu0
      %v1507 = vpop.f32.mrf.mxu0
      %v1508 = vpop.f32.mrf.mxu0
      %1509 = vdwg.mxu0
      %1510 = vmatprep.subr.bf16.mxu0 0
      %1511 = vmatpush1.bf16.msra.mxu0 %v1117
      %1512 = vmatprep.subr.bf16.mxu0 0
      %1513 = vmatpush1.bf16.msra.mxu0 %v1116
      %1514 = vmatprep.subr.bf16.mxu0 0
      %1515 = vmatpush1.bf16.msra.mxu0 %v1115
      %1516 = vmatprep.subr.bf16.mxu0 0
      %1517 = vmatpush1.bf16.msra.mxu0 %v1114
      %1518 = vmatprep.subr.bf16.mxu0 0
      %1519 = vmatpush1.bf16.msra.mxu0 %v1113
      %1520 = vmatprep.subr.bf16.mxu0 0
      %1521 = vmatpush1.bf16.msra.mxu0 %v1112
      %1522 = vmatprep.subr.bf16.mxu0 0
      %1523 = vmatpush1.bf16.msra.mxu0 %v1111
      %1524 = vmatprep.subr.bf16.mxu0 0
      %1525 = vmatpush1.bf16.msra.mxu0 %v1110
      %1526 = vmatprep.subr.bf16.mxu0 0
      %1527 = vmatpush2.bf16.msra.mxu0 %v1125
      %1528 = vmatprep.subr.bf16.mxu0 0
      %1529 = vmatpush2.bf16.msra.mxu0 %v1124
      %1530 = vmatprep.subr.bf16.mxu0 0
      %1531 = vmatpush2.bf16.msra.mxu0 %v1123
      %1532 = vmatprep.subr.bf16.mxu0 0
      %1533 = vmatpush2.bf16.msra.mxu0 %v1122
      %1534 = vmatprep.subr.bf16.mxu0 0
      %1535 = vmatpush2.bf16.msra.mxu0 %v1121
      %1536 = vmatprep.subr.bf16.mxu0 0
      %1537 = vmatpush2.bf16.msra.mxu0 %v1120
      %1538 = vmatprep.subr.bf16.mxu0 0
      %1539 = vmatpush2.bf16.msra.mxu0 %v1119
      %1540 = vmatprep.subr.bf16.mxu0 0
      %1541 = vmatpush2.bf16.msra.mxu0 %v1118
      %1542 = vmatprep.mubr.bf16.mxu0 %v242
      %1543 = vmatmul.mubr.bf16.gmra.mxu0 %v241
      %v1544 = vpop.f32.mrf.mxu0
      %v1545 = vadd.f32 %v1505, %v1544
      %v1546 = vpop.f32.mrf.mxu0
      %v1547 = vpop.f32.mrf.mxu0
      %v1548 = vpop.f32.mrf.mxu0
      %1549 = vdwg.mxu0
      %1550 = vmatprep.subr.bf16.mxu0 0
      %1551 = vmatpush1.bf16.msra.mxu0 %v1133
      %1552 = vmatprep.subr.bf16.mxu0 0
      %1553 = vmatpush1.bf16.msra.mxu0 %v1132
      %1554 = vmatprep.subr.bf16.mxu0 0
      %1555 = vmatpush1.bf16.msra.mxu0 %v1131
      %1556 = vmatprep.subr.bf16.mxu0 0
      %1557 = vmatpush1.bf16.msra.mxu0 %v1130
      %1558 = vmatprep.subr.bf16.mxu0 0
      %1559 = vmatpush1.bf16.msra.mxu0 %v1129
      %1560 = vmatprep.subr.bf16.mxu0 0
      %1561 = vmatpush1.bf16.msra.mxu0 %v1128
      %1562 = vmatprep.subr.bf16.mxu0 0
      %1563 = vmatpush1.bf16.msra.mxu0 %v1127
      %1564 = vmatprep.subr.bf16.mxu0 0
      %1565 = vmatpush1.bf16.msra.mxu0 %v1126
      %1566 = vmatprep.subr.bf16.mxu0 0
      %1567 = vmatpush2.bf16.msra.mxu0 %v1141
      %1568 = vmatprep.subr.bf16.mxu0 0
      %1569 = vmatpush2.bf16.msra.mxu0 %v1140
      %1570 = vmatprep.subr.bf16.mxu0 0
      %1571 = vmatpush2.bf16.msra.mxu0 %v1139
      %1572 = vmatprep.subr.bf16.mxu0 0
      %1573 = vmatpush2.bf16.msra.mxu0 %v1138
      %1574 = vmatprep.subr.bf16.mxu0 0
      %1575 = vmatpush2.bf16.msra.mxu0 %v1137
      %1576 = vmatprep.subr.bf16.mxu0 0
      %1577 = vmatpush2.bf16.msra.mxu0 %v1136
      %1578 = vmatprep.subr.bf16.mxu0 0
      %1579 = vmatpush2.bf16.msra.mxu0 %v1135
      %1580 = vmatprep.subr.bf16.mxu0 0
      %1581 = vmatpush2.bf16.msra.mxu0 %v1134
      %1582 = vmatprep.mubr.bf16.mxu0 %v244
      %1583 = vmatmul.mubr.bf16.gmra.mxu0 %v243
      %v1584 = vpop.f32.mrf.mxu0
      %v1585 = vadd.f32 %v1545, %v1584
      %v1586 = vpop.f32.mrf.mxu0
      %v1587 = vpop.f32.mrf.mxu0
      %v1588 = vpop.f32.mrf.mxu0
      %1589 = vdwg.mxu0
      %v1590 = vadd.f32 %v245, %v1585
      %1591 = vst [vmem:[#allocation2] sm:$0xff] %v1590
      %p1592 = scmp.eq.s32.totalorder %s15, 3
      // Predicated region
      $region41: #{_lambda_.5} parent=35 // pred_check
        %p1593 = pneg %p1592
      $region42: #{_lambda_.5} parent=35 // pred_check_branch
        %1595 = sbr.rel (%p1593) target = $region44
      $region43: #{_lambda_.5} parent=35 // pred_region
        %v1596 = vld [vmem:[#allocation2] sm:$0xff]
        %v1597 = vld [vmem:[%s2] sm:$0x1]
        %v1599 = vlaneseq
        %v1600 = vshrl.u32 %v1599, 7
        %v1601 = vsub.s32 0, %v1600
        %v1602 = vrot.slane %v1597, %v1601
        %v1604 = vadd.f32 %v1596, %v1602
        %vm1605 = vcmp.ge.f32.partialorder %v1604, 0.0
        %v1606 = vmul.f32 %v1604, 0.2
        %v1607 = vsel %vm1605, %v1604, %v1606
        %v1608 = vmul.f32 %v1607, 1.4142135
        %v1609 = vld [vmem:[%s3] sm:$0xff]
        %v1610 = vmul.f32 %v1608, %v1609
        %1611 = vadd.xlane.f32.xlu0 %v1610
        %v1612 = vpop.xlane.xlu0 %1611
        %v1613 = vmul.f32 %v1612, 0.125
        %vm1614 = vcmask 7168
        %1615 = vst.msk [vmem:[%s4] sm:$0xff] %vm1614, %v1613
      $region44: #{_lambda_.5} parent=35 // pred_fallthru
        _
      // Predicated region
      $region45: #{_lambda_.5} parent=35 // pred_check
        %p1616 = pneg %p122
      $region46: #{_lambda_.5} parent=35 // pred_check_branch
        %1618 = sbr.rel (%p1616) target = $region48
      $region47: #{_lambda_.5} parent=35 // pred_region
        _
      $region48: #{_lambda_.5} parent=35 // pred_fallthru
        _
      // Predicated region
      $region49: #{_lambda_.5} parent=35 // pred_check
        %p1619 = pneg %p122
      $region50: #{_lambda_.5} parent=35 // pred_check_branch
        %1621 = sbr.rel (%p1619) target = $region52
      $region51: #{_lambda_.5} parent=35 // pred_region
        _
      $region52: #{_lambda_.5} parent=35 // pred_fallthru
        _
    $region36: #{_lambda_.5} parent=5 // pred_fallthru
      _
    %p1622 = scmp.le.s32.totalorder 2, %s10
    // Predicated region
    $region53: #{_lambda_.5} parent=5 // pred_check
      %p1623 = pneg %p1622
    $region54: #{_lambda_.5} parent=5 // pred_check_branch
      %1625 = sbr.rel (%p1623) target = $region56
    $region55: #{_lambda_.5} parent=5 // pred_region
      %s1626 = ssub.s32 %s10, 2
    $region56: #{_lambda_.5} parent=5 // pred_fallthru
      _
  $region6: #{_lambda_.5} parent=0 // loop_footer
    %s14 = sadd.s32 1, %s10
  $region7: #{_lambda_.5} parent=0 // loop_footer_branch
    %9 = sbr.rel target = $region3
  $region8: #{_lambda_.5} parent=0 // loop_exit
    _

</llo_original>
